<compile_context>
chip_gen: v7x
topology: tpu7x:2x2x1
jax: 0.10.0
libtpu: 0.0.40
codegen_flags: <defaults>
</compile_context>

<pallas_src>
import jax
import jax.numpy as jnp
from jax import lax
from jax.experimental import pallas as pl
from jax.experimental.pallas import tpu as pltpu

# ------------------------- configuration (small) -----------------------------
HIDDEN_DIM = 128                 # hidden_dim; no double/triple embeddings
ENTITY_DIM = HIDDEN_DIM
RELATION_DIM = HIDDEN_DIM
SAMPLE_PATHS = 2                 # anchors kept per entity
SAMPLE_RELS = 2                  # relational context size per entity
NENTITY = 64
NRELATION = 11                   # last relation id is the pad relation
NUM_ANCHOR_TOKENS = 32           # tokenizer vocab; anchor table has +1 pad row
MAX_SEQ_LEN = 5                  # max distance value (dist table has +1 rows)
GAMMA = 10.0
EPSILON = 2.0
EMB_RANGE = (GAMMA + EPSILON) / HIDDEN_DIM
BATCH = 256                      # -> 2 grid tiles of 128 rows (both v7x TCs)

FEAT_DIM = ENTITY_DIM * (SAMPLE_PATHS + SAMPLE_RELS)   # 512 (set_enc in width)
MID_DIM = ENTITY_DIM * 2                               # 256 (set_enc hidden)
TILE_B = 128                                           # batch rows per step


# ------------------------------- Pallas kernel -------------------------------
def _onehot(idx_col, n):
    """[rows, 1] int32 -> [rows, n] f32 one-hot (exact MXU gather operand)."""
    iota = lax.broadcasted_iota(jnp.int32, (idx_col.shape[0], n), 1)
    return (idx_col == iota).astype(jnp.float32)


def kge_transe_kernel(ent_idx_ref, sample_ref, anc_ref, dst_ref, rel_ref,
                      w1_ref, b1_ref, w2_ref, b2_ref, o_ref):
    """Fused gather + dedup'd set_enc + TransE scoring for one batch tile.

    ent_idx : [NENTITY, 2P+R] int32 (hash_0..hash_{P-1}, dist_0.., relctx_0..)
    sample  : [TILE_B, 3] int32 (head, relation, tail) ids of this tile
    anc/dst/rel : f32 embedding tables (VMEM-resident constant blocks)
    w1/w2 bf16, b1/b2 f32 : set_enc parameters
    o       : [8, TILE_B] f32 score block (all 8 rows identical, unmasked vst)
    """
    D = ENTITY_DIM
    ent_idx = ent_idx_ref[...]
    anc_tab = anc_ref[...]
    dst_tab = dst_ref[...]
    rel_tab = rel_ref[...]
    w1 = w1_ref[...]

    # ---- dedup'd set_enc: encode every entity once -> [NENTITY, D] ----------
    # Linear1 accumulated per concat-slot: sum_k feat_k @ W1[k*D:(k+1)*D].
    h = jnp.zeros((NENTITY, MID_DIM), jnp.float32)
    for p in range(SAMPLE_PATHS):
        a = jnp.dot(_onehot(ent_idx[:, p:p + 1], NUM_ANCHOR_TOKENS + 1),
                    anc_tab, preferred_element_type=jnp.float32)
        d = jnp.dot(_onehot(ent_idx[:, SAMPLE_PATHS + p:SAMPLE_PATHS + p + 1],
                            MAX_SEQ_LEN + 1),
                    dst_tab, preferred_element_type=jnp.float32)
        feat = (a + d).astype(jnp.bfloat16)            # use_distances=True
        h += jnp.dot(feat, w1[p * D:(p + 1) * D, :],
                     preferred_element_type=jnp.float32)
    for r in range(SAMPLE_RELS):
        col = 2 * SAMPLE_PATHS + r
        rfeat = jnp.dot(_onehot(ent_idx[:, col:col + 1], NRELATION),
                        rel_tab, preferred_element_type=jnp.float32)
        h += jnp.dot(rfeat.astype(jnp.bfloat16),
                     w1[(SAMPLE_PATHS + r) * D:(SAMPLE_PATHS + r + 1) * D, :],
                     preferred_element_type=jnp.float32)
    # Dropout(p=0.0) is identity; bias/ReLU kept f32 on the VPU (v5e-safe).
    h = jnp.maximum(h + b1_ref[...], 0.0)
    ent_enc = jnp.dot(h.astype(jnp.bfloat16), w2_ref[...],
                      preferred_element_type=jnp.float32) + b2_ref[...]

    # ---- TransE 'single' mode for this tile: gamma - ||h + r - t||_1 --------
    s = sample_ref[...]                                # [TILE_B, 3] int32
    head = jnp.dot(_onehot(s[:, 0:1], NENTITY), ent_enc,
                   preferred_element_type=jnp.float32)
    relv = jnp.dot(_onehot(s[:, 1:2], NRELATION), rel_tab,
                   preferred_element_type=jnp.float32)
    tail = jnp.dot(_onehot(s[:, 2:3], NENTITY), ent_enc,
                   preferred_element_type=jnp.float32)
    ad = jnp.abs(head + relv - tail)                   # [TILE_B, D] f32, VPU

    # L1 reduction on the otherwise-idle MXU, contracting the feature axis
    # directly (compiler owns the layout).  All 8 rows identical -> one
    # unmasked (8, TILE_B) store.
    ones = jnp.ones((8, D), jnp.float32)
    l1 = lax.dot_general(ones, ad, (((1,), (1,)), ((), ())),
                         preferred_element_type=jnp.float32)   # [8, TILE_B]
    o_ref[...] = GAMMA - l1


def kge_forward_single(sample, tables, params):
    """Equivalent of KGEModel.forward(sample, mode='single') -> [B, 1]."""
    bsz = sample.shape[0]
    b_pad = ((bsz + TILE_B - 1) // TILE_B) * TILE_B
    if b_pad != bsz:
        # Padded rows score entity/relation 0 and are discarded below.
        sample = jnp.pad(sample, ((0, b_pad - bsz), (0, 0)))
    nt = b_pad // TILE_B

    # Per-entity gather indices packed as [NENTITY, 2P+R] int32.
    ent_idx = jnp.concatenate(
        [tables["hashes"], tables["distances"], tables["rel_ctx"]],
        axis=1).astype(jnp.int32)

    anc = tables["anchor_emb"]
    dst = tables["dist_emb"]
    rel = tables["relation_emb"]
    # bf16 MXU operands for set_enc weights; tables stay f32 so the one-hot
    # gathers are exact.  (No int8: v7x MXU has no integer path.)
    w1b = params["w1"].astype(jnp.bfloat16)
    w2b = params["w2"].astype(jnp.bfloat16)
    b1 = params["b1"]
    b2 = params["b2"]

    flops = nt * (
        # one-hot gathers (encode + scoring)
        2 * NENTITY * ENTITY_DIM * (SAMPLE_PATHS * (NUM_ANCHOR_TOKENS + 1)
                                    + SAMPLE_PATHS * (MAX_SEQ_LEN + 1)
                                    + SAMPLE_RELS * NRELATION)
        + 2 * TILE_B * ENTITY_DIM * (2 * NENTITY + NRELATION)
        # dedup'd set_enc matmuls
        + 2 * NENTITY * (FEAT_DIM * MID_DIM + MID_DIM * ENTITY_DIM)
        # L1 reduction
        + 2 * 8 * TILE_B * ENTITY_DIM)
    bytes_accessed = (ent_idx.size * 4 + b_pad * 3 * 4
                      + (anc.size + dst.size + rel.size) * 4
                      + w1b.size * 2 + w2b.size * 2
                      + b1.size * 4 + b2.size * 4 + 8 * b_pad * 4)

    out = pl.pallas_call(
        kge_transe_kernel,
        out_shape=jax.ShapeDtypeStruct((8, b_pad), jnp.float32),
        grid=(nt,),
        in_specs=[
            # constant-index blocks: fetched once, stay VMEM-resident
            pl.BlockSpec(ent_idx.shape, lambda i: (0, 0)),
            # batch-tiled (head, rel, tail) ids
            pl.BlockSpec((TILE_B, 3), lambda i: (i, 0)),
            pl.BlockSpec(anc.shape, lambda i: (0, 0)),
            pl.BlockSpec(dst.shape, lambda i: (0, 0)),
            pl.BlockSpec(rel.shape, lambda i: (0, 0)),
            pl.BlockSpec(w1b.shape, lambda i: (0, 0)),
            pl.BlockSpec(b1.shape, lambda i: (0, 0)),
            pl.BlockSpec(w2b.shape, lambda i: (0, 0)),
            pl.BlockSpec(b2.shape, lambda i: (0, 0)),
        ],
        # lane-dense full (8, TILE_B) score block per grid step
        out_specs=pl.BlockSpec((8, TILE_B), lambda i: (0, i)),
        compiler_params=pltpu.CompilerParams(
            dimension_semantics=("parallel",)),    # nt=2 -> both v7x TCs
        cost_estimate=pl.CostEstimate(
            flops=flops, transcendentals=0, bytes_accessed=bytes_accessed),
    )(ent_idx, sample, anc, dst, rel, w1b, b1, w2b, b2)

    return out[0, :bsz].reshape(bsz, 1)


# ------------------------------ references -----------------------------------
def encode_feats(entities, tables):
    """encode_by_index up to (not including) the set_enc MLP -> [B, FEAT_DIM]."""
    hashes = tables["hashes"][entities]
    dists = tables["distances"][entities]
    anc = tables["anchor_emb"][hashes] + tables["dist_emb"][dists]
    rels = tables["relation_emb"][tables["rel_ctx"][entities]]
    feats = jnp.concatenate([anc, rels], axis=1)
    return feats.reshape(entities.shape[0], -1)


def reference_forward(sample, tables, params):
    """Pure-f32 reference (exact module semantics)."""
    head_x = encode_feats(sample[:, 0], tables)
    tail_x = encode_feats(sample[:, 2], tables)
    rel = tables["relation_emb"][sample[:, 1]]

    def set_enc(x):
        h = jnp.maximum(x @ params["w1"] + params["b1"], 0.0)
        return h @ params["w2"] + params["b2"]

    diff = set_enc(head_x) + rel - set_enc(tail_x)
    return GAMMA - jnp.sum(jnp.abs(diff), axis=-1, keepdims=True)


def reference_forward_bf16(sample, tables, params):
    """Reference with the kernel's bf16 operand rounding (f32 accumulation)."""
    head_x = encode_feats(sample[:, 0], tables).astype(jnp.bfloat16)
    tail_x = encode_feats(sample[:, 2], tables).astype(jnp.bfloat16)
    rel = tables["relation_emb"][sample[:, 1]]
    w1 = params["w1"].astype(jnp.bfloat16)
    w2 = params["w2"].astype(jnp.bfloat16)

    def set_enc(x):
        h = jnp.dot(x, w1, preferred_element_type=jnp.float32) + params["b1"]
        h = jnp.maximum(h, 0.0).astype(jnp.bfloat16)
        return jnp.dot(h, w2, preferred_element_type=jnp.float32) + params["b2"]

    diff = set_enc(head_x) + rel - set_enc(tail_x)
    return GAMMA - jnp.sum(jnp.abs(diff), axis=-1, keepdims=True)


# --------------------------------- main ---------------------------------------
if __name__ == "__main__":
    key = jax.random.PRNGKey(0)
    keys = jax.random.split(key, 10)

    anchor_emb = jax.random.uniform(
        keys[0], (NUM_ANCHOR_TOKENS + 1, ENTITY_DIM),
        minval=-EMB_RANGE, maxval=EMB_RANGE, dtype=jnp.float32)
    anchor_emb = anchor_emb.at[NUM_ANCHOR_TOKENS].set(0.0)      # padding token

    relation_emb = jax.random.uniform(
        keys[1], (NRELATION, RELATION_DIM),
        minval=-EMB_RANGE, maxval=EMB_RANGE, dtype=jnp.float32)
    relation_emb = relation_emb.at[NRELATION - 1].set(0.0)      # pad relation

    xavier_bound = (6.0 / (MAX_SEQ_LEN + 1 + ENTITY_DIM)) ** 0.5
    dist_emb = jax.random.uniform(
        keys[2], (MAX_SEQ_LEN + 1, ENTITY_DIM),
        minval=-xavier_bound, maxval=xavier_bound, dtype=jnp.float32)
    dist_emb = dist_emb.at[0].set(0.0)

    hashes = jax.random.randint(keys[3], (NENTITY, SAMPLE_PATHS), 0,
                                NUM_ANCHOR_TOKENS + 1, dtype=jnp.int32)
    distances = jax.random.randint(keys[4], (NENTITY, SAMPLE_PATHS), 0,
                                   MAX_SEQ_LEN + 1, dtype=jnp.int32)
    rel_ctx = jax.random.randint(keys[5], (NENTITY, SAMPLE_RELS), 0,
                                 NRELATION, dtype=jnp.int32)

    lin1_bound = (1.0 / FEAT_DIM) ** 0.5
    lin2_bound = (1.0 / MID_DIM) ** 0.5
    w1 = jax.random.uniform(keys[6], (FEAT_DIM, MID_DIM),
                            minval=-lin1_bound, maxval=lin1_bound,
                            dtype=jnp.float32)
    b1 = jax.random.uniform(keys[7], (1, MID_DIM),
                            minval=-lin1_bound, maxval=lin1_bound,
                            dtype=jnp.float32)
    w2 = jax.random.uniform(keys[8], (MID_DIM, ENTITY_DIM),
                            minval=-lin2_bound, maxval=lin2_bound,
                            dtype=jnp.float32)
    b2 = jax.random.uniform(keys[9], (1, ENTITY_DIM),
                            minval=-lin2_bound, maxval=lin2_bound,
                            dtype=jnp.float32)

    tables = dict(anchor_emb=anchor_emb, relation_emb=relation_emb,
                  dist_emb=dist_emb, hashes=hashes, distances=distances,
                  rel_ctx=rel_ctx)
    params = dict(w1=w1, b1=b1, w2=w2, b2=b2)

    skey = jax.random.PRNGKey(42)
    sk_h, sk_r, sk_t = jax.random.split(skey, 3)
    sample = jnp.stack([
        jax.random.randint(sk_h, (BATCH,), 0, NENTITY, dtype=jnp.int32),
        jax.random.randint(sk_r, (BATCH,), 0, NRELATION, dtype=jnp.int32),
        jax.random.randint(sk_t, (BATCH,), 0, NENTITY, dtype=jnp.int32),
    ], axis=1)                                                   # [B, 3]

    score = jax.jit(kge_forward_single)(sample, tables, params)
    score = jax.block_until_ready(score)
    assert score.shape == (BATCH, 1)

    # Tight check vs. a reference with matching bf16 operand rounding.
    ref_bf16 = reference_forward_bf16(sample, tables, params)
    assert jnp.allclose(score, ref_bf16, atol=3e-2, rtol=1e-2), \
        float(jnp.max(jnp.abs(score - ref_bf16)))
    # Loose check vs. the exact f32 module semantics (bf16 MXU operands).
    ref_f32 = reference_forward(sample, tables, params)
    assert jnp.allclose(score, ref_f32, atol=1.5e-1, rtol=2e-2), \
        float(jnp.max(jnp.abs(score - ref_f32)))

    print("KERNEL_OK")
</pallas_src>

<mosaic_0001>
module attributes {stable_mosaic.version = 11 : i64} {
  func.func @kge_transe_kernel(%arg0: i32, %arg1: memref<64x6xi32, #tpu.memory_space<vmem>>, %arg2: memref<128x3xi32, #tpu.memory_space<vmem>>, %arg3: memref<33x128xf32, #tpu.memory_space<vmem>>, %arg4: memref<6x128xf32, #tpu.memory_space<vmem>>, %arg5: memref<11x128xf32, #tpu.memory_space<vmem>>, %arg6: memref<512x256xbf16, #tpu.memory_space<vmem>>, %arg7: memref<1x256xf32, #tpu.memory_space<vmem>>, %arg8: memref<256x128xbf16, #tpu.memory_space<vmem>>, %arg9: memref<1x128xf32, #tpu.memory_space<vmem>>, %arg10: memref<8x128xf32, #tpu.memory_space<vmem>>) attributes {dimension_semantics = [#tpu.dimension_semantics<parallel>], iteration_bounds = array<i64: 2>, scalar_prefetch = 0 : i64, scratch_operands = 0 : i64, tpu.core_type = #tpu.core_type<tc>, window_params = [{pipeline_mode = #tpu.pipeline_mode<synchronous>, transform_indices = @transform_0, window_bounds = array<i64: 64, 6>}, {transform_indices = @transform_1, window_bounds = array<i64: 128, 3>}, {pipeline_mode = #tpu.pipeline_mode<synchronous>, transform_indices = @transform_2, window_bounds = array<i64: 33, 128>}, {pipeline_mode = #tpu.pipeline_mode<synchronous>, transform_indices = @transform_3, window_bounds = array<i64: 6, 128>}, {pipeline_mode = #tpu.pipeline_mode<synchronous>, transform_indices = @transform_4, window_bounds = array<i64: 11, 128>}, {pipeline_mode = #tpu.pipeline_mode<synchronous>, transform_indices = @transform_5, window_bounds = array<i64: 512, 256>}, {pipeline_mode = #tpu.pipeline_mode<synchronous>, transform_indices = @transform_6, window_bounds = array<i64: 1, 256>}, {pipeline_mode = #tpu.pipeline_mode<synchronous>, transform_indices = @transform_7, window_bounds = array<i64: 256, 128>}, {pipeline_mode = #tpu.pipeline_mode<synchronous>, transform_indices = @transform_8, window_bounds = array<i64: 1, 128>}, {transform_indices = @transform_9, window_bounds = array<i64: 8, 128>}]} {
    %c0 = arith.constant 0 : index
    %c0_0 = arith.constant 0 : index
    %0 = vector.load %arg1[%c0, %c0_0] : memref<64x6xi32, #tpu.memory_space<vmem>>, vector<64x6xi32>
    %c0_1 = arith.constant 0 : index
    %c0_2 = arith.constant 0 : index
    %1 = vector.load %arg3[%c0_1, %c0_2] : memref<33x128xf32, #tpu.memory_space<vmem>>, vector<33x128xf32>
    %c0_3 = arith.constant 0 : index
    %c0_4 = arith.constant 0 : index
    %2 = vector.load %arg4[%c0_3, %c0_4] : memref<6x128xf32, #tpu.memory_space<vmem>>, vector<6x128xf32>
    %c0_5 = arith.constant 0 : index
    %c0_6 = arith.constant 0 : index
    %3 = vector.load %arg5[%c0_5, %c0_6] : memref<11x128xf32, #tpu.memory_space<vmem>>, vector<11x128xf32>
    %c0_7 = arith.constant 0 : index
    %c0_8 = arith.constant 0 : index
    %4 = vector.load %arg6[%c0_7, %c0_8] : memref<512x256xbf16, #tpu.memory_space<vmem>>, vector<512x256xbf16>
    %cst = arith.constant 0.000000e+00 : f32
    %5 = vector.broadcast %cst : f32 to vector<64x256xf32>
    %6 = vector.extract_strided_slice %0 {offsets = [0, 0], sizes = [64, 1], strides = [1, 1]} : vector<64x6xi32> to vector<64x1xi32>
    %7 = tpu.iota {dimensions = array<i32: 1>} : vector<64x33xi32>
    %8 = vector.broadcast %6 : vector<64x1xi32> to vector<64x33xi32>
    %9 = arith.cmpi eq, %8, %7 : vector<64x33xi32>
    %10 = arith.extui %9 : vector<64x33xi1> to vector<64x33xi32>
    %11 = arith.sitofp %10 : vector<64x33xi32> to vector<64x33xf32>
    %cst_9 = arith.constant dense<0.000000e+00> : vector<64x128xf32>
    %12 = tpu.matmul %11, %1, %cst_9 {dimension_numbers = #tpu.dot_dimension_numbers<[1], [0], [0], [1], [0, 0, 1, 1], [], []>} : vector<64x33xf32>, vector<33x128xf32>, vector<64x128xf32> -> vector<64x128xf32>
    %13 = vector.extract_strided_slice %0 {offsets = [0, 2], sizes = [64, 1], strides = [1, 1]} : vector<64x6xi32> to vector<64x1xi32>
    %14 = tpu.iota {dimensions = array<i32: 1>} : vector<64x6xi32>
    %15 = vector.broadcast %13 : vector<64x1xi32> to vector<64x6xi32>
    %16 = arith.cmpi eq, %15, %14 : vector<64x6xi32>
    %17 = arith.extui %16 : vector<64x6xi1> to vector<64x6xi32>
    %18 = arith.sitofp %17 : vector<64x6xi32> to vector<64x6xf32>
    %cst_10 = arith.constant dense<0.000000e+00> : vector<64x128xf32>
    %19 = tpu.matmul %18, %2, %cst_10 {dimension_numbers = #tpu.dot_dimension_numbers<[1], [0], [0], [1], [0, 0, 1, 1], [], []>} : vector<64x6xf32>, vector<6x128xf32>, vector<64x128xf32> -> vector<64x128xf32>
    %20 = arith.addf %12, %19 : vector<64x128xf32>
    %21 = arith.truncf %20 : vector<64x128xf32> to vector<64x128xbf16>
    %22 = vector.extract_strided_slice %4 {offsets = [0, 0], sizes = [128, 256], strides = [1, 1]} : vector<512x256xbf16> to vector<128x256xbf16>
    %cst_11 = arith.constant dense<0.000000e+00> : vector<64x256xf32>
    %23 = tpu.matmul %21, %22, %cst_11 {dimension_numbers = #tpu.dot_dimension_numbers<[1], [0], [0], [1], [0, 0, 1, 1], [], []>} : vector<64x128xbf16>, vector<128x256xbf16>, vector<64x256xf32> -> vector<64x256xf32>
    %24 = arith.addf %5, %23 : vector<64x256xf32>
    %25 = vector.extract_strided_slice %0 {offsets = [0, 1], sizes = [64, 1], strides = [1, 1]} : vector<64x6xi32> to vector<64x1xi32>
    %26 = tpu.iota {dimensions = array<i32: 1>} : vector<64x33xi32>
    %27 = vector.broadcast %25 : vector<64x1xi32> to vector<64x33xi32>
    %28 = arith.cmpi eq, %27, %26 : vector<64x33xi32>
    %29 = arith.extui %28 : vector<64x33xi1> to vector<64x33xi32>
    %30 = arith.sitofp %29 : vector<64x33xi32> to vector<64x33xf32>
    %cst_12 = arith.constant dense<0.000000e+00> : vector<64x128xf32>
    %31 = tpu.matmul %30, %1, %cst_12 {dimension_numbers = #tpu.dot_dimension_numbers<[1], [0], [0], [1], [0, 0, 1, 1], [], []>} : vector<64x33xf32>, vector<33x128xf32>, vector<64x128xf32> -> vector<64x128xf32>
    %32 = vector.extract_strided_slice %0 {offsets = [0, 3], sizes = [64, 1], strides = [1, 1]} : vector<64x6xi32> to vector<64x1xi32>
    %33 = tpu.iota {dimensions = array<i32: 1>} : vector<64x6xi32>
    %34 = vector.broadcast %32 : vector<64x1xi32> to vector<64x6xi32>
    %35 = arith.cmpi eq, %34, %33 : vector<64x6xi32>
    %36 = arith.extui %35 : vector<64x6xi1> to vector<64x6xi32>
    %37 = arith.sitofp %36 : vector<64x6xi32> to vector<64x6xf32>
    %cst_13 = arith.constant dense<0.000000e+00> : vector<64x128xf32>
    %38 = tpu.matmul %37, %2, %cst_13 {dimension_numbers = #tpu.dot_dimension_numbers<[1], [0], [0], [1], [0, 0, 1, 1], [], []>} : vector<64x6xf32>, vector<6x128xf32>, vector<64x128xf32> -> vector<64x128xf32>
    %39 = arith.addf %31, %38 : vector<64x128xf32>
    %40 = arith.truncf %39 : vector<64x128xf32> to vector<64x128xbf16>
    %41 = vector.extract_strided_slice %4 {offsets = [128, 0], sizes = [128, 256], strides = [1, 1]} : vector<512x256xbf16> to vector<128x256xbf16>
    %cst_14 = arith.constant dense<0.000000e+00> : vector<64x256xf32>
    %42 = tpu.matmul %40, %41, %cst_14 {dimension_numbers = #tpu.dot_dimension_numbers<[1], [0], [0], [1], [0, 0, 1, 1], [], []>} : vector<64x128xbf16>, vector<128x256xbf16>, vector<64x256xf32> -> vector<64x256xf32>
    %43 = arith.addf %24, %42 : vector<64x256xf32>
    %44 = vector.extract_strided_slice %0 {offsets = [0, 4], sizes = [64, 1], strides = [1, 1]} : vector<64x6xi32> to vector<64x1xi32>
    %45 = tpu.iota {dimensions = array<i32: 1>} : vector<64x11xi32>
    %46 = vector.broadcast %44 : vector<64x1xi32> to vector<64x11xi32>
    %47 = arith.cmpi eq, %46, %45 : vector<64x11xi32>
    %48 = arith.extui %47 : vector<64x11xi1> to vector<64x11xi32>
    %49 = arith.sitofp %48 : vector<64x11xi32> to vector<64x11xf32>
    %cst_15 = arith.constant dense<0.000000e+00> : vector<64x128xf32>
    %50 = tpu.matmul %49, %3, %cst_15 {dimension_numbers = #tpu.dot_dimension_numbers<[1], [0], [0], [1], [0, 0, 1, 1], [], []>} : vector<64x11xf32>, vector<11x128xf32>, vector<64x128xf32> -> vector<64x128xf32>
    %51 = arith.truncf %50 : vector<64x128xf32> to vector<64x128xbf16>
    %52 = vector.extract_strided_slice %4 {offsets = [256, 0], sizes = [128, 256], strides = [1, 1]} : vector<512x256xbf16> to vector<128x256xbf16>
    %cst_16 = arith.constant dense<0.000000e+00> : vector<64x256xf32>
    %53 = tpu.matmul %51, %52, %cst_16 {dimension_numbers = #tpu.dot_dimension_numbers<[1], [0], [0], [1], [0, 0, 1, 1], [], []>} : vector<64x128xbf16>, vector<128x256xbf16>, vector<64x256xf32> -> vector<64x256xf32>
    %54 = arith.addf %43, %53 : vector<64x256xf32>
    %55 = vector.extract_strided_slice %0 {offsets = [0, 5], sizes = [64, 1], strides = [1, 1]} : vector<64x6xi32> to vector<64x1xi32>
    %56 = tpu.iota {dimensions = array<i32: 1>} : vector<64x11xi32>
    %57 = vector.broadcast %55 : vector<64x1xi32> to vector<64x11xi32>
    %58 = arith.cmpi eq, %57, %56 : vector<64x11xi32>
    %59 = arith.extui %58 : vector<64x11xi1> to vector<64x11xi32>
    %60 = arith.sitofp %59 : vector<64x11xi32> to vector<64x11xf32>
    %cst_17 = arith.constant dense<0.000000e+00> : vector<64x128xf32>
    %61 = tpu.matmul %60, %3, %cst_17 {dimension_numbers = #tpu.dot_dimension_numbers<[1], [0], [0], [1], [0, 0, 1, 1], [], []>} : vector<64x11xf32>, vector<11x128xf32>, vector<64x128xf32> -> vector<64x128xf32>
    %62 = arith.truncf %61 : vector<64x128xf32> to vector<64x128xbf16>
    %63 = vector.extract_strided_slice %4 {offsets = [384, 0], sizes = [128, 256], strides = [1, 1]} : vector<512x256xbf16> to vector<128x256xbf16>
    %cst_18 = arith.constant dense<0.000000e+00> : vector<64x256xf32>
    %64 = tpu.matmul %62, %63, %cst_18 {dimension_numbers = #tpu.dot_dimension_numbers<[1], [0], [0], [1], [0, 0, 1, 1], [], []>} : vector<64x128xbf16>, vector<128x256xbf16>, vector<64x256xf32> -> vector<64x256xf32>
    %65 = arith.addf %54, %64 : vector<64x256xf32>
    %c0_19 = arith.constant 0 : index
    %c0_20 = arith.constant 0 : index
    %66 = vector.load %arg7[%c0_19, %c0_20] : memref<1x256xf32, #tpu.memory_space<vmem>>, vector<1x256xf32>
    %67 = vector.broadcast %66 : vector<1x256xf32> to vector<64x256xf32>
    %68 = arith.addf %65, %67 : vector<64x256xf32>
    %cst_21 = arith.constant 0.000000e+00 : f32
    %69 = vector.broadcast %cst_21 : f32 to vector<64x256xf32>
    %70 = arith.maximumf %68, %69 : vector<64x256xf32>
    %71 = arith.truncf %70 : vector<64x256xf32> to vector<64x256xbf16>
    %c0_22 = arith.constant 0 : index
    %c0_23 = arith.constant 0 : index
    %72 = vector.load %arg8[%c0_22, %c0_23] : memref<256x128xbf16, #tpu.memory_space<vmem>>, vector<256x128xbf16>
    %cst_24 = arith.constant dense<0.000000e+00> : vector<64x128xf32>
    %73 = tpu.matmul %71, %72, %cst_24 {dimension_numbers = #tpu.dot_dimension_numbers<[1], [0], [0], [1], [0, 0, 1, 1], [], []>} : vector<64x256xbf16>, vector<256x128xbf16>, vector<64x128xf32> -> vector<64x128xf32>
    %c0_25 = arith.constant 0 : index
    %c0_26 = arith.constant 0 : index
    %74 = vector.load %arg9[%c0_25, %c0_26] : memref<1x128xf32, #tpu.memory_space<vmem>>, vector<1x128xf32>
    %75 = vector.broadcast %74 : vector<1x128xf32> to vector<64x128xf32>
    %76 = arith.addf %73, %75 : vector<64x128xf32>
    %c0_27 = arith.constant 0 : index
    %c0_28 = arith.constant 0 : index
    %77 = vector.load %arg2[%c0_27, %c0_28] : memref<128x3xi32, #tpu.memory_space<vmem>>, vector<128x3xi32>
    %78 = vector.extract_strided_slice %77 {offsets = [0, 0], sizes = [128, 1], strides = [1, 1]} : vector<128x3xi32> to vector<128x1xi32>
    %79 = tpu.iota {dimensions = array<i32: 1>} : vector<128x64xi32>
    %80 = vector.broadcast %78 : vector<128x1xi32> to vector<128x64xi32>
    %81 = arith.cmpi eq, %80, %79 : vector<128x64xi32>
    %82 = arith.extui %81 : vector<128x64xi1> to vector<128x64xi32>
    %83 = arith.sitofp %82 : vector<128x64xi32> to vector<128x64xf32>
    %cst_29 = arith.constant dense<0.000000e+00> : vector<128x128xf32>
    %84 = tpu.matmul %83, %76, %cst_29 {dimension_numbers = #tpu.dot_dimension_numbers<[1], [0], [0], [1], [0, 0, 1, 1], [], []>} : vector<128x64xf32>, vector<64x128xf32>, vector<128x128xf32> -> vector<128x128xf32>
    %85 = vector.extract_strided_slice %77 {offsets = [0, 1], sizes = [128, 1], strides = [1, 1]} : vector<128x3xi32> to vector<128x1xi32>
    %86 = tpu.iota {dimensions = array<i32: 1>} : vector<128x11xi32>
    %87 = vector.broadcast %85 : vector<128x1xi32> to vector<128x11xi32>
    %88 = arith.cmpi eq, %87, %86 : vector<128x11xi32>
    %89 = arith.extui %88 : vector<128x11xi1> to vector<128x11xi32>
    %90 = arith.sitofp %89 : vector<128x11xi32> to vector<128x11xf32>
    %cst_30 = arith.constant dense<0.000000e+00> : vector<128x128xf32>
    %91 = tpu.matmul %90, %3, %cst_30 {dimension_numbers = #tpu.dot_dimension_numbers<[1], [0], [0], [1], [0, 0, 1, 1], [], []>} : vector<128x11xf32>, vector<11x128xf32>, vector<128x128xf32> -> vector<128x128xf32>
    %92 = vector.extract_strided_slice %77 {offsets = [0, 2], sizes = [128, 1], strides = [1, 1]} : vector<128x3xi32> to vector<128x1xi32>
    %93 = tpu.iota {dimensions = array<i32: 1>} : vector<128x64xi32>
    %94 = vector.broadcast %92 : vector<128x1xi32> to vector<128x64xi32>
    %95 = arith.cmpi eq, %94, %93 : vector<128x64xi32>
    %96 = arith.extui %95 : vector<128x64xi1> to vector<128x64xi32>
    %97 = arith.sitofp %96 : vector<128x64xi32> to vector<128x64xf32>
    %cst_31 = arith.constant dense<0.000000e+00> : vector<128x128xf32>
    %98 = tpu.matmul %97, %76, %cst_31 {dimension_numbers = #tpu.dot_dimension_numbers<[1], [0], [0], [1], [0, 0, 1, 1], [], []>} : vector<128x64xf32>, vector<64x128xf32>, vector<128x128xf32> -> vector<128x128xf32>
    %99 = arith.addf %84, %91 : vector<128x128xf32>
    %100 = arith.subf %99, %98 : vector<128x128xf32>
    %101 = math.absf %100 : vector<128x128xf32>
    %cst_32 = arith.constant 1.000000e+00 : f32
    %102 = vector.broadcast %cst_32 : f32 to vector<8x128xf32>
    %cst_33 = arith.constant dense<0.000000e+00> : vector<8x128xf32>
    %103 = tpu.matmul %102, %101, %cst_33 {dimension_numbers = #tpu.dot_dimension_numbers<[1], [1], [0], [0], [0, 0, 1, 0], [], []>} : vector<8x128xf32>, vector<128x128xf32>, vector<8x128xf32> -> vector<8x128xf32>
    %cst_34 = arith.constant 1.000000e+01 : f32
    %104 = vector.broadcast %cst_34 : f32 to vector<8x128xf32>
    %105 = arith.subf %104, %103 : vector<8x128xf32>
    %c0_35 = arith.constant 0 : index
    %c0_36 = arith.constant 0 : index
    %106 = vector.load %arg10[%c0_35, %c0_36] : memref<8x128xf32, #tpu.memory_space<vmem>>, vector<8x128xf32>
    tpu.vector_store %arg10[%c0_35, %c0_36], %105 {strides = array<i32>} : memref<8x128xf32, #tpu.memory_space<vmem>>, vector<8x128xf32>,
    return
  }
  func.func @transform_0(%arg0: i32) -> (i32, i32) {
    %c0_i32 = arith.constant 0 : i32
    %c0_i32_0 = arith.constant 0 : i32
    %c0_i32_1 = arith.constant 0 : i32
    return %c0_i32, %c0_i32_0 : i32, i32
  }
  func.func @transform_1(%arg0: i32) -> (i32, i32) {
    %c0_i32 = arith.constant 0 : i32
    %c0_i32_0 = arith.constant 0 : i32
    return %arg0, %c0_i32 : i32, i32
  }
  func.func @transform_2(%arg0: i32) -> (i32, i32) {
    %c0_i32 = arith.constant 0 : i32
    %c0_i32_0 = arith.constant 0 : i32
    %c0_i32_1 = arith.constant 0 : i32
    return %c0_i32, %c0_i32_0 : i32, i32
  }
  func.func @transform_3(%arg0: i32) -> (i32, i32) {
    %c0_i32 = arith.constant 0 : i32
    %c0_i32_0 = arith.constant 0 : i32
    %c0_i32_1 = arith.constant 0 : i32
    return %c0_i32, %c0_i32_0 : i32, i32
  }
  func.func @transform_4(%arg0: i32) -> (i32, i32) {
    %c0_i32 = arith.constant 0 : i32
    %c0_i32_0 = arith.constant 0 : i32
    %c0_i32_1 = arith.constant 0 : i32
    return %c0_i32, %c0_i32_0 : i32, i32
  }
  func.func @transform_5(%arg0: i32) -> (i32, i32) {
    %c0_i32 = arith.constant 0 : i32
    %c0_i32_0 = arith.constant 0 : i32
    %c0_i32_1 = arith.constant 0 : i32
    return %c0_i32, %c0_i32_0 : i32, i32
  }
  func.func @transform_6(%arg0: i32) -> (i32, i32) {
    %c0_i32 = arith.constant 0 : i32
    %c0_i32_0 = arith.constant 0 : i32
    %c0_i32_1 = arith.constant 0 : i32
    return %c0_i32, %c0_i32_0 : i32, i32
  }
  func.func @transform_7(%arg0: i32) -> (i32, i32) {
    %c0_i32 = arith.constant 0 : i32
    %c0_i32_0 = arith.constant 0 : i32
    %c0_i32_1 = arith.constant 0 : i32
    return %c0_i32, %c0_i32_0 : i32, i32
  }
  func.func @transform_8(%arg0: i32) -> (i32, i32) {
    %c0_i32 = arith.constant 0 : i32
    %c0_i32_0 = arith.constant 0 : i32
    %c0_i32_1 = arith.constant 0 : i32
    return %c0_i32, %c0_i32_0 : i32, i32
  }
  func.func @transform_9(%arg0: i32) -> (i32, i32) {
    %c0_i32 = arith.constant 0 : i32
    %c0_i32_0 = arith.constant 0 : i32
    return %c0_i32, %arg0 : i32, i32
  }
}

</mosaic_0001>

<llo_original>
// kernel: kge_forward_single.1
$region0: #{kge_forward_single.1}
  #allocation0 [shape = 'u32[]', space=smem, size = 0x4, offset = 0x4, fixed_abs, tag = 'smem constant byte address 0x4 - core index']
  #allocation1 [shape = 'u32[144,128]{1,0:T(1,128)}', space=vmem, size = 0x12000, scoped, tag = 'internal scratch']
  %s0 = inlined_call_operand.vmem [shape: s32[64,6], index: 0, kind: input, shape index: {}]
  %s1 = inlined_call_operand.vmem [shape: s32[256,3], index: 1, kind: input, shape index: {}]
  %s2 = inlined_call_operand.vmem [shape: f32[33,128], index: 2, kind: input, shape index: {}]
  %s3 = inlined_call_operand.vmem [shape: f32[6,128], index: 3, kind: input, shape index: {}]
  %s4 = inlined_call_operand.vmem [shape: f32[11,128], index: 4, kind: input, shape index: {}]
  %s5 = inlined_call_operand.vmem [shape: bf16[512,256], index: 5, kind: input, shape index: {}]
  %s6 = inlined_call_operand.vmem [shape: f32[1,256], index: 6, kind: input, shape index: {}]
  %s7 = inlined_call_operand.vmem [shape: bf16[256,128], index: 7, kind: input, shape index: {}]
  %s8 = inlined_call_operand.vmem [shape: f32[1,128], index: 8, kind: input, shape index: {}]
  %s9 = inlined_call_operand.vmem [shape: f32[8,256], index: 9, kind: output, shape index: {}]
  %s10 = sld [smem:[#allocation0]]
  $region69: #{kge_forward_single.1} parent=0
    _
  %s12 = ssub.s32 1, %s10
  %s13 = scalar_select 0, %s12, %s10
  loop: start=0, step=1, limit=4
  $region2: #{kge_forward_single.1} parent=0 // loop_pre_header
    _
  $region3: #{kge_forward_single.1} parent=0 // loop_header
    %s15 = sphi 0, %s19
    %p16 = scmp.ge.s32.totalorder %s15, 4
    %s23 = sphi 0, %s23
    %s25 = sphi 0, %s23
    %s26 = sphi 0, %s25
    %s40 = sphi 0, %s26
    %s46 = sphi 0, %s48
    %s49 = sphi 0, %s46
    %s50 = sphi 0, %s49
    %s66 = sphi 0, %s50
    %s70 = sphi 0, %s70
    %s72 = sphi 0, %s70
    %s73 = sphi 0, %s72
    %s87 = sphi 0, %s73
    %s91 = sphi 0, %s91
    %s93 = sphi 0, %s91
    %s94 = sphi 0, %s93
    %s108 = sphi 0, %s94
    %s112 = sphi 0, %s112
    %s114 = sphi 0, %s112
    %s115 = sphi 0, %s114
    %s129 = sphi 0, %s115
    %s133 = sphi 0, %s133
    %s135 = sphi 0, %s133
    %s136 = sphi 0, %s135
    %s150 = sphi 0, %s136
    %s154 = sphi 0, %s154
    %s156 = sphi 0, %s154
    %s157 = sphi 0, %s156
    %s171 = sphi 0, %s157
    %s175 = sphi 0, %s175
    %s177 = sphi 0, %s175
    %s178 = sphi 0, %s177
    %s192 = sphi 0, %s178
    %s196 = sphi 0, %s196
    %s198 = sphi 0, %s196
    %s199 = sphi 0, %s198
    %s213 = sphi 0, %s199
    %s219 = sphi 0, %s221
    %s222 = sphi 0, %s219
    %s223 = sphi 0, %s222
    %s239 = sphi 0, %s223
  $region4: #{kge_forward_single.1} parent=0 // loop_header_branch
    %18 = sbr.rel (%p16) target = $region8
  $region5: #{kge_forward_single.1} parent=0 // loop_body
    %s20 = ssub.s32 %s15, 1
    %s21 = ssub.s32 %s15, 2
    %s22 = sadd.s32 %s15, 1
    %s24 = sadd.s32 %s23, 1
    %p27 = scmp.eq.s32.totalorder %s15, 1
    %p28 = scmp.ne.s32.totalorder %s23, %s25
    %p29 = scmp.eq.s32.totalorder %s15, 0
    %p30 = por %p28, %p29
    %p31 = scmp.ne.s32.totalorder %s23, %s25
    %p32 = scmp.eq.s32.totalorder %s20, 1
    %p33 = por %p31, %p32
    %p34 = scmp.ne.s32.totalorder %s25, %s26
    %p35 = scmp.eq.s32.totalorder %s20, 0
    %p36 = por %p34, %p35
    %p37 = scmp.ne.s32.totalorder %s25, %s26
    %p38 = scmp.eq.s32.totalorder %s21, 1
    %p39 = por %p37, %p38
    %p41 = scmp.ne.s32.totalorder %s26, %s40
    %p42 = scmp.eq.s32.totalorder %s21, 0
    %p43 = por %p41, %p42
    %s44 = ssub.s32 %s15, %s22
    %p45 = scmp.eq.s32.totalorder %s44, 0
    %s47 = sadd.s32 %s46, 1
    %s48 = scalar_select %p45, %s46, %s47
    %p51 = pneg %p45
    %p52 = scmp.eq.s32.totalorder %s15, 1
    %p53 = por %p51, %p52
    %p54 = scmp.ne.s32.totalorder %s46, %s49
    %p55 = scmp.eq.s32.totalorder %s15, 0
    %p56 = por %p54, %p55
    %p57 = scmp.ne.s32.totalorder %s46, %s49
    %p58 = scmp.eq.s32.totalorder %s20, 1
    %p59 = por %p57, %p58
    %p60 = scmp.ne.s32.totalorder %s49, %s50
    %p61 = scmp.eq.s32.totalorder %s20, 0
    %p62 = por %p60, %p61
    %p63 = scmp.ne.s32.totalorder %s49, %s50
    %p64 = scmp.eq.s32.totalorder %s21, 1
    %p65 = por %p63, %p64
    %p67 = scmp.ne.s32.totalorder %s50, %s66
    %p68 = scmp.eq.s32.totalorder %s21, 0
    %p69 = por %p67, %p68
    %s71 = sadd.s32 %s70, 1
    %p74 = scmp.eq.s32.totalorder %s15, 1
    %p75 = scmp.ne.s32.totalorder %s70, %s72
    %p76 = scmp.eq.s32.totalorder %s15, 0
    %p77 = por %p75, %p76
    %p78 = scmp.ne.s32.totalorder %s70, %s72
    %p79 = scmp.eq.s32.totalorder %s20, 1
    %p80 = por %p78, %p79
    %p81 = scmp.ne.s32.totalorder %s72, %s73
    %p82 = scmp.eq.s32.totalorder %s20, 0
    %p83 = por %p81, %p82
    %p84 = scmp.ne.s32.totalorder %s72, %s73
    %p85 = scmp.eq.s32.totalorder %s21, 1
    %p86 = por %p84, %p85
    %p88 = scmp.ne.s32.totalorder %s73, %s87
    %p89 = scmp.eq.s32.totalorder %s21, 0
    %p90 = por %p88, %p89
    %s92 = sadd.s32 %s91, 1
    %p95 = scmp.eq.s32.totalorder %s15, 1
    %p96 = scmp.ne.s32.totalorder %s91, %s93
    %p97 = scmp.eq.s32.totalorder %s15, 0
    %p98 = por %p96, %p97
    %p99 = scmp.ne.s32.totalorder %s91, %s93
    %p100 = scmp.eq.s32.totalorder %s20, 1
    %p101 = por %p99, %p100
    %p102 = scmp.ne.s32.totalorder %s93, %s94
    %p103 = scmp.eq.s32.totalorder %s20, 0
    %p104 = por %p102, %p103
    %p105 = scmp.ne.s32.totalorder %s93, %s94
    %p106 = scmp.eq.s32.totalorder %s21, 1
    %p107 = por %p105, %p106
    %p109 = scmp.ne.s32.totalorder %s94, %s108
    %p110 = scmp.eq.s32.totalorder %s21, 0
    %p111 = por %p109, %p110
    %s113 = sadd.s32 %s112, 1
    %p116 = scmp.eq.s32.totalorder %s15, 1
    %p117 = scmp.ne.s32.totalorder %s112, %s114
    %p118 = scmp.eq.s32.totalorder %s15, 0
    %p119 = por %p117, %p118
    %p120 = scmp.ne.s32.totalorder %s112, %s114
    %p121 = scmp.eq.s32.totalorder %s20, 1
    %p122 = por %p120, %p121
    %p123 = scmp.ne.s32.totalorder %s114, %s115
    %p124 = scmp.eq.s32.totalorder %s20, 0
    %p125 = por %p123, %p124
    %p126 = scmp.ne.s32.totalorder %s114, %s115
    %p127 = scmp.eq.s32.totalorder %s21, 1
    %p128 = por %p126, %p127
    %p130 = scmp.ne.s32.totalorder %s115, %s129
    %p131 = scmp.eq.s32.totalorder %s21, 0
    %p132 = por %p130, %p131
    %s134 = sadd.s32 %s133, 1
    %p137 = scmp.eq.s32.totalorder %s15, 1
    %p138 = scmp.ne.s32.totalorder %s133, %s135
    %p139 = scmp.eq.s32.totalorder %s15, 0
    %p140 = por %p138, %p139
    %p141 = scmp.ne.s32.totalorder %s133, %s135
    %p142 = scmp.eq.s32.totalorder %s20, 1
    %p143 = por %p141, %p142
    %p144 = scmp.ne.s32.totalorder %s135, %s136
    %p145 = scmp.eq.s32.totalorder %s20, 0
    %p146 = por %p144, %p145
    %p147 = scmp.ne.s32.totalorder %s135, %s136
    %p148 = scmp.eq.s32.totalorder %s21, 1
    %p149 = por %p147, %p148
    %p151 = scmp.ne.s32.totalorder %s136, %s150
    %p152 = scmp.eq.s32.totalorder %s21, 0
    %p153 = por %p151, %p152
    %s155 = sadd.s32 %s154, 1
    %p158 = scmp.eq.s32.totalorder %s15, 1
    %p159 = scmp.ne.s32.totalorder %s154, %s156
    %p160 = scmp.eq.s32.totalorder %s15, 0
    %p161 = por %p159, %p160
    %p162 = scmp.ne.s32.totalorder %s154, %s156
    %p163 = scmp.eq.s32.totalorder %s20, 1
    %p164 = por %p162, %p163
    %p165 = scmp.ne.s32.totalorder %s156, %s157
    %p166 = scmp.eq.s32.totalorder %s20, 0
    %p167 = por %p165, %p166
    %p168 = scmp.ne.s32.totalorder %s156, %s157
    %p169 = scmp.eq.s32.totalorder %s21, 1
    %p170 = por %p168, %p169
    %p172 = scmp.ne.s32.totalorder %s157, %s171
    %p173 = scmp.eq.s32.totalorder %s21, 0
    %p174 = por %p172, %p173
    %s176 = sadd.s32 %s175, 1
    %p179 = scmp.eq.s32.totalorder %s15, 1
    %p180 = scmp.ne.s32.totalorder %s175, %s177
    %p181 = scmp.eq.s32.totalorder %s15, 0
    %p182 = por %p180, %p181
    %p183 = scmp.ne.s32.totalorder %s175, %s177
    %p184 = scmp.eq.s32.totalorder %s20, 1
    %p185 = por %p183, %p184
    %p186 = scmp.ne.s32.totalorder %s177, %s178
    %p187 = scmp.eq.s32.totalorder %s20, 0
    %p188 = por %p186, %p187
    %p189 = scmp.ne.s32.totalorder %s177, %s178
    %p190 = scmp.eq.s32.totalorder %s21, 1
    %p191 = por %p189, %p190
    %p193 = scmp.ne.s32.totalorder %s178, %s192
    %p194 = scmp.eq.s32.totalorder %s21, 0
    %p195 = por %p193, %p194
    %s197 = sadd.s32 %s196, 1
    %p200 = scmp.eq.s32.totalorder %s15, 1
    %p201 = scmp.ne.s32.totalorder %s196, %s198
    %p202 = scmp.eq.s32.totalorder %s15, 0
    %p203 = por %p201, %p202
    %p204 = scmp.ne.s32.totalorder %s196, %s198
    %p205 = scmp.eq.s32.totalorder %s20, 1
    %p206 = por %p204, %p205
    %p207 = scmp.ne.s32.totalorder %s198, %s199
    %p208 = scmp.eq.s32.totalorder %s20, 0
    %p209 = por %p207, %p208
    %p210 = scmp.ne.s32.totalorder %s198, %s199
    %p211 = scmp.eq.s32.totalorder %s21, 1
    %p212 = por %p210, %p211
    %p214 = scmp.ne.s32.totalorder %s199, %s213
    %p215 = scmp.eq.s32.totalorder %s21, 0
    %p216 = por %p214, %p215
    %s217 = ssub.s32 %s15, %s22
    %p218 = scmp.eq.s32.totalorder %s217, 0
    %s220 = sadd.s32 %s219, 1
    %s221 = scalar_select %p218, %s219, %s220
    %p224 = pneg %p218
    %p225 = scmp.eq.s32.totalorder %s15, 1
    %p226 = por %p224, %p225
    %p227 = scmp.ne.s32.totalorder %s219, %s222
    %p228 = scmp.eq.s32.totalorder %s15, 0
    %p229 = por %p227, %p228
    %p230 = scmp.ne.s32.totalorder %s219, %s222
    %p231 = scmp.eq.s32.totalorder %s20, 1
    %p232 = por %p230, %p231
    %p233 = scmp.ne.s32.totalorder %s222, %s223
    %p234 = scmp.eq.s32.totalorder %s20, 0
    %p235 = por %p233, %p234
    %p236 = scmp.ne.s32.totalorder %s222, %s223
    %p237 = scmp.eq.s32.totalorder %s21, 1
    %p238 = por %p236, %p237
    %p240 = scmp.ne.s32.totalorder %s223, %s239
    %p241 = scmp.eq.s32.totalorder %s21, 0
    %p242 = por %p240, %p241
    %p243 = scmp.le.s32.totalorder 1, %s15
    %p244 = scmp.lt.s32.totalorder %s15, 3
    %p245 = pnand %p243, %p244
    %p246 = pneg %p245
    // Predicated region
    $region9: #{kge_forward_single.1} parent=5 // pred_check
      _
    $region10: #{kge_forward_single.1} parent=5 // pred_check_branch
      %248 = sbr.rel (%p245) target = $region12
    $region11: #{kge_forward_single.1} parent=5 // pred_region
      %s249 = ssub.s32 %s15, 1
      // Predicated region
      $region13: #{kge_forward_single.1} parent=11 // pred_check
        %p250 = pneg %p36
      $region14: #{kge_forward_single.1} parent=11 // pred_check_branch
        %252 = sbr.rel (%p250) target = $region16
      $region15: #{kge_forward_single.1} parent=11 // pred_region
        _
      $region16: #{kge_forward_single.1} parent=11 // pred_fallthru
        _
      // Predicated region
      $region17: #{kge_forward_single.1} parent=11 // pred_check
        %p253 = pneg %p83
      $region18: #{kge_forward_single.1} parent=11 // pred_check_branch
        %255 = sbr.rel (%p253) target = $region20
      $region19: #{kge_forward_single.1} parent=11 // pred_region
        _
      $region20: #{kge_forward_single.1} parent=11 // pred_fallthru
        _
      // Predicated region
      $region21: #{kge_forward_single.1} parent=11 // pred_check
        %p256 = pneg %p104
      $region22: #{kge_forward_single.1} parent=11 // pred_check_branch
        %258 = sbr.rel (%p256) target = $region24
      $region23: #{kge_forward_single.1} parent=11 // pred_region
        _
      $region24: #{kge_forward_single.1} parent=11 // pred_fallthru
        _
      // Predicated region
      $region25: #{kge_forward_single.1} parent=11 // pred_check
        %p259 = pneg %p125
      $region26: #{kge_forward_single.1} parent=11 // pred_check_branch
        %261 = sbr.rel (%p259) target = $region28
      $region27: #{kge_forward_single.1} parent=11 // pred_region
        _
      $region28: #{kge_forward_single.1} parent=11 // pred_fallthru
        _
      // Predicated region
      $region29: #{kge_forward_single.1} parent=11 // pred_check
        %p262 = pneg %p146
      $region30: #{kge_forward_single.1} parent=11 // pred_check_branch
        %264 = sbr.rel (%p262) target = $region32
      $region31: #{kge_forward_single.1} parent=11 // pred_region
        _
      $region32: #{kge_forward_single.1} parent=11 // pred_fallthru
        _
      // Predicated region
      $region33: #{kge_forward_single.1} parent=11 // pred_check
        %p265 = pneg %p167
      $region34: #{kge_forward_single.1} parent=11 // pred_check_branch
        %267 = sbr.rel (%p265) target = $region36
      $region35: #{kge_forward_single.1} parent=11 // pred_region
        _
      $region36: #{kge_forward_single.1} parent=11 // pred_fallthru
        _
      // Predicated region
      $region37: #{kge_forward_single.1} parent=11 // pred_check
        %p268 = pneg %p188
      $region38: #{kge_forward_single.1} parent=11 // pred_check_branch
        %270 = sbr.rel (%p268) target = $region40
      $region39: #{kge_forward_single.1} parent=11 // pred_region
        _
      $region40: #{kge_forward_single.1} parent=11 // pred_fallthru
        _
      // Predicated region
      $region41: #{kge_forward_single.1} parent=11 // pred_check
        %p271 = pneg %p209
      $region42: #{kge_forward_single.1} parent=11 // pred_check_branch
        %273 = sbr.rel (%p271) target = $region44
      $region43: #{kge_forward_single.1} parent=11 // pred_region
        _
      $region44: #{kge_forward_single.1} parent=11 // pred_fallthru
        _
    $region12: #{kge_forward_single.1} parent=5 // pred_fallthru
      _
    %p274 = scmp.lt.s32.totalorder %s15, 2
    // Predicated region
    $region45: #{kge_forward_single.1} parent=5 // pred_check
      %p275 = pneg %p274
    $region46: #{kge_forward_single.1} parent=5 // pred_check_branch
      %277 = sbr.rel (%p275) target = $region48
    $region47: #{kge_forward_single.1} parent=5 // pred_region
      // Predicated region
      $region49: #{kge_forward_single.1} parent=47 // pred_check
        %p278 = pneg %p56
      $region50: #{kge_forward_single.1} parent=47 // pred_check_branch
        %280 = sbr.rel (%p278) target = $region52
      $region51: #{kge_forward_single.1} parent=47 // pred_region
        %s281 = smul.u32 16, %s15
        %p282 = scmp.lt.s32.totalorder %s281, 31
        %s283 = scalar_select %p282, %s281, 31
        %s284 = smul.addr %s283, 8
        %s285 = scalar_lea.vmem %s1, %s284
        %s286 = smul.u32 16, %s15
      $region52: #{kge_forward_single.1} parent=47 // pred_fallthru
        _
    $region48: #{kge_forward_single.1} parent=5 // pred_fallthru
      _
    %p287 = scmp.le.s32.totalorder 1, %s15
    %p288 = scmp.lt.s32.totalorder %s15, 3
    %p289 = pnand %p287, %p288
    %p290 = pneg %p289
    // Predicated region
    $region53: #{kge_forward_single.1} parent=5 // pred_check
      _
    $region54: #{kge_forward_single.1} parent=5 // pred_check_branch
      %292 = sbr.rel (%p289) target = $region56
    $region55: #{kge_forward_single.1} parent=5 // pred_region
      %s293 = ssub.s32 %s15, 1
      %p294 = pneg %p36
      %p295 = pneg %p33
      %s296 = smul.u32 16, %s20
      %p297 = scmp.lt.s32.totalorder %s296, 31
      %s298 = scalar_select %p297, %s296, 31
      %s299 = smul.addr %s298, 8
      %s300 = scalar_lea.vmem %s1, %s299
      %p301 = pneg %p62
      %p302 = pneg %p59
      %p303 = pneg %p83
      %p304 = pneg %p80
      %p305 = pneg %p104
      %p306 = pneg %p101
      %p307 = pneg %p125
      %p308 = pneg %p122
      %p309 = pneg %p146
      %p310 = pneg %p143
      %p311 = pneg %p167
      %p312 = pneg %p164
      %p313 = pneg %p188
      %p314 = pneg %p185
      %p315 = pneg %p209
      %p316 = pneg %p206
      %p317 = pneg %p235
      %p318 = pneg %p232
      %p319 = scmp.lt.s32.totalorder %s20, 1
      %s320 = scalar_select %p319, %s20, 1
      %s321 = smul.addr %s320, 8
      %s322 = scalar_lea.vmem %s9, %s321
      %s323 = smul.u32 16, %s20
      %p324 = scmp.lt.s32.totalorder %s323, 31
      %s325 = scalar_select %p324, %s323, 31
      %s326 = smul.addr %s325, 8
      %s327 = scalar_lea.vmem %s1, %s326
      %s328 = smul.u32 16, %s20
      %p329 = scmp.lt.s32.totalorder %s20, 1
      %s330 = scalar_select %p329, %s20, 1
      %s331 = smul.addr %s330, 8
      %s332 = scalar_lea.vmem %s9, %s331
      %v334 = vld [vmem:[%s0] sm:$0xff]
      %v335 = vld [vmem:[%s0 + $0x8] sm:$0xff]
      %v336 = vld [vmem:[%s0 + $0x10] sm:$0xff]
      %v337 = vld [vmem:[%s0 + $0x18] sm:$0xff]
      %v338 = vld [vmem:[%s0 + $0x20] sm:$0xff]
      %v339 = vld [vmem:[%s0 + $0x28] sm:$0xff]
      %v340 = vld [vmem:[%s0 + $0x30] sm:$0xff]
      %v341 = vld [vmem:[%s0 + $0x38] sm:$0xff]
      %v342 = vld [vmem:[%s2] sm:$0xff]
      %v343 = vld [vmem:[%s2 + $0x8] sm:$0xff]
      %v344 = vld [vmem:[%s2 + $0x10] sm:$0xff]
      %v345 = vld [vmem:[%s2 + $0x18] sm:$0xff]
      %v346 = vld [vmem:[%s2 + $0x20] sm:$0x1]
      %v347 = vld [vmem:[%s3] sm:$0x3f]
      %v348 = vld [vmem:[%s4] sm:$0xff]
      %v349 = vld [vmem:[%s4 + $0x8] sm:$0x7]
      %v350 = vld [vmem:[%s5] sm:$0xff]
      %v351 = vld [vmem:[%s5 + $0x8] sm:$0xff]
      %v352 = vld [vmem:[%s5 + $0x10] sm:$0xff]
      %v353 = vld [vmem:[%s5 + $0x18] sm:$0xff]
      %v354 = vld [vmem:[%s5 + $0x20] sm:$0xff]
      %v355 = vld [vmem:[%s5 + $0x28] sm:$0xff]
      %v356 = vld [vmem:[%s5 + $0x30] sm:$0xff]
      %v357 = vld [vmem:[%s5 + $0x38] sm:$0xff]
      %v358 = vld [vmem:[%s5 + $0x40] sm:$0xff]
      %v359 = vld [vmem:[%s5 + $0x48] sm:$0xff]
      %v360 = vld [vmem:[%s5 + $0x50] sm:$0xff]
      %v361 = vld [vmem:[%s5 + $0x58] sm:$0xff]
      %v362 = vld [vmem:[%s5 + $0x60] sm:$0xff]
      %v363 = vld [vmem:[%s5 + $0x68] sm:$0xff]
      %v364 = vld [vmem:[%s5 + $0x70] sm:$0xff]
      %v365 = vld [vmem:[%s5 + $0x78] sm:$0xff]
      %v366 = vld [vmem:[%s5 + $0x80] sm:$0xff]
      %v367 = vld [vmem:[%s5 + $0x88] sm:$0xff]
      %v368 = vld [vmem:[%s5 + $0x90] sm:$0xff]
      %v369 = vld [vmem:[%s5 + $0x98] sm:$0xff]
      %v370 = vld [vmem:[%s5 + $0xa0] sm:$0xff]
      %v371 = vld [vmem:[%s5 + $0xa8] sm:$0xff]
      %v372 = vld [vmem:[%s5 + $0xb0] sm:$0xff]
      %v373 = vld [vmem:[%s5 + $0xb8] sm:$0xff]
      %v374 = vld [vmem:[%s5 + $0xc0] sm:$0xff]
      %v375 = vld [vmem:[%s5 + $0xc8] sm:$0xff]
      %v376 = vld [vmem:[%s5 + $0xd0] sm:$0xff]
      %v377 = vld [vmem:[%s5 + $0xd8] sm:$0xff]
      %v378 = vld [vmem:[%s5 + $0xe0] sm:$0xff]
      %v379 = vld [vmem:[%s5 + $0xe8] sm:$0xff]
      %v380 = vld [vmem:[%s5 + $0xf0] sm:$0xff]
      %v381 = vld [vmem:[%s5 + $0xf8] sm:$0xff]
      %v382 = vld [vmem:[%s5 + $0x100] sm:$0xff]
      %v383 = vld [vmem:[%s5 + $0x108] sm:$0xff]
      %v384 = vld [vmem:[%s5 + $0x110] sm:$0xff]
      %v385 = vld [vmem:[%s5 + $0x118] sm:$0xff]
      %v386 = vld [vmem:[%s5 + $0x120] sm:$0xff]
      %v387 = vld [vmem:[%s5 + $0x128] sm:$0xff]
      %v388 = vld [vmem:[%s5 + $0x130] sm:$0xff]
      %v389 = vld [vmem:[%s5 + $0x138] sm:$0xff]
      %v390 = vld [vmem:[%s5 + $0x140] sm:$0xff]
      %v391 = vld [vmem:[%s5 + $0x148] sm:$0xff]
      %v392 = vld [vmem:[%s5 + $0x150] sm:$0xff]
      %v393 = vld [vmem:[%s5 + $0x158] sm:$0xff]
      %v394 = vld [vmem:[%s5 + $0x160] sm:$0xff]
      %v395 = vld [vmem:[%s5 + $0x168] sm:$0xff]
      %v396 = vld [vmem:[%s5 + $0x170] sm:$0xff]
      %v397 = vld [vmem:[%s5 + $0x178] sm:$0xff]
      %v398 = vld [vmem:[%s5 + $0x180] sm:$0xff]
      %v399 = vld [vmem:[%s5 + $0x188] sm:$0xff]
      %v400 = vld [vmem:[%s5 + $0x190] sm:$0xff]
      %v401 = vld [vmem:[%s5 + $0x198] sm:$0xff]
      %v402 = vld [vmem:[%s5 + $0x1a0] sm:$0xff]
      %v403 = vld [vmem:[%s5 + $0x1a8] sm:$0xff]
      %v404 = vld [vmem:[%s5 + $0x1b0] sm:$0xff]
      %v405 = vld [vmem:[%s5 + $0x1b8] sm:$0xff]
      %v406 = vld [vmem:[%s5 + $0x1c0] sm:$0xff]
      %v407 = vld [vmem:[%s5 + $0x1c8] sm:$0xff]
      %v408 = vld [vmem:[%s5 + $0x1d0] sm:$0xff]
      %v409 = vld [vmem:[%s5 + $0x1d8] sm:$0xff]
      %v410 = vld [vmem:[%s5 + $0x1e0] sm:$0xff]
      %v411 = vld [vmem:[%s5 + $0x1e8] sm:$0xff]
      %v412 = vld [vmem:[%s5 + $0x1f0] sm:$0xff]
      %v413 = vld [vmem:[%s5 + $0x1f8] sm:$0xff]
      %v414 = vlaneseq
      %v415 = vand.u32 %v414, 127
      %416 = vset.pattern.permute.xlu0 0
      %417 = vperm.xlu0 %416, %v334
      %v418 = vpop.permute.xlu0 %417
      %419 = vset.pattern.permute.xlu0 0
      %420 = vperm.xlu0 %419, %v335
      %v421 = vpop.permute.xlu0 %420
      %422 = vset.pattern.permute.xlu0 0
      %423 = vperm.xlu0 %422, %v336
      %v424 = vpop.permute.xlu0 %423
      %425 = vset.pattern.permute.xlu0 0
      %426 = vperm.xlu0 %425, %v337
      %v427 = vpop.permute.xlu0 %426
      %428 = vset.pattern.permute.xlu0 0
      %429 = vperm.xlu0 %428, %v338
      %v430 = vpop.permute.xlu0 %429
      %431 = vset.pattern.permute.xlu0 0
      %432 = vperm.xlu0 %431, %v339
      %v433 = vpop.permute.xlu0 %432
      %434 = vset.pattern.permute.xlu0 0
      %435 = vperm.xlu0 %434, %v340
      %v436 = vpop.permute.xlu0 %435
      %437 = vset.pattern.permute.xlu0 0
      %438 = vperm.xlu0 %437, %v341
      %v439 = vpop.permute.xlu0 %438
      %vm440 = vcmp.eq.s32.totalorder %v418, %v415
      %vm441 = vcmp.eq.s32.totalorder %v421, %v415
      %vm442 = vcmp.eq.s32.totalorder %v424, %v415
      %vm443 = vcmp.eq.s32.totalorder %v427, %v415
      %vm444 = vcmp.eq.s32.totalorder %v430, %v415
      %vm445 = vcmp.eq.s32.totalorder %v433, %v415
      %vm446 = vcmp.eq.s32.totalorder %v436, %v415
      %vm447 = vcmp.eq.s32.totalorder %v439, %v415
      %v448 = vsel %vm440, 1, 0
      %v449 = vsel %vm441, 1, 0
      %v450 = vsel %vm442, 1, 0
      %v451 = vsel %vm443, 1, 0
      %v452 = vsel %vm444, 1, 0
      %v453 = vsel %vm445, 1, 0
      %v454 = vsel %vm446, 1, 0
      %v455 = vsel %vm447, 1, 0
      %v456 = vcvt.s32.f32 %v448
      %v457 = vcvt.s32.f32 %v449
      %v458 = vcvt.s32.f32 %v450
      %v459 = vcvt.s32.f32 %v451
      %v460 = vcvt.s32.f32 %v452
      %v461 = vcvt.s32.f32 %v453
      %v462 = vcvt.s32.f32 %v454
      %v463 = vcvt.s32.f32 %v455
      %464 = vset.pattern.permute.xlu0 2
      %465 = vperm.xlu0 %464, %v334
      %v466 = vpop.permute.xlu0 %465
      %467 = vset.pattern.permute.xlu0 2
      %468 = vperm.xlu0 %467, %v335
      %v469 = vpop.permute.xlu0 %468
      %470 = vset.pattern.permute.xlu0 2
      %471 = vperm.xlu0 %470, %v336
      %v472 = vpop.permute.xlu0 %471
      %473 = vset.pattern.permute.xlu0 2
      %474 = vperm.xlu0 %473, %v337
      %v475 = vpop.permute.xlu0 %474
      %476 = vset.pattern.permute.xlu0 2
      %477 = vperm.xlu0 %476, %v338
      %v478 = vpop.permute.xlu0 %477
      %479 = vset.pattern.permute.xlu0 2
      %480 = vperm.xlu0 %479, %v339
      %v481 = vpop.permute.xlu0 %480
      %482 = vset.pattern.permute.xlu0 2
      %483 = vperm.xlu0 %482, %v340
      %v484 = vpop.permute.xlu0 %483
      %485 = vset.pattern.permute.xlu0 2
      %486 = vperm.xlu0 %485, %v341
      %v487 = vpop.permute.xlu0 %486
      %vm488 = vcmp.eq.s32.totalorder %v466, %v415
      %vm489 = vcmp.eq.s32.totalorder %v469, %v415
      %vm490 = vcmp.eq.s32.totalorder %v472, %v415
      %vm491 = vcmp.eq.s32.totalorder %v475, %v415
      %vm492 = vcmp.eq.s32.totalorder %v478, %v415
      %vm493 = vcmp.eq.s32.totalorder %v481, %v415
      %vm494 = vcmp.eq.s32.totalorder %v484, %v415
      %vm495 = vcmp.eq.s32.totalorder %v487, %v415
      %v496 = vsel %vm488, 1, 0
      %v497 = vsel %vm489, 1, 0
      %v498 = vsel %vm490, 1, 0
      %v499 = vsel %vm491, 1, 0
      %v500 = vsel %vm492, 1, 0
      %v501 = vsel %vm493, 1, 0
      %v502 = vsel %vm494, 1, 0
      %v503 = vsel %vm495, 1, 0
      %v504 = vcvt.s32.f32 %v496
      %v505 = vcvt.s32.f32 %v497
      %v506 = vcvt.s32.f32 %v498
      %v507 = vcvt.s32.f32 %v499
      %v508 = vcvt.s32.f32 %v500
      %v509 = vcvt.s32.f32 %v501
      %v510 = vcvt.s32.f32 %v502
      %v511 = vcvt.s32.f32 %v503
      %vm512 = vcmask 48128
      %v514 = vsel %vm512, %v504, 0
      %v517 = vsel %vm512, %v505, 0
      %v520 = vsel %vm512, %v506, 0
      %v523 = vsel %vm512, %v507, 0
      %v526 = vsel %vm512, %v508, 0
      %v529 = vsel %vm512, %v509, 0
      %v532 = vsel %vm512, %v510, 0
      %v535 = vsel %vm512, %v511, 0
      %vm537 = vcmask 1045504
      %v539 = vsel %vm537, %v347, 0
      %541 = vmatprep.subr.mxu0 0.0
      %542 = vmatpush1.msra.mxu0 %v539
      %543 = vmatprep.subr.mxu0 0.0
      %544 = vmatpush1.msra.mxu0 0.0
      %545 = vmatprep.subr.mxu0 0.0
      %546 = vmatpush1.msra.mxu0 0.0
      %547 = vmatprep.subr.mxu0 0.0
      %548 = vmatpush1.msra.mxu0 0.0
      %549 = vmatprep.subr.mxu0 0.0
      %550 = vmatpush1.msra.mxu0 0.0
      %551 = vmatprep.subr.mxu0 0.0
      %552 = vmatpush1.msra.mxu0 0.0
      %553 = vmatprep.subr.mxu0 0.0
      %554 = vmatpush1.msra.mxu0 0.0
      %555 = vmatprep.subr.mxu0 0.0
      %556 = vmatpush1.msra.mxu0 0.0
      %557 = vmatprep.subr.mxu0 0.0
      %558 = vmatpush1.msra.mxu0 0.0
      %559 = vmatprep.subr.mxu0 0.0
      %560 = vmatpush1.msra.mxu0 0.0
      %561 = vmatprep.subr.mxu0 0.0
      %562 = vmatpush1.msra.mxu0 0.0
      %563 = vmatprep.subr.mxu0 0.0
      %564 = vmatpush1.msra.mxu0 0.0
      %565 = vmatprep.subr.mxu0 0.0
      %566 = vmatpush1.msra.mxu0 0.0
      %567 = vmatprep.subr.mxu0 0.0
      %568 = vmatpush1.msra.mxu0 0.0
      %569 = vmatprep.subr.mxu0 0.0
      %570 = vmatpush1.msra.mxu0 0.0
      %571 = vmatprep.subr.mxu0 0.0
      %572 = vmatpush1.msra.mxu0 0.0
      %573 = vmatprep.subr.mxu0 0.0
      %574 = vmatpush1.msra.mxu0 0.0
      %575 = vmatprep.subr.mxu0 0.0
      %576 = vmatpush1.msra.mxu0 0.0
      %577 = vmatprep.subr.mxu0 0.0
      %578 = vmatpush1.msra.mxu0 0.0
      %579 = vmatprep.subr.mxu0 0.0
      %580 = vmatpush1.msra.mxu0 0.0
      %581 = vmatprep.subr.mxu0 0.0
      %582 = vmatpush1.msra.mxu0 0.0
      %583 = vmatprep.subr.mxu0 0.0
      %584 = vmatpush1.msra.mxu0 0.0
      %585 = vmatprep.subr.mxu0 0.0
      %586 = vmatpush1.msra.mxu0 0.0
      %587 = vmatprep.subr.mxu0 0.0
      %588 = vmatpush1.msra.mxu0 0.0
      %589 = vmatprep.subr.mxu0 0.0
      %590 = vmatpush1.msra.mxu0 0.0
      %591 = vmatprep.subr.mxu0 0.0
      %592 = vmatpush1.msra.mxu0 0.0
      %593 = vmatprep.subr.mxu0 0.0
      %594 = vmatpush1.msra.mxu0 0.0
      %595 = vmatprep.subr.mxu0 0.0
      %596 = vmatpush1.msra.mxu0 0.0
      %597 = vmatprep.subr.mxu0 0.0
      %598 = vmatpush1.msra.mxu0 0.0
      %599 = vmatprep.subr.mxu0 0.0
      %600 = vmatpush1.msra.mxu0 0.0
      %601 = vmatprep.subr.mxu0 0.0
      %602 = vmatpush1.msra.mxu0 0.0
      %603 = vmatprep.subr.mxu0 0.0
      %604 = vmatpush1.msra.mxu0 0.0
      %605 = vmatprep.mubr.f32.mxu0 0.0
      %606 = vmatmul.mubr.f32.gmra.mrb[0].mxu0 %v514
      %v607 = vpop.f32.mrb[0].mxu0
      %v608 = vadd.f32 0.0, %v607
      %v609 = vpop.f32.mrb[0].mxu0
      %610 = vmatprep.mubr.f32.mxu0 0.0
      %611 = vmatmul.mubr.f32.gmra.mrb[0].mxu0 %v517
      %v612 = vpop.f32.mrb[0].mxu0
      %v613 = vadd.f32 0.0, %v612
      %v614 = vpop.f32.mrb[0].mxu0
      %615 = vmatprep.mubr.f32.mxu0 0.0
      %616 = vmatmul.mubr.f32.gmra.mrb[0].mxu0 %v520
      %v617 = vpop.f32.mrb[0].mxu0
      %v618 = vadd.f32 0.0, %v617
      %v619 = vpop.f32.mrb[0].mxu0
      %620 = vmatprep.mubr.f32.mxu0 0.0
      %621 = vmatmul.mubr.f32.gmra.mrb[0].mxu0 %v523
      %v622 = vpop.f32.mrb[0].mxu0
      %v623 = vadd.f32 0.0, %v622
      %v624 = vpop.f32.mrb[0].mxu0
      %625 = vmatprep.mubr.f32.mxu0 0.0
      %626 = vmatmul.mubr.f32.gmra.mrb[0].mxu0 %v526
      %v627 = vpop.f32.mrb[0].mxu0
      %v628 = vadd.f32 0.0, %v627
      %v629 = vpop.f32.mrb[0].mxu0
      %630 = vmatprep.mubr.f32.mxu0 0.0
      %631 = vmatmul.mubr.f32.gmra.mrb[0].mxu0 %v529
      %v632 = vpop.f32.mrb[0].mxu0
      %v633 = vadd.f32 0.0, %v632
      %v634 = vpop.f32.mrb[0].mxu0
      %635 = vmatprep.mubr.f32.mxu0 0.0
      %636 = vmatmul.mubr.f32.gmra.mrb[0].mxu0 %v532
      %v637 = vpop.f32.mrb[0].mxu0
      %v638 = vadd.f32 0.0, %v637
      %v639 = vpop.f32.mrb[0].mxu0
      %640 = vmatprep.mubr.f32.mxu0 0.0
      %641 = vmatmul.mubr.f32.gmra.mrb[0].mxu0 %v535
      %v642 = vpop.f32.mrb[0].mxu0
      %v643 = vadd.f32 0.0, %v642
      %v644 = vpop.f32.mrb[0].mxu0
      %645 = vdwg.mxu0
      %vm646 = vcmask 269312
      %v648 = vsel %vm646, %v456, 0
      %v651 = vsel %vm646, %v457, 0
      %v654 = vsel %vm646, %v458, 0
      %v657 = vsel %vm646, %v459, 0
      %v660 = vsel %vm646, %v460, 0
      %v663 = vsel %vm646, %v461, 0
      %v666 = vsel %vm646, %v462, 0
      %v669 = vsel %vm646, %v463, 0
      %vm671 = vcmask 1040384
      %v673 = vsel %vm671, %v346, 0
      %675 = vmatprep.subr.mxu0 0.0
      %676 = vmatpush1.msra.mxu0 %v342
      %677 = vmatprep.subr.mxu0 0.0
      %678 = vmatpush1.msra.mxu0 %v343
      %679 = vmatprep.subr.mxu0 0.0
      %680 = vmatpush1.msra.mxu0 %v344
      %681 = vmatprep.subr.mxu0 0.0
      %682 = vmatpush1.msra.mxu0 %v345
      %683 = vmatprep.subr.mxu0 0.0
      %684 = vmatpush1.msra.mxu0 %v673
      %685 = vmatprep.subr.mxu0 0.0
      %686 = vmatpush1.msra.mxu0 0.0
      %687 = vmatprep.subr.mxu0 0.0
      %688 = vmatpush1.msra.mxu0 0.0
      %689 = vmatprep.subr.mxu0 0.0
      %690 = vmatpush1.msra.mxu0 0.0
      %691 = vmatprep.subr.mxu0 0.0
      %692 = vmatpush1.msra.mxu0 0.0
      %693 = vmatprep.subr.mxu0 0.0
      %694 = vmatpush1.msra.mxu0 0.0
      %695 = vmatprep.subr.mxu0 0.0
      %696 = vmatpush1.msra.mxu0 0.0
      %697 = vmatprep.subr.mxu0 0.0
      %698 = vmatpush1.msra.mxu0 0.0
      %699 = vmatprep.subr.mxu0 0.0
      %700 = vmatpush1.msra.mxu0 0.0
      %701 = vmatprep.subr.mxu0 0.0
      %702 = vmatpush1.msra.mxu0 0.0
      %703 = vmatprep.subr.mxu0 0.0
      %704 = vmatpush1.msra.mxu0 0.0
      %705 = vmatprep.subr.mxu0 0.0
      %706 = vmatpush1.msra.mxu0 0.0
      %707 = vmatprep.subr.mxu0 0.0
      %708 = vmatpush1.msra.mxu0 0.0
      %709 = vmatprep.subr.mxu0 0.0
      %710 = vmatpush1.msra.mxu0 0.0
      %711 = vmatprep.subr.mxu0 0.0
      %712 = vmatpush1.msra.mxu0 0.0
      %713 = vmatprep.subr.mxu0 0.0
      %714 = vmatpush1.msra.mxu0 0.0
      %715 = vmatprep.subr.mxu0 0.0
      %716 = vmatpush1.msra.mxu0 0.0
      %717 = vmatprep.subr.mxu0 0.0
      %718 = vmatpush1.msra.mxu0 0.0
      %719 = vmatprep.subr.mxu0 0.0
      %720 = vmatpush1.msra.mxu0 0.0
      %721 = vmatprep.subr.mxu0 0.0
      %722 = vmatpush1.msra.mxu0 0.0
      %723 = vmatprep.subr.mxu0 0.0
      %724 = vmatpush1.msra.mxu0 0.0
      %725 = vmatprep.subr.mxu0 0.0
      %726 = vmatpush1.msra.mxu0 0.0
      %727 = vmatprep.subr.mxu0 0.0
      %728 = vmatpush1.msra.mxu0 0.0
      %729 = vmatprep.subr.mxu0 0.0
      %730 = vmatpush1.msra.mxu0 0.0
      %731 = vmatprep.subr.mxu0 0.0
      %732 = vmatpush1.msra.mxu0 0.0
      %733 = vmatprep.subr.mxu0 0.0
      %734 = vmatpush1.msra.mxu0 0.0
      %735 = vmatprep.subr.mxu0 0.0
      %736 = vmatpush1.msra.mxu0 0.0
      %737 = vmatprep.subr.mxu0 0.0
      %738 = vmatpush1.msra.mxu0 0.0
      %739 = vmatprep.mubr.f32.mxu0 0.0
      %740 = vmatmul.mubr.f32.gmra.mrb[0].mxu0 %v648
      %v741 = vpop.f32.mrb[0].mxu0
      %v742 = vadd.f32 %v608, %v741
      %v743 = vpop.f32.mrb[0].mxu0
      %744 = vmatprep.mubr.f32.mxu0 0.0
      %745 = vmatmul.mubr.f32.gmra.mrb[0].mxu0 %v651
      %v746 = vpop.f32.mrb[0].mxu0
      %v747 = vadd.f32 %v613, %v746
      %v748 = vpop.f32.mrb[0].mxu0
      %749 = vmatprep.mubr.f32.mxu0 0.0
      %750 = vmatmul.mubr.f32.gmra.mrb[0].mxu0 %v654
      %v751 = vpop.f32.mrb[0].mxu0
      %v752 = vadd.f32 %v618, %v751
      %v753 = vpop.f32.mrb[0].mxu0
      %754 = vmatprep.mubr.f32.mxu0 0.0
      %755 = vmatmul.mubr.f32.gmra.mrb[0].mxu0 %v657
      %v756 = vpop.f32.mrb[0].mxu0
      %v757 = vadd.f32 %v623, %v756
      %v758 = vpop.f32.mrb[0].mxu0
      %759 = vmatprep.mubr.f32.mxu0 0.0
      %760 = vmatmul.mubr.f32.gmra.mrb[0].mxu0 %v660
      %v761 = vpop.f32.mrb[0].mxu0
      %v762 = vadd.f32 %v628, %v761
      %v763 = vpop.f32.mrb[0].mxu0
      %764 = vmatprep.mubr.f32.mxu0 0.0
      %765 = vmatmul.mubr.f32.gmra.mrb[0].mxu0 %v663
      %v766 = vpop.f32.mrb[0].mxu0
      %v767 = vadd.f32 %v633, %v766
      %v768 = vpop.f32.mrb[0].mxu0
      %769 = vmatprep.mubr.f32.mxu0 0.0
      %770 = vmatmul.mubr.f32.gmra.mrb[0].mxu0 %v666
      %v771 = vpop.f32.mrb[0].mxu0
      %v772 = vadd.f32 %v638, %v771
      %v773 = vpop.f32.mrb[0].mxu0
      %774 = vmatprep.mubr.f32.mxu0 0.0
      %775 = vmatmul.mubr.f32.gmra.mrb[0].mxu0 %v669
      %v776 = vpop.f32.mrb[0].mxu0
      %v777 = vadd.f32 %v643, %v776
      %v778 = vpop.f32.mrb[0].mxu0
      %779 = vdwg.mxu0
      %v780 = vpack.c.bf16 %v747, %v742
      %v781 = vpack.c.bf16 %v757, %v752
      %v782 = vpack.c.bf16 %v767, %v762
      %v783 = vpack.c.bf16 %v777, %v772
      %784 = vset.pattern.permute.xlu0 1
      %785 = vperm.xlu0 %784, %v334
      %v786 = vpop.permute.xlu0 %785
      %787 = vset.pattern.permute.xlu0 1
      %788 = vperm.xlu0 %787, %v335
      %v789 = vpop.permute.xlu0 %788
      %790 = vset.pattern.permute.xlu0 1
      %791 = vperm.xlu0 %790, %v336
      %v792 = vpop.permute.xlu0 %791
      %793 = vset.pattern.permute.xlu0 1
      %794 = vperm.xlu0 %793, %v337
      %v795 = vpop.permute.xlu0 %794
      %796 = vset.pattern.permute.xlu0 1
      %797 = vperm.xlu0 %796, %v338
      %v798 = vpop.permute.xlu0 %797
      %799 = vset.pattern.permute.xlu0 1
      %800 = vperm.xlu0 %799, %v339
      %v801 = vpop.permute.xlu0 %800
      %802 = vset.pattern.permute.xlu0 1
      %803 = vperm.xlu0 %802, %v340
      %v804 = vpop.permute.xlu0 %803
      %805 = vset.pattern.permute.xlu0 1
      %806 = vperm.xlu0 %805, %v341
      %v807 = vpop.permute.xlu0 %806
      %vm808 = vcmp.eq.s32.totalorder %v786, %v415
      %vm809 = vcmp.eq.s32.totalorder %v789, %v415
      %vm810 = vcmp.eq.s32.totalorder %v792, %v415
      %vm811 = vcmp.eq.s32.totalorder %v795, %v415
      %vm812 = vcmp.eq.s32.totalorder %v798, %v415
      %vm813 = vcmp.eq.s32.totalorder %v801, %v415
      %vm814 = vcmp.eq.s32.totalorder %v804, %v415
      %vm815 = vcmp.eq.s32.totalorder %v807, %v415
      %v816 = vsel %vm808, 1, 0
      %v817 = vsel %vm809, 1, 0
      %v818 = vsel %vm810, 1, 0
      %v819 = vsel %vm811, 1, 0
      %v820 = vsel %vm812, 1, 0
      %v821 = vsel %vm813, 1, 0
      %v822 = vsel %vm814, 1, 0
      %v823 = vsel %vm815, 1, 0
      %v824 = vcvt.s32.f32 %v816
      %v825 = vcvt.s32.f32 %v817
      %v826 = vcvt.s32.f32 %v818
      %v827 = vcvt.s32.f32 %v819
      %v828 = vcvt.s32.f32 %v820
      %v829 = vcvt.s32.f32 %v821
      %v830 = vcvt.s32.f32 %v822
      %v831 = vcvt.s32.f32 %v823
      %832 = vset.pattern.permute.xlu0 3
      %833 = vperm.xlu0 %832, %v334
      %v834 = vpop.permute.xlu0 %833
      %835 = vset.pattern.permute.xlu0 3
      %836 = vperm.xlu0 %835, %v335
      %v837 = vpop.permute.xlu0 %836
      %838 = vset.pattern.permute.xlu0 3
      %839 = vperm.xlu0 %838, %v336
      %v840 = vpop.permute.xlu0 %839
      %841 = vset.pattern.permute.xlu0 3
      %842 = vperm.xlu0 %841, %v337
      %v843 = vpop.permute.xlu0 %842
      %844 = vset.pattern.permute.xlu0 3
      %845 = vperm.xlu0 %844, %v338
      %v846 = vpop.permute.xlu0 %845
      %847 = vset.pattern.permute.xlu0 3
      %848 = vperm.xlu0 %847, %v339
      %v849 = vpop.permute.xlu0 %848
      %850 = vset.pattern.permute.xlu0 3
      %851 = vperm.xlu0 %850, %v340
      %v852 = vpop.permute.xlu0 %851
      %853 = vset.pattern.permute.xlu0 3
      %854 = vperm.xlu0 %853, %v341
      %v855 = vpop.permute.xlu0 %854
      %vm856 = vcmp.eq.s32.totalorder %v834, %v415
      %vm857 = vcmp.eq.s32.totalorder %v837, %v415
      %vm858 = vcmp.eq.s32.totalorder %v840, %v415
      %vm859 = vcmp.eq.s32.totalorder %v843, %v415
      %vm860 = vcmp.eq.s32.totalorder %v846, %v415
      %vm861 = vcmp.eq.s32.totalorder %v849, %v415
      %vm862 = vcmp.eq.s32.totalorder %v852, %v415
      %vm863 = vcmp.eq.s32.totalorder %v855, %v415
      %v864 = vsel %vm856, 1, 0
      %v865 = vsel %vm857, 1, 0
      %v866 = vsel %vm858, 1, 0
      %v867 = vsel %vm859, 1, 0
      %v868 = vsel %vm860, 1, 0
      %v869 = vsel %vm861, 1, 0
      %v870 = vsel %vm862, 1, 0
      %v871 = vsel %vm863, 1, 0
      %v872 = vcvt.s32.f32 %v864
      %v873 = vcvt.s32.f32 %v865
      %v874 = vcvt.s32.f32 %v866
      %v875 = vcvt.s32.f32 %v867
      %v876 = vcvt.s32.f32 %v868
      %v877 = vcvt.s32.f32 %v869
      %v878 = vcvt.s32.f32 %v870
      %v879 = vcvt.s32.f32 %v871
      %v881 = vsel %vm512, %v872, 0
      %v884 = vsel %vm512, %v873, 0
      %v887 = vsel %vm512, %v874, 0
      %v890 = vsel %vm512, %v875, 0
      %v893 = vsel %vm512, %v876, 0
      %v896 = vsel %vm512, %v877, 0
      %v899 = vsel %vm512, %v878, 0
      %v902 = vsel %vm512, %v879, 0
      %904 = vmatprep.subr.mxu0 0.0
      %905 = vmatpush1.msra.mxu0 %v539
      %906 = vmatprep.subr.mxu0 0.0
      %907 = vmatpush1.msra.mxu0 0.0
      %908 = vmatprep.subr.mxu0 0.0
      %909 = vmatpush1.msra.mxu0 0.0
      %910 = vmatprep.subr.mxu0 0.0
      %911 = vmatpush1.msra.mxu0 0.0
      %912 = vmatprep.subr.mxu0 0.0
      %913 = vmatpush1.msra.mxu0 0.0
      %914 = vmatprep.subr.mxu0 0.0
      %915 = vmatpush1.msra.mxu0 0.0
      %916 = vmatprep.subr.mxu0 0.0
      %917 = vmatpush1.msra.mxu0 0.0
      %918 = vmatprep.subr.mxu0 0.0
      %919 = vmatpush1.msra.mxu0 0.0
      %920 = vmatprep.subr.mxu0 0.0
      %921 = vmatpush1.msra.mxu0 0.0
      %922 = vmatprep.subr.mxu0 0.0
      %923 = vmatpush1.msra.mxu0 0.0
      %924 = vmatprep.subr.mxu0 0.0
      %925 = vmatpush1.msra.mxu0 0.0
      %926 = vmatprep.subr.mxu0 0.0
      %927 = vmatpush1.msra.mxu0 0.0
      %928 = vmatprep.subr.mxu0 0.0
      %929 = vmatpush1.msra.mxu0 0.0
      %930 = vmatprep.subr.mxu0 0.0
      %931 = vmatpush1.msra.mxu0 0.0
      %932 = vmatprep.subr.mxu0 0.0
      %933 = vmatpush1.msra.mxu0 0.0
      %934 = vmatprep.subr.mxu0 0.0
      %935 = vmatpush1.msra.mxu0 0.0
      %936 = vmatprep.subr.mxu0 0.0
      %937 = vmatpush1.msra.mxu0 0.0
      %938 = vmatprep.subr.mxu0 0.0
      %939 = vmatpush1.msra.mxu0 0.0
      %940 = vmatprep.subr.mxu0 0.0
      %941 = vmatpush1.msra.mxu0 0.0
      %942 = vmatprep.subr.mxu0 0.0
      %943 = vmatpush1.msra.mxu0 0.0
      %944 = vmatprep.subr.mxu0 0.0
      %945 = vmatpush1.msra.mxu0 0.0
      %946 = vmatprep.subr.mxu0 0.0
      %947 = vmatpush1.msra.mxu0 0.0
      %948 = vmatprep.subr.mxu0 0.0
      %949 = vmatpush1.msra.mxu0 0.0
      %950 = vmatprep.subr.mxu0 0.0
      %951 = vmatpush1.msra.mxu0 0.0
      %952 = vmatprep.subr.mxu0 0.0
      %953 = vmatpush1.msra.mxu0 0.0
      %954 = vmatprep.subr.mxu0 0.0
      %955 = vmatpush1.msra.mxu0 0.0
      %956 = vmatprep.subr.mxu0 0.0
      %957 = vmatpush1.msra.mxu0 0.0
      %958 = vmatprep.subr.mxu0 0.0
      %959 = vmatpush1.msra.mxu0 0.0
      %960 = vmatprep.subr.mxu0 0.0
      %961 = vmatpush1.msra.mxu0 0.0
      %962 = vmatprep.subr.mxu0 0.0
      %963 = vmatpush1.msra.mxu0 0.0
      %964 = vmatprep.subr.mxu0 0.0
      %965 = vmatpush1.msra.mxu0 0.0
      %966 = vmatprep.subr.mxu0 0.0
      %967 = vmatpush1.msra.mxu0 0.0
      %968 = vmatprep.mubr.f32.mxu0 0.0
      %969 = vmatmul.mubr.f32.gmra.mrb[0].mxu0 %v881
      %v970 = vpop.f32.mrb[0].mxu0
      %v971 = vadd.f32 0.0, %v970
      %v972 = vpop.f32.mrb[0].mxu0
      %973 = vmatprep.mubr.f32.mxu0 0.0
      %974 = vmatmul.mubr.f32.gmra.mrb[0].mxu0 %v884
      %v975 = vpop.f32.mrb[0].mxu0
      %v976 = vadd.f32 0.0, %v975
      %v977 = vpop.f32.mrb[0].mxu0
      %978 = vmatprep.mubr.f32.mxu0 0.0
      %979 = vmatmul.mubr.f32.gmra.mrb[0].mxu0 %v887
      %v980 = vpop.f32.mrb[0].mxu0
      %v981 = vadd.f32 0.0, %v980
      %v982 = vpop.f32.mrb[0].mxu0
      %983 = vmatprep.mubr.f32.mxu0 0.0
      %984 = vmatmul.mubr.f32.gmra.mrb[0].mxu0 %v890
      %v985 = vpop.f32.mrb[0].mxu0
      %v986 = vadd.f32 0.0, %v985
      %v987 = vpop.f32.mrb[0].mxu0
      %988 = vmatprep.mubr.f32.mxu0 0.0
      %989 = vmatmul.mubr.f32.gmra.mrb[0].mxu0 %v893
      %v990 = vpop.f32.mrb[0].mxu0
      %v991 = vadd.f32 0.0, %v990
      %v992 = vpop.f32.mrb[0].mxu0
      %993 = vmatprep.mubr.f32.mxu0 0.0
      %994 = vmatmul.mubr.f32.gmra.mrb[0].mxu0 %v896
      %v995 = vpop.f32.mrb[0].mxu0
      %v996 = vadd.f32 0.0, %v995
      %v997 = vpop.f32.mrb[0].mxu0
      %998 = vmatprep.mubr.f32.mxu0 0.0
      %999 = vmatmul.mubr.f32.gmra.mrb[0].mxu0 %v899
      %v1000 = vpop.f32.mrb[0].mxu0
      %v1001 = vadd.f32 0.0, %v1000
      %v1002 = vpop.f32.mrb[0].mxu0
      %1003 = vmatprep.mubr.f32.mxu0 0.0
      %1004 = vmatmul.mubr.f32.gmra.mrb[0].mxu0 %v902
      %v1005 = vpop.f32.mrb[0].mxu0
      %v1006 = vadd.f32 0.0, %v1005
      %v1007 = vpop.f32.mrb[0].mxu0
      %1008 = vdwg.mxu0
      %v1010 = vsel %vm646, %v824, 0
      %v1013 = vsel %vm646, %v825, 0
      %v1016 = vsel %vm646, %v826, 0
      %v1019 = vsel %vm646, %v827, 0
      %v1022 = vsel %vm646, %v828, 0
      %v1025 = vsel %vm646, %v829, 0
      %v1028 = vsel %vm646, %v830, 0
      %v1031 = vsel %vm646, %v831, 0
      %1033 = vmatprep.subr.mxu0 0.0
      %1034 = vmatpush1.msra.mxu0 %v342
      %1035 = vmatprep.subr.mxu0 0.0
      %1036 = vmatpush1.msra.mxu0 %v343
      %1037 = vmatprep.subr.mxu0 0.0
      %1038 = vmatpush1.msra.mxu0 %v344
      %1039 = vmatprep.subr.mxu0 0.0
      %1040 = vmatpush1.msra.mxu0 %v345
      %1041 = vmatprep.subr.mxu0 0.0
      %1042 = vmatpush1.msra.mxu0 %v673
      %1043 = vmatprep.subr.mxu0 0.0
      %1044 = vmatpush1.msra.mxu0 0.0
      %1045 = vmatprep.subr.mxu0 0.0
      %1046 = vmatpush1.msra.mxu0 0.0
      %1047 = vmatprep.subr.mxu0 0.0
      %1048 = vmatpush1.msra.mxu0 0.0
      %1049 = vmatprep.subr.mxu0 0.0
      %1050 = vmatpush1.msra.mxu0 0.0
      %1051 = vmatprep.subr.mxu0 0.0
      %1052 = vmatpush1.msra.mxu0 0.0
      %1053 = vmatprep.subr.mxu0 0.0
      %1054 = vmatpush1.msra.mxu0 0.0
      %1055 = vmatprep.subr.mxu0 0.0
      %1056 = vmatpush1.msra.mxu0 0.0
      %1057 = vmatprep.subr.mxu0 0.0
      %1058 = vmatpush1.msra.mxu0 0.0
      %1059 = vmatprep.subr.mxu0 0.0
      %1060 = vmatpush1.msra.mxu0 0.0
      %1061 = vmatprep.subr.mxu0 0.0
      %1062 = vmatpush1.msra.mxu0 0.0
      %1063 = vmatprep.subr.mxu0 0.0
      %1064 = vmatpush1.msra.mxu0 0.0
      %1065 = vmatprep.subr.mxu0 0.0
      %1066 = vmatpush1.msra.mxu0 0.0
      %1067 = vmatprep.subr.mxu0 0.0
      %1068 = vmatpush1.msra.mxu0 0.0
      %1069 = vmatprep.subr.mxu0 0.0
      %1070 = vmatpush1.msra.mxu0 0.0
      %1071 = vmatprep.subr.mxu0 0.0
      %1072 = vmatpush1.msra.mxu0 0.0
      %1073 = vmatprep.subr.mxu0 0.0
      %1074 = vmatpush1.msra.mxu0 0.0
      %1075 = vmatprep.subr.mxu0 0.0
      %1076 = vmatpush1.msra.mxu0 0.0
      %1077 = vmatprep.subr.mxu0 0.0
      %1078 = vmatpush1.msra.mxu0 0.0
      %1079 = vmatprep.subr.mxu0 0.0
      %1080 = vmatpush1.msra.mxu0 0.0
      %1081 = vmatprep.subr.mxu0 0.0
      %1082 = vmatpush1.msra.mxu0 0.0
      %1083 = vmatprep.subr.mxu0 0.0
      %1084 = vmatpush1.msra.mxu0 0.0
      %1085 = vmatprep.subr.mxu0 0.0
      %1086 = vmatpush1.msra.mxu0 0.0
      %1087 = vmatprep.subr.mxu0 0.0
      %1088 = vmatpush1.msra.mxu0 0.0
      %1089 = vmatprep.subr.mxu0 0.0
      %1090 = vmatpush1.msra.mxu0 0.0
      %1091 = vmatprep.subr.mxu0 0.0
      %1092 = vmatpush1.msra.mxu0 0.0
      %1093 = vmatprep.subr.mxu0 0.0
      %1094 = vmatpush1.msra.mxu0 0.0
      %1095 = vmatprep.subr.mxu0 0.0
      %1096 = vmatpush1.msra.mxu0 0.0
      %1097 = vmatprep.mubr.f32.mxu0 0.0
      %1098 = vmatmul.mubr.f32.gmra.mrb[0].mxu0 %v1010
      %v1099 = vpop.f32.mrb[0].mxu0
      %v1100 = vadd.f32 %v971, %v1099
      %v1101 = vpop.f32.mrb[0].mxu0
      %1102 = vmatprep.mubr.f32.mxu0 0.0
      %1103 = vmatmul.mubr.f32.gmra.mrb[0].mxu0 %v1013
      %v1104 = vpop.f32.mrb[0].mxu0
      %v1105 = vadd.f32 %v976, %v1104
      %v1106 = vpop.f32.mrb[0].mxu0
      %1107 = vmatprep.mubr.f32.mxu0 0.0
      %1108 = vmatmul.mubr.f32.gmra.mrb[0].mxu0 %v1016
      %v1109 = vpop.f32.mrb[0].mxu0
      %v1110 = vadd.f32 %v981, %v1109
      %v1111 = vpop.f32.mrb[0].mxu0
      %1112 = vmatprep.mubr.f32.mxu0 0.0
      %1113 = vmatmul.mubr.f32.gmra.mrb[0].mxu0 %v1019
      %v1114 = vpop.f32.mrb[0].mxu0
      %v1115 = vadd.f32 %v986, %v1114
      %v1116 = vpop.f32.mrb[0].mxu0
      %1117 = vmatprep.mubr.f32.mxu0 0.0
      %1118 = vmatmul.mubr.f32.gmra.mrb[0].mxu0 %v1022
      %v1119 = vpop.f32.mrb[0].mxu0
      %v1120 = vadd.f32 %v991, %v1119
      %v1121 = vpop.f32.mrb[0].mxu0
      %1122 = vmatprep.mubr.f32.mxu0 0.0
      %1123 = vmatmul.mubr.f32.gmra.mrb[0].mxu0 %v1025
      %v1124 = vpop.f32.mrb[0].mxu0
      %v1125 = vadd.f32 %v996, %v1124
      %v1126 = vpop.f32.mrb[0].mxu0
      %1127 = vmatprep.mubr.f32.mxu0 0.0
      %1128 = vmatmul.mubr.f32.gmra.mrb[0].mxu0 %v1028
      %v1129 = vpop.f32.mrb[0].mxu0
      %v1130 = vadd.f32 %v1001, %v1129
      %v1131 = vpop.f32.mrb[0].mxu0
      %1132 = vmatprep.mubr.f32.mxu0 0.0
      %1133 = vmatmul.mubr.f32.gmra.mrb[0].mxu0 %v1031
      %v1134 = vpop.f32.mrb[0].mxu0
      %v1135 = vadd.f32 %v1006, %v1134
      %v1136 = vpop.f32.mrb[0].mxu0
      %1137 = vdwg.mxu0
      %v1138 = vpack.c.bf16 %v1105, %v1100
      %v1139 = vpack.c.bf16 %v1115, %v1110
      %v1140 = vpack.c.bf16 %v1125, %v1120
      %v1141 = vpack.c.bf16 %v1135, %v1130
      %v1158 = vunpack.c.l.b16 %v366
      %v1159 = vunpack.c.h.b16 %v366
      %v1160 = vunpack.c.l.b16 %v367
      %v1161 = vunpack.c.h.b16 %v367
      %v1162 = vunpack.c.l.b16 %v368
      %v1163 = vunpack.c.h.b16 %v368
      %v1164 = vunpack.c.l.b16 %v369
      %v1165 = vunpack.c.h.b16 %v369
      %v1166 = vunpack.c.l.b16 %v370
      %v1167 = vunpack.c.h.b16 %v370
      %v1168 = vunpack.c.l.b16 %v371
      %v1169 = vunpack.c.h.b16 %v371
      %v1170 = vunpack.c.l.b16 %v372
      %v1171 = vunpack.c.h.b16 %v372
      %v1172 = vunpack.c.l.b16 %v373
      %v1173 = vunpack.c.h.b16 %v373
      %v1174 = vunpack.c.l.b16 %v374
      %v1175 = vunpack.c.h.b16 %v374
      %v1176 = vunpack.c.l.b16 %v375
      %v1177 = vunpack.c.h.b16 %v375
      %v1178 = vunpack.c.l.b16 %v376
      %v1179 = vunpack.c.h.b16 %v376
      %v1180 = vunpack.c.l.b16 %v377
      %v1181 = vunpack.c.h.b16 %v377
      %v1182 = vunpack.c.l.b16 %v378
      %v1183 = vunpack.c.h.b16 %v378
      %v1184 = vunpack.c.l.b16 %v379
      %v1185 = vunpack.c.h.b16 %v379
      %v1186 = vunpack.c.l.b16 %v380
      %v1187 = vunpack.c.h.b16 %v380
      %v1188 = vunpack.c.l.b16 %v381
      %v1189 = vunpack.c.h.b16 %v381
      %v1190 = vpack.c.b16 %v1160, %v1158
      %v1191 = vpack.c.b16 %v1161, %v1159
      %v1192 = vpack.c.b16 %v1164, %v1162
      %v1193 = vpack.c.b16 %v1165, %v1163
      %v1194 = vpack.c.b16 %v1168, %v1166
      %v1195 = vpack.c.b16 %v1169, %v1167
      %v1196 = vpack.c.b16 %v1172, %v1170
      %v1197 = vpack.c.b16 %v1173, %v1171
      %v1198 = vpack.c.b16 %v1176, %v1174
      %v1199 = vpack.c.b16 %v1177, %v1175
      %v1200 = vpack.c.b16 %v1180, %v1178
      %v1201 = vpack.c.b16 %v1181, %v1179
      %v1202 = vpack.c.b16 %v1184, %v1182
      %v1203 = vpack.c.b16 %v1185, %v1183
      %v1204 = vpack.c.b16 %v1188, %v1186
      %v1205 = vpack.c.b16 %v1189, %v1187
      %1222 = vmatprep.subr.bf16.mxu0 %v1191
      %1223 = vmatpush1.bf16.msra.mxu0 %v1190
      %1224 = vmatprep.subr.bf16.mxu0 %v1193
      %1225 = vmatpush1.bf16.msra.mxu0 %v1192
      %1226 = vmatprep.subr.bf16.mxu0 %v1195
      %1227 = vmatpush1.bf16.msra.mxu0 %v1194
      %1228 = vmatprep.subr.bf16.mxu0 %v1197
      %1229 = vmatpush1.bf16.msra.mxu0 %v1196
      %1230 = vmatprep.subr.bf16.mxu0 %v1199
      %1231 = vmatpush1.bf16.msra.mxu0 %v1198
      %1232 = vmatprep.subr.bf16.mxu0 %v1201
      %1233 = vmatpush1.bf16.msra.mxu0 %v1200
      %1234 = vmatprep.subr.bf16.mxu0 %v1203
      %1235 = vmatpush1.bf16.msra.mxu0 %v1202
      %1236 = vmatprep.subr.bf16.mxu0 %v1205
      %1237 = vmatpush1.bf16.msra.mxu0 %v1204
      %1238 = vmatprep.subr.bf16.mxu0 0
      %1239 = vmatpush1.bf16.msra.mxu0 0
      %1240 = vmatprep.subr.bf16.mxu0 0
      %1241 = vmatpush1.bf16.msra.mxu0 0
      %1242 = vmatprep.subr.bf16.mxu0 0
      %1243 = vmatpush1.bf16.msra.mxu0 0
      %1244 = vmatprep.subr.bf16.mxu0 0
      %1245 = vmatpush1.bf16.msra.mxu0 0
      %1246 = vmatprep.subr.bf16.mxu0 0
      %1247 = vmatpush1.bf16.msra.mxu0 0
      %1248 = vmatprep.subr.bf16.mxu0 0
      %1249 = vmatpush1.bf16.msra.mxu0 0
      %1250 = vmatprep.subr.bf16.mxu0 0
      %1251 = vmatpush1.bf16.msra.mxu0 0
      %1252 = vmatprep.subr.bf16.mxu0 0
      %1253 = vmatpush1.bf16.msra.mxu0 0
      %1254 = vmatprep.mubr.bf16.mxu0 0
      %1255 = vmatmul.mubr.bf16.gmra.mrb[0].mxu0 %v1138
      %v1256 = vpop.f32.mrb[0].mxu0
      %v1257 = vadd.f32 0.0, %v1256
      %v1258 = vpop.f32.mrb[0].mxu0
      %v1259 = vadd.f32 0.0, %v1258
      %v1260 = vpop.f32.mrb[0].mxu0
      %v1261 = vadd.f32 0.0, %v1260
      %v1262 = vpop.f32.mrb[0].mxu0
      %v1263 = vadd.f32 0.0, %v1262
      %1264 = vmatprep.mubr.bf16.mxu0 0
      %1265 = vmatmul.mubr.bf16.gmra.mrb[0].mxu0 %v1139
      %v1266 = vpop.f32.mrb[0].mxu0
      %v1267 = vadd.f32 0.0, %v1266
      %v1268 = vpop.f32.mrb[0].mxu0
      %v1269 = vadd.f32 0.0, %v1268
      %v1270 = vpop.f32.mrb[0].mxu0
      %v1271 = vadd.f32 0.0, %v1270
      %v1272 = vpop.f32.mrb[0].mxu0
      %v1273 = vadd.f32 0.0, %v1272
      %1274 = vmatprep.mubr.bf16.mxu0 0
      %1275 = vmatmul.mubr.bf16.gmra.mrb[0].mxu0 %v1140
      %v1276 = vpop.f32.mrb[0].mxu0
      %v1277 = vadd.f32 0.0, %v1276
      %v1278 = vpop.f32.mrb[0].mxu0
      %v1279 = vadd.f32 0.0, %v1278
      %v1280 = vpop.f32.mrb[0].mxu0
      %v1281 = vadd.f32 0.0, %v1280
      %v1282 = vpop.f32.mrb[0].mxu0
      %v1283 = vadd.f32 0.0, %v1282
      %1284 = vmatprep.mubr.bf16.mxu0 0
      %1285 = vmatmul.mubr.bf16.gmra.mrb[0].mxu0 %v1141
      %v1286 = vpop.f32.mrb[0].mxu0
      %v1287 = vadd.f32 0.0, %v1286
      %v1288 = vpop.f32.mrb[0].mxu0
      %v1289 = vadd.f32 0.0, %v1288
      %v1290 = vpop.f32.mrb[0].mxu0
      %v1291 = vadd.f32 0.0, %v1290
      %v1292 = vpop.f32.mrb[0].mxu0
      %v1293 = vadd.f32 0.0, %v1292
      %1294 = vdwg.mxu0
      %v1311 = vunpack.c.l.b16 %v350
      %v1312 = vunpack.c.h.b16 %v350
      %v1313 = vunpack.c.l.b16 %v351
      %v1314 = vunpack.c.h.b16 %v351
      %v1315 = vunpack.c.l.b16 %v352
      %v1316 = vunpack.c.h.b16 %v352
      %v1317 = vunpack.c.l.b16 %v353
      %v1318 = vunpack.c.h.b16 %v353
      %v1319 = vunpack.c.l.b16 %v354
      %v1320 = vunpack.c.h.b16 %v354
      %v1321 = vunpack.c.l.b16 %v355
      %v1322 = vunpack.c.h.b16 %v355
      %v1323 = vunpack.c.l.b16 %v356
      %v1324 = vunpack.c.h.b16 %v356
      %v1325 = vunpack.c.l.b16 %v357
      %v1326 = vunpack.c.h.b16 %v357
      %v1327 = vunpack.c.l.b16 %v358
      %v1328 = vunpack.c.h.b16 %v358
      %v1329 = vunpack.c.l.b16 %v359
      %v1330 = vunpack.c.h.b16 %v359
      %v1331 = vunpack.c.l.b16 %v360
      %v1332 = vunpack.c.h.b16 %v360
      %v1333 = vunpack.c.l.b16 %v361
      %v1334 = vunpack.c.h.b16 %v361
      %v1335 = vunpack.c.l.b16 %v362
      %v1336 = vunpack.c.h.b16 %v362
      %v1337 = vunpack.c.l.b16 %v363
      %v1338 = vunpack.c.h.b16 %v363
      %v1339 = vunpack.c.l.b16 %v364
      %v1340 = vunpack.c.h.b16 %v364
      %v1341 = vunpack.c.l.b16 %v365
      %v1342 = vunpack.c.h.b16 %v365
      %v1343 = vpack.c.b16 %v1313, %v1311
      %v1344 = vpack.c.b16 %v1314, %v1312
      %v1345 = vpack.c.b16 %v1317, %v1315
      %v1346 = vpack.c.b16 %v1318, %v1316
      %v1347 = vpack.c.b16 %v1321, %v1319
      %v1348 = vpack.c.b16 %v1322, %v1320
      %v1349 = vpack.c.b16 %v1325, %v1323
      %v1350 = vpack.c.b16 %v1326, %v1324
      %v1351 = vpack.c.b16 %v1329, %v1327
      %v1352 = vpack.c.b16 %v1330, %v1328
      %v1353 = vpack.c.b16 %v1333, %v1331
      %v1354 = vpack.c.b16 %v1334, %v1332
      %v1355 = vpack.c.b16 %v1337, %v1335
      %v1356 = vpack.c.b16 %v1338, %v1336
      %v1357 = vpack.c.b16 %v1341, %v1339
      %v1358 = vpack.c.b16 %v1342, %v1340
      %1375 = vmatprep.subr.bf16.mxu0 %v1344
      %1376 = vmatpush1.bf16.msra.mxu0 %v1343
      %1377 = vmatprep.subr.bf16.mxu0 %v1346
      %1378 = vmatpush1.bf16.msra.mxu0 %v1345
      %1379 = vmatprep.subr.bf16.mxu0 %v1348
      %1380 = vmatpush1.bf16.msra.mxu0 %v1347
      %1381 = vmatprep.subr.bf16.mxu0 %v1350
      %1382 = vmatpush1.bf16.msra.mxu0 %v1349
      %1383 = vmatprep.subr.bf16.mxu0 %v1352
      %1384 = vmatpush1.bf16.msra.mxu0 %v1351
      %1385 = vmatprep.subr.bf16.mxu0 %v1354
      %1386 = vmatpush1.bf16.msra.mxu0 %v1353
      %1387 = vmatprep.subr.bf16.mxu0 %v1356
      %1388 = vmatpush1.bf16.msra.mxu0 %v1355
      %1389 = vmatprep.subr.bf16.mxu0 %v1358
      %1390 = vmatpush1.bf16.msra.mxu0 %v1357
      %1391 = vmatprep.subr.bf16.mxu0 0
      %1392 = vmatpush1.bf16.msra.mxu0 0
      %1393 = vmatprep.subr.bf16.mxu0 0
      %1394 = vmatpush1.bf16.msra.mxu0 0
      %1395 = vmatprep.subr.bf16.mxu0 0
      %1396 = vmatpush1.bf16.msra.mxu0 0
      %1397 = vmatprep.subr.bf16.mxu0 0
      %1398 = vmatpush1.bf16.msra.mxu0 0
      %1399 = vmatprep.subr.bf16.mxu0 0
      %1400 = vmatpush1.bf16.msra.mxu0 0
      %1401 = vmatprep.subr.bf16.mxu0 0
      %1402 = vmatpush1.bf16.msra.mxu0 0
      %1403 = vmatprep.subr.bf16.mxu0 0
      %1404 = vmatpush1.bf16.msra.mxu0 0
      %1405 = vmatprep.subr.bf16.mxu0 0
      %1406 = vmatpush1.bf16.msra.mxu0 0
      %1407 = vmatprep.mubr.bf16.mxu0 0
      %1408 = vmatmul.mubr.bf16.gmra.mrb[0].mxu0 %v780
      %v1409 = vpop.f32.mrb[0].mxu0
      %v1410 = vadd.f32 %v1257, %v1409
      %v1411 = vpop.f32.mrb[0].mxu0
      %v1412 = vadd.f32 %v1259, %v1411
      %v1413 = vpop.f32.mrb[0].mxu0
      %v1414 = vadd.f32 %v1261, %v1413
      %v1415 = vpop.f32.mrb[0].mxu0
      %v1416 = vadd.f32 %v1263, %v1415
      %1417 = vmatprep.mubr.bf16.mxu0 0
      %1418 = vmatmul.mubr.bf16.gmra.mrb[0].mxu0 %v781
      %v1419 = vpop.f32.mrb[0].mxu0
      %v1420 = vadd.f32 %v1267, %v1419
      %v1421 = vpop.f32.mrb[0].mxu0
      %v1422 = vadd.f32 %v1269, %v1421
      %v1423 = vpop.f32.mrb[0].mxu0
      %v1424 = vadd.f32 %v1271, %v1423
      %v1425 = vpop.f32.mrb[0].mxu0
      %v1426 = vadd.f32 %v1273, %v1425
      %1427 = vmatprep.mubr.bf16.mxu0 0
      %1428 = vmatmul.mubr.bf16.gmra.mrb[0].mxu0 %v782
      %v1429 = vpop.f32.mrb[0].mxu0
      %v1430 = vadd.f32 %v1277, %v1429
      %v1431 = vpop.f32.mrb[0].mxu0
      %v1432 = vadd.f32 %v1279, %v1431
      %v1433 = vpop.f32.mrb[0].mxu0
      %v1434 = vadd.f32 %v1281, %v1433
      %v1435 = vpop.f32.mrb[0].mxu0
      %v1436 = vadd.f32 %v1283, %v1435
      %1437 = vmatprep.mubr.bf16.mxu0 0
      %1438 = vmatmul.mubr.bf16.gmra.mrb[0].mxu0 %v783
      %v1439 = vpop.f32.mrb[0].mxu0
      %v1440 = vadd.f32 %v1287, %v1439
      %v1441 = vpop.f32.mrb[0].mxu0
      %v1442 = vadd.f32 %v1289, %v1441
      %v1443 = vpop.f32.mrb[0].mxu0
      %v1444 = vadd.f32 %v1291, %v1443
      %v1445 = vpop.f32.mrb[0].mxu0
      %v1446 = vadd.f32 %v1293, %v1445
      %1447 = vdwg.mxu0
      %1448 = vset.pattern.permute.xlu0 4
      %1449 = vperm.xlu0 %1448, %v334
      %v1450 = vpop.permute.xlu0 %1449
      %1451 = vset.pattern.permute.xlu0 4
      %1452 = vperm.xlu0 %1451, %v335
      %v1453 = vpop.permute.xlu0 %1452
      %1454 = vset.pattern.permute.xlu0 4
      %1455 = vperm.xlu0 %1454, %v336
      %v1456 = vpop.permute.xlu0 %1455
      %1457 = vset.pattern.permute.xlu0 4
      %1458 = vperm.xlu0 %1457, %v337
      %v1459 = vpop.permute.xlu0 %1458
      %1460 = vset.pattern.permute.xlu0 4
      %1461 = vperm.xlu0 %1460, %v338
      %v1462 = vpop.permute.xlu0 %1461
      %1463 = vset.pattern.permute.xlu0 4
      %1464 = vperm.xlu0 %1463, %v339
      %v1465 = vpop.permute.xlu0 %1464
      %1466 = vset.pattern.permute.xlu0 4
      %1467 = vperm.xlu0 %1466, %v340
      %v1468 = vpop.permute.xlu0 %1467
      %1469 = vset.pattern.permute.xlu0 4
      %1470 = vperm.xlu0 %1469, %v341
      %v1471 = vpop.permute.xlu0 %1470
      %vm1472 = vcmp.eq.s32.totalorder %v1450, %v415
      %vm1473 = vcmp.eq.s32.totalorder %v1453, %v415
      %vm1474 = vcmp.eq.s32.totalorder %v1456, %v415
      %vm1475 = vcmp.eq.s32.totalorder %v1459, %v415
      %vm1476 = vcmp.eq.s32.totalorder %v1462, %v415
      %vm1477 = vcmp.eq.s32.totalorder %v1465, %v415
      %vm1478 = vcmp.eq.s32.totalorder %v1468, %v415
      %vm1479 = vcmp.eq.s32.totalorder %v1471, %v415
      %v1480 = vsel %vm1472, 1, 0
      %v1481 = vsel %vm1473, 1, 0
      %v1482 = vsel %vm1474, 1, 0
      %v1483 = vsel %vm1475, 1, 0
      %v1484 = vsel %vm1476, 1, 0
      %v1485 = vsel %vm1477, 1, 0
      %v1486 = vsel %vm1478, 1, 0
      %v1487 = vsel %vm1479, 1, 0
      %v1488 = vcvt.s32.f32 %v1480
      %v1489 = vcvt.s32.f32 %v1481
      %v1490 = vcvt.s32.f32 %v1482
      %v1491 = vcvt.s32.f32 %v1483
      %v1492 = vcvt.s32.f32 %v1484
      %v1493 = vcvt.s32.f32 %v1485
      %v1494 = vcvt.s32.f32 %v1486
      %v1495 = vcvt.s32.f32 %v1487
      %vm1496 = vcmask 89088
      %v1498 = vsel %vm1496, %v1488, 0
      %v1501 = vsel %vm1496, %v1489, 0
      %v1504 = vsel %vm1496, %v1490, 0
      %v1507 = vsel %vm1496, %v1491, 0
      %v1510 = vsel %vm1496, %v1492, 0
      %v1513 = vsel %vm1496, %v1493, 0
      %v1516 = vsel %vm1496, %v1494, 0
      %v1519 = vsel %vm1496, %v1495, 0
      %vm1521 = vcmask 1042432
      %v1523 = vsel %vm1521, %v349, 0
      %1525 = vmatprep.subr.mxu0 0.0
      %1526 = vmatpush1.msra.mxu0 %v348
      %1527 = vmatprep.subr.mxu0 0.0
      %1528 = vmatpush1.msra.mxu0 %v1523
      %1529 = vmatprep.subr.mxu0 0.0
      %1530 = vmatpush1.msra.mxu0 0.0
      %1531 = vmatprep.subr.mxu0 0.0
      %1532 = vmatpush1.msra.mxu0 0.0
      %1533 = vmatprep.subr.mxu0 0.0
      %1534 = vmatpush1.msra.mxu0 0.0
      %1535 = vmatprep.subr.mxu0 0.0
      %1536 = vmatpush1.msra.mxu0 0.0
      %1537 = vmatprep.subr.mxu0 0.0
      %1538 = vmatpush1.msra.mxu0 0.0
      %1539 = vmatprep.subr.mxu0 0.0
      %1540 = vmatpush1.msra.mxu0 0.0
      %1541 = vmatprep.subr.mxu0 0.0
      %1542 = vmatpush1.msra.mxu0 0.0
      %1543 = vmatprep.subr.mxu0 0.0
      %1544 = vmatpush1.msra.mxu0 0.0
      %1545 = vmatprep.subr.mxu0 0.0
      %1546 = vmatpush1.msra.mxu0 0.0
      %1547 = vmatprep.subr.mxu0 0.0
      %1548 = vmatpush1.msra.mxu0 0.0
      %1549 = vmatprep.subr.mxu0 0.0
      %1550 = vmatpush1.msra.mxu0 0.0
      %1551 = vmatprep.subr.mxu0 0.0
      %1552 = vmatpush1.msra.mxu0 0.0
      %1553 = vmatprep.subr.mxu0 0.0
      %1554 = vmatpush1.msra.mxu0 0.0
      %1555 = vmatprep.subr.mxu0 0.0
      %1556 = vmatpush1.msra.mxu0 0.0
      %1557 = vmatprep.subr.mxu0 0.0
      %1558 = vmatpush1.msra.mxu0 0.0
      %1559 = vmatprep.subr.mxu0 0.0
      %1560 = vmatpush1.msra.mxu0 0.0
      %1561 = vmatprep.subr.mxu0 0.0
      %1562 = vmatpush1.msra.mxu0 0.0
      %1563 = vmatprep.subr.mxu0 0.0
      %1564 = vmatpush1.msra.mxu0 0.0
      %1565 = vmatprep.subr.mxu0 0.0
      %1566 = vmatpush1.msra.mxu0 0.0
      %1567 = vmatprep.subr.mxu0 0.0
      %1568 = vmatpush1.msra.mxu0 0.0
      %1569 = vmatprep.subr.mxu0 0.0
      %1570 = vmatpush1.msra.mxu0 0.0
      %1571 = vmatprep.subr.mxu0 0.0
      %1572 = vmatpush1.msra.mxu0 0.0
      %1573 = vmatprep.subr.mxu0 0.0
      %1574 = vmatpush1.msra.mxu0 0.0
      %1575 = vmatprep.subr.mxu0 0.0
      %1576 = vmatpush1.msra.mxu0 0.0
      %1577 = vmatprep.subr.mxu0 0.0
      %1578 = vmatpush1.msra.mxu0 0.0
      %1579 = vmatprep.subr.mxu0 0.0
      %1580 = vmatpush1.msra.mxu0 0.0
      %1581 = vmatprep.subr.mxu0 0.0
      %1582 = vmatpush1.msra.mxu0 0.0
      %1583 = vmatprep.subr.mxu0 0.0
      %1584 = vmatpush1.msra.mxu0 0.0
      %1585 = vmatprep.subr.mxu0 0.0
      %1586 = vmatpush1.msra.mxu0 0.0
      %1587 = vmatprep.subr.mxu0 0.0
      %1588 = vmatpush1.msra.mxu0 0.0
      %1589 = vmatprep.mubr.f32.mxu0 0.0
      %1590 = vmatmul.mubr.f32.gmra.mrb[0].mxu0 %v1498
      %v1591 = vpop.f32.mrb[0].mxu0
      %v1592 = vadd.f32 0.0, %v1591
      %v1593 = vpop.f32.mrb[0].mxu0
      %1594 = vmatprep.mubr.f32.mxu0 0.0
      %1595 = vmatmul.mubr.f32.gmra.mrb[0].mxu0 %v1501
      %v1596 = vpop.f32.mrb[0].mxu0
      %v1597 = vadd.f32 0.0, %v1596
      %v1598 = vpop.f32.mrb[0].mxu0
      %1599 = vmatprep.mubr.f32.mxu0 0.0
      %1600 = vmatmul.mubr.f32.gmra.mrb[0].mxu0 %v1504
      %v1601 = vpop.f32.mrb[0].mxu0
      %v1602 = vadd.f32 0.0, %v1601
      %v1603 = vpop.f32.mrb[0].mxu0
      %1604 = vmatprep.mubr.f32.mxu0 0.0
      %1605 = vmatmul.mubr.f32.gmra.mrb[0].mxu0 %v1507
      %v1606 = vpop.f32.mrb[0].mxu0
      %v1607 = vadd.f32 0.0, %v1606
      %v1608 = vpop.f32.mrb[0].mxu0
      %1609 = vmatprep.mubr.f32.mxu0 0.0
      %1610 = vmatmul.mubr.f32.gmra.mrb[0].mxu0 %v1510
      %v1611 = vpop.f32.mrb[0].mxu0
      %v1612 = vadd.f32 0.0, %v1611
      %v1613 = vpop.f32.mrb[0].mxu0
      %1614 = vmatprep.mubr.f32.mxu0 0.0
      %1615 = vmatmul.mubr.f32.gmra.mrb[0].mxu0 %v1513
      %v1616 = vpop.f32.mrb[0].mxu0
      %v1617 = vadd.f32 0.0, %v1616
      %v1618 = vpop.f32.mrb[0].mxu0
      %1619 = vmatprep.mubr.f32.mxu0 0.0
      %1620 = vmatmul.mubr.f32.gmra.mrb[0].mxu0 %v1516
      %v1621 = vpop.f32.mrb[0].mxu0
      %v1622 = vadd.f32 0.0, %v1621
      %v1623 = vpop.f32.mrb[0].mxu0
      %1624 = vmatprep.mubr.f32.mxu0 0.0
      %1625 = vmatmul.mubr.f32.gmra.mrb[0].mxu0 %v1519
      %v1626 = vpop.f32.mrb[0].mxu0
      %v1627 = vadd.f32 0.0, %v1626
      %v1628 = vpop.f32.mrb[0].mxu0
      %1629 = vdwg.mxu0
      %v1630 = vpack.c.bf16 %v1597, %v1592
      %v1631 = vpack.c.bf16 %v1607, %v1602
      %v1632 = vpack.c.bf16 %v1617, %v1612
      %v1633 = vpack.c.bf16 %v1627, %v1622
      %v1650 = vunpack.c.l.b16 %v382
      %v1651 = vunpack.c.h.b16 %v382
      %v1652 = vunpack.c.l.b16 %v383
      %v1653 = vunpack.c.h.b16 %v383
      %v1654 = vunpack.c.l.b16 %v384
      %v1655 = vunpack.c.h.b16 %v384
      %v1656 = vunpack.c.l.b16 %v385
      %v1657 = vunpack.c.h.b16 %v385
      %v1658 = vunpack.c.l.b16 %v386
      %v1659 = vunpack.c.h.b16 %v386
      %v1660 = vunpack.c.l.b16 %v387
      %v1661 = vunpack.c.h.b16 %v387
      %v1662 = vunpack.c.l.b16 %v388
      %v1663 = vunpack.c.h.b16 %v388
      %v1664 = vunpack.c.l.b16 %v389
      %v1665 = vunpack.c.h.b16 %v389
      %v1666 = vunpack.c.l.b16 %v390
      %v1667 = vunpack.c.h.b16 %v390
      %v1668 = vunpack.c.l.b16 %v391
      %v1669 = vunpack.c.h.b16 %v391
      %v1670 = vunpack.c.l.b16 %v392
      %v1671 = vunpack.c.h.b16 %v392
      %v1672 = vunpack.c.l.b16 %v393
      %v1673 = vunpack.c.h.b16 %v393
      %v1674 = vunpack.c.l.b16 %v394
      %v1675 = vunpack.c.h.b16 %v394
      %v1676 = vunpack.c.l.b16 %v395
      %v1677 = vunpack.c.h.b16 %v395
      %v1678 = vunpack.c.l.b16 %v396
      %v1679 = vunpack.c.h.b16 %v396
      %v1680 = vunpack.c.l.b16 %v397
      %v1681 = vunpack.c.h.b16 %v397
      %v1682 = vpack.c.b16 %v1652, %v1650
      %v1683 = vpack.c.b16 %v1653, %v1651
      %v1684 = vpack.c.b16 %v1656, %v1654
      %v1685 = vpack.c.b16 %v1657, %v1655
      %v1686 = vpack.c.b16 %v1660, %v1658
      %v1687 = vpack.c.b16 %v1661, %v1659
      %v1688 = vpack.c.b16 %v1664, %v1662
      %v1689 = vpack.c.b16 %v1665, %v1663
      %v1690 = vpack.c.b16 %v1668, %v1666
      %v1691 = vpack.c.b16 %v1669, %v1667
      %v1692 = vpack.c.b16 %v1672, %v1670
      %v1693 = vpack.c.b16 %v1673, %v1671
      %v1694 = vpack.c.b16 %v1676, %v1674
      %v1695 = vpack.c.b16 %v1677, %v1675
      %v1696 = vpack.c.b16 %v1680, %v1678
      %v1697 = vpack.c.b16 %v1681, %v1679
      %1714 = vmatprep.subr.bf16.mxu0 %v1683
      %1715 = vmatpush1.bf16.msra.mxu0 %v1682
      %1716 = vmatprep.subr.bf16.mxu0 %v1685
      %1717 = vmatpush1.bf16.msra.mxu0 %v1684
      %1718 = vmatprep.subr.bf16.mxu0 %v1687
      %1719 = vmatpush1.bf16.msra.mxu0 %v1686
      %1720 = vmatprep.subr.bf16.mxu0 %v1689
      %1721 = vmatpush1.bf16.msra.mxu0 %v1688
      %1722 = vmatprep.subr.bf16.mxu0 %v1691
      %1723 = vmatpush1.bf16.msra.mxu0 %v1690
      %1724 = vmatprep.subr.bf16.mxu0 %v1693
      %1725 = vmatpush1.bf16.msra.mxu0 %v1692
      %1726 = vmatprep.subr.bf16.mxu0 %v1695
      %1727 = vmatpush1.bf16.msra.mxu0 %v1694
      %1728 = vmatprep.subr.bf16.mxu0 %v1697
      %1729 = vmatpush1.bf16.msra.mxu0 %v1696
      %1730 = vmatprep.subr.bf16.mxu0 0
      %1731 = vmatpush1.bf16.msra.mxu0 0
      %1732 = vmatprep.subr.bf16.mxu0 0
      %1733 = vmatpush1.bf16.msra.mxu0 0
      %1734 = vmatprep.subr.bf16.mxu0 0
      %1735 = vmatpush1.bf16.msra.mxu0 0
      %1736 = vmatprep.subr.bf16.mxu0 0
      %1737 = vmatpush1.bf16.msra.mxu0 0
      %1738 = vmatprep.subr.bf16.mxu0 0
      %1739 = vmatpush1.bf16.msra.mxu0 0
      %1740 = vmatprep.subr.bf16.mxu0 0
      %1741 = vmatpush1.bf16.msra.mxu0 0
      %1742 = vmatprep.subr.bf16.mxu0 0
      %1743 = vmatpush1.bf16.msra.mxu0 0
      %1744 = vmatprep.subr.bf16.mxu0 0
      %1745 = vmatpush1.bf16.msra.mxu0 0
      %1746 = vmatprep.mubr.bf16.mxu0 0
      %1747 = vmatmul.mubr.bf16.gmra.mrb[0].mxu0 %v1630
      %v1748 = vpop.f32.mrb[0].mxu0
      %v1749 = vadd.f32 0.0, %v1748
      %v1750 = vpop.f32.mrb[0].mxu0
      %v1751 = vadd.f32 0.0, %v1750
      %v1752 = vpop.f32.mrb[0].mxu0
      %v1753 = vadd.f32 0.0, %v1752
      %v1754 = vpop.f32.mrb[0].mxu0
      %v1755 = vadd.f32 0.0, %v1754
      %1756 = vmatprep.mubr.bf16.mxu0 0
      %1757 = vmatmul.mubr.bf16.gmra.mrb[0].mxu0 %v1631
      %v1758 = vpop.f32.mrb[0].mxu0
      %v1759 = vadd.f32 0.0, %v1758
      %v1760 = vpop.f32.mrb[0].mxu0
      %v1761 = vadd.f32 0.0, %v1760
      %v1762 = vpop.f32.mrb[0].mxu0
      %v1763 = vadd.f32 0.0, %v1762
      %v1764 = vpop.f32.mrb[0].mxu0
      %v1765 = vadd.f32 0.0, %v1764
      %1766 = vmatprep.mubr.bf16.mxu0 0
      %1767 = vmatmul.mubr.bf16.gmra.mrb[0].mxu0 %v1632
      %v1768 = vpop.f32.mrb[0].mxu0
      %v1769 = vadd.f32 0.0, %v1768
      %v1770 = vpop.f32.mrb[0].mxu0
      %v1771 = vadd.f32 0.0, %v1770
      %v1772 = vpop.f32.mrb[0].mxu0
      %v1773 = vadd.f32 0.0, %v1772
      %v1774 = vpop.f32.mrb[0].mxu0
      %v1775 = vadd.f32 0.0, %v1774
      %1776 = vmatprep.mubr.bf16.mxu0 0
      %1777 = vmatmul.mubr.bf16.gmra.mrb[0].mxu0 %v1633
      %v1778 = vpop.f32.mrb[0].mxu0
      %v1779 = vadd.f32 0.0, %v1778
      %v1780 = vpop.f32.mrb[0].mxu0
      %v1781 = vadd.f32 0.0, %v1780
      %v1782 = vpop.f32.mrb[0].mxu0
      %v1783 = vadd.f32 0.0, %v1782
      %v1784 = vpop.f32.mrb[0].mxu0
      %v1785 = vadd.f32 0.0, %v1784
      %1786 = vdwg.mxu0
      %v1787 = vadd.f32 %v1410, %v1749
      %v1788 = vadd.f32 %v1412, %v1751
      %v1789 = vadd.f32 %v1414, %v1753
      %v1790 = vadd.f32 %v1416, %v1755
      %v1791 = vadd.f32 %v1420, %v1759
      %v1792 = vadd.f32 %v1422, %v1761
      %v1793 = vadd.f32 %v1424, %v1763
      %v1794 = vadd.f32 %v1426, %v1765
      %v1795 = vadd.f32 %v1430, %v1769
      %v1796 = vadd.f32 %v1432, %v1771
      %v1797 = vadd.f32 %v1434, %v1773
      %v1798 = vadd.f32 %v1436, %v1775
      %v1799 = vadd.f32 %v1440, %v1779
      %v1800 = vadd.f32 %v1442, %v1781
      %v1801 = vadd.f32 %v1444, %v1783
      %v1802 = vadd.f32 %v1446, %v1785
      %1803 = vset.pattern.permute.xlu0 5
      %1804 = vperm.xlu0 %1803, %v334
      %v1805 = vpop.permute.xlu0 %1804
      %1806 = vset.pattern.permute.xlu0 5
      %1807 = vperm.xlu0 %1806, %v335
      %v1808 = vpop.permute.xlu0 %1807
      %1809 = vset.pattern.permute.xlu0 5
      %1810 = vperm.xlu0 %1809, %v336
      %v1811 = vpop.permute.xlu0 %1810
      %1812 = vset.pattern.permute.xlu0 5
      %1813 = vperm.xlu0 %1812, %v337
      %v1814 = vpop.permute.xlu0 %1813
      %1815 = vset.pattern.permute.xlu0 5
      %1816 = vperm.xlu0 %1815, %v338
      %v1817 = vpop.permute.xlu0 %1816
      %1818 = vset.pattern.permute.xlu0 5
      %1819 = vperm.xlu0 %1818, %v339
      %v1820 = vpop.permute.xlu0 %1819
      %1821 = vset.pattern.permute.xlu0 5
      %1822 = vperm.xlu0 %1821, %v340
      %v1823 = vpop.permute.xlu0 %1822
      %1824 = vset.pattern.permute.xlu0 5
      %1825 = vperm.xlu0 %1824, %v341
      %v1826 = vpop.permute.xlu0 %1825
      %vm1827 = vcmp.eq.s32.totalorder %v1805, %v415
      %vm1828 = vcmp.eq.s32.totalorder %v1808, %v415
      %vm1829 = vcmp.eq.s32.totalorder %v1811, %v415
      %vm1830 = vcmp.eq.s32.totalorder %v1814, %v415
      %vm1831 = vcmp.eq.s32.totalorder %v1817, %v415
      %vm1832 = vcmp.eq.s32.totalorder %v1820, %v415
      %vm1833 = vcmp.eq.s32.totalorder %v1823, %v415
      %vm1834 = vcmp.eq.s32.totalorder %v1826, %v415
      %v1835 = vsel %vm1827, 1, 0
      %v1836 = vsel %vm1828, 1, 0
      %v1837 = vsel %vm1829, 1, 0
      %v1838 = vsel %vm1830, 1, 0
      %v1839 = vsel %vm1831, 1, 0
      %v1840 = vsel %vm1832, 1, 0
      %v1841 = vsel %vm1833, 1, 0
      %v1842 = vsel %vm1834, 1, 0
      %v1843 = vcvt.s32.f32 %v1835
      %v1844 = vcvt.s32.f32 %v1836
      %v1845 = vcvt.s32.f32 %v1837
      %v1846 = vcvt.s32.f32 %v1838
      %v1847 = vcvt.s32.f32 %v1839
      %v1848 = vcvt.s32.f32 %v1840
      %v1849 = vcvt.s32.f32 %v1841
      %v1850 = vcvt.s32.f32 %v1842
      %v1852 = vsel %vm1496, %v1843, 0
      %v1855 = vsel %vm1496, %v1844, 0
      %v1858 = vsel %vm1496, %v1845, 0
      %v1861 = vsel %vm1496, %v1846, 0
      %v1864 = vsel %vm1496, %v1847, 0
      %v1867 = vsel %vm1496, %v1848, 0
      %v1870 = vsel %vm1496, %v1849, 0
      %v1873 = vsel %vm1496, %v1850, 0
      %1875 = vmatprep.subr.mxu0 0.0
      %1876 = vmatpush1.msra.mxu0 %v348
      %1877 = vmatprep.subr.mxu0 0.0
      %1878 = vmatpush1.msra.mxu0 %v1523
      %1879 = vmatprep.subr.mxu0 0.0
      %1880 = vmatpush1.msra.mxu0 0.0
      %1881 = vmatprep.subr.mxu0 0.0
      %1882 = vmatpush1.msra.mxu0 0.0
      %1883 = vmatprep.subr.mxu0 0.0
      %1884 = vmatpush1.msra.mxu0 0.0
      %1885 = vmatprep.subr.mxu0 0.0
      %1886 = vmatpush1.msra.mxu0 0.0
      %1887 = vmatprep.subr.mxu0 0.0
      %1888 = vmatpush1.msra.mxu0 0.0
      %1889 = vmatprep.subr.mxu0 0.0
      %1890 = vmatpush1.msra.mxu0 0.0
      %1891 = vmatprep.subr.mxu0 0.0
      %1892 = vmatpush1.msra.mxu0 0.0
      %1893 = vmatprep.subr.mxu0 0.0
      %1894 = vmatpush1.msra.mxu0 0.0
      %1895 = vmatprep.subr.mxu0 0.0
      %1896 = vmatpush1.msra.mxu0 0.0
      %1897 = vmatprep.subr.mxu0 0.0
      %1898 = vmatpush1.msra.mxu0 0.0
      %1899 = vmatprep.subr.mxu0 0.0
      %1900 = vmatpush1.msra.mxu0 0.0
      %1901 = vmatprep.subr.mxu0 0.0
      %1902 = vmatpush1.msra.mxu0 0.0
      %1903 = vmatprep.subr.mxu0 0.0
      %1904 = vmatpush1.msra.mxu0 0.0
      %1905 = vmatprep.subr.mxu0 0.0
      %1906 = vmatpush1.msra.mxu0 0.0
      %1907 = vmatprep.subr.mxu0 0.0
      %1908 = vmatpush1.msra.mxu0 0.0
      %1909 = vmatprep.subr.mxu0 0.0
      %1910 = vmatpush1.msra.mxu0 0.0
      %1911 = vmatprep.subr.mxu0 0.0
      %1912 = vmatpush1.msra.mxu0 0.0
      %1913 = vmatprep.subr.mxu0 0.0
      %1914 = vmatpush1.msra.mxu0 0.0
      %1915 = vmatprep.subr.mxu0 0.0
      %1916 = vmatpush1.msra.mxu0 0.0
      %1917 = vmatprep.subr.mxu0 0.0
      %1918 = vmatpush1.msra.mxu0 0.0
      %1919 = vmatprep.subr.mxu0 0.0
      %1920 = vmatpush1.msra.mxu0 0.0
      %1921 = vmatprep.subr.mxu0 0.0
      %1922 = vmatpush1.msra.mxu0 0.0
      %1923 = vmatprep.subr.mxu0 0.0
      %1924 = vmatpush1.msra.mxu0 0.0
      %1925 = vmatprep.subr.mxu0 0.0
      %1926 = vmatpush1.msra.mxu0 0.0
      %1927 = vmatprep.subr.mxu0 0.0
      %1928 = vmatpush1.msra.mxu0 0.0
      %1929 = vmatprep.subr.mxu0 0.0
      %1930 = vmatpush1.msra.mxu0 0.0
      %1931 = vmatprep.subr.mxu0 0.0
      %1932 = vmatpush1.msra.mxu0 0.0
      %1933 = vmatprep.subr.mxu0 0.0
      %1934 = vmatpush1.msra.mxu0 0.0
      %1935 = vmatprep.subr.mxu0 0.0
      %1936 = vmatpush1.msra.mxu0 0.0
      %1937 = vmatprep.subr.mxu0 0.0
      %1938 = vmatpush1.msra.mxu0 0.0
      %1939 = vmatprep.mubr.f32.mxu0 0.0
      %1940 = vmatmul.mubr.f32.gmra.mrb[0].mxu0 %v1852
      %v1941 = vpop.f32.mrb[0].mxu0
      %v1942 = vadd.f32 0.0, %v1941
      %v1943 = vpop.f32.mrb[0].mxu0
      %1944 = vmatprep.mubr.f32.mxu0 0.0
      %1945 = vmatmul.mubr.f32.gmra.mrb[0].mxu0 %v1855
      %v1946 = vpop.f32.mrb[0].mxu0
      %v1947 = vadd.f32 0.0, %v1946
      %v1948 = vpop.f32.mrb[0].mxu0
      %1949 = vmatprep.mubr.f32.mxu0 0.0
      %1950 = vmatmul.mubr.f32.gmra.mrb[0].mxu0 %v1858
      %v1951 = vpop.f32.mrb[0].mxu0
      %v1952 = vadd.f32 0.0, %v1951
      %v1953 = vpop.f32.mrb[0].mxu0
      %1954 = vmatprep.mubr.f32.mxu0 0.0
      %1955 = vmatmul.mubr.f32.gmra.mrb[0].mxu0 %v1861
      %v1956 = vpop.f32.mrb[0].mxu0
      %v1957 = vadd.f32 0.0, %v1956
      %v1958 = vpop.f32.mrb[0].mxu0
      %1959 = vmatprep.mubr.f32.mxu0 0.0
      %1960 = vmatmul.mubr.f32.gmra.mrb[0].mxu0 %v1864
      %v1961 = vpop.f32.mrb[0].mxu0
      %v1962 = vadd.f32 0.0, %v1961
      %v1963 = vpop.f32.mrb[0].mxu0
      %1964 = vmatprep.mubr.f32.mxu0 0.0
      %1965 = vmatmul.mubr.f32.gmra.mrb[0].mxu0 %v1867
      %v1966 = vpop.f32.mrb[0].mxu0
      %v1967 = vadd.f32 0.0, %v1966
      %v1968 = vpop.f32.mrb[0].mxu0
      %1969 = vmatprep.mubr.f32.mxu0 0.0
      %1970 = vmatmul.mubr.f32.gmra.mrb[0].mxu0 %v1870
      %v1971 = vpop.f32.mrb[0].mxu0
      %v1972 = vadd.f32 0.0, %v1971
      %v1973 = vpop.f32.mrb[0].mxu0
      %1974 = vmatprep.mubr.f32.mxu0 0.0
      %1975 = vmatmul.mubr.f32.gmra.mrb[0].mxu0 %v1873
      %v1976 = vpop.f32.mrb[0].mxu0
      %v1977 = vadd.f32 0.0, %v1976
      %v1978 = vpop.f32.mrb[0].mxu0
      %1979 = vdwg.mxu0
      %v1980 = vpack.c.bf16 %v1947, %v1942
      %v1981 = vpack.c.bf16 %v1957, %v1952
      %v1982 = vpack.c.bf16 %v1967, %v1962
      %v1983 = vpack.c.bf16 %v1977, %v1972
      %v2000 = vunpack.c.l.b16 %v398
      %v2001 = vunpack.c.h.b16 %v398
      %v2002 = vunpack.c.l.b16 %v399
      %v2003 = vunpack.c.h.b16 %v399
      %v2004 = vunpack.c.l.b16 %v400
      %v2005 = vunpack.c.h.b16 %v400
      %v2006 = vunpack.c.l.b16 %v401
      %v2007 = vunpack.c.h.b16 %v401
      %v2008 = vunpack.c.l.b16 %v402
      %v2009 = vunpack.c.h.b16 %v402
      %v2010 = vunpack.c.l.b16 %v403
      %v2011 = vunpack.c.h.b16 %v403
      %v2012 = vunpack.c.l.b16 %v404
      %v2013 = vunpack.c.h.b16 %v404
      %v2014 = vunpack.c.l.b16 %v405
      %v2015 = vunpack.c.h.b16 %v405
      %v2016 = vunpack.c.l.b16 %v406
      %v2017 = vunpack.c.h.b16 %v406
      %v2018 = vunpack.c.l.b16 %v407
      %v2019 = vunpack.c.h.b16 %v407
      %v2020 = vunpack.c.l.b16 %v408
      %v2021 = vunpack.c.h.b16 %v408
      %v2022 = vunpack.c.l.b16 %v409
      %v2023 = vunpack.c.h.b16 %v409
      %v2024 = vunpack.c.l.b16 %v410
      %v2025 = vunpack.c.h.b16 %v410
      %v2026 = vunpack.c.l.b16 %v411
      %v2027 = vunpack.c.h.b16 %v411
      %v2028 = vunpack.c.l.b16 %v412
      %v2029 = vunpack.c.h.b16 %v412
      %v2030 = vunpack.c.l.b16 %v413
      %v2031 = vunpack.c.h.b16 %v413
      %v2032 = vpack.c.b16 %v2002, %v2000
      %v2033 = vpack.c.b16 %v2003, %v2001
      %v2034 = vpack.c.b16 %v2006, %v2004
      %v2035 = vpack.c.b16 %v2007, %v2005
      %v2036 = vpack.c.b16 %v2010, %v2008
      %v2037 = vpack.c.b16 %v2011, %v2009
      %v2038 = vpack.c.b16 %v2014, %v2012
      %v2039 = vpack.c.b16 %v2015, %v2013
      %v2040 = vpack.c.b16 %v2018, %v2016
      %v2041 = vpack.c.b16 %v2019, %v2017
      %v2042 = vpack.c.b16 %v2022, %v2020
      %v2043 = vpack.c.b16 %v2023, %v2021
      %v2044 = vpack.c.b16 %v2026, %v2024
      %v2045 = vpack.c.b16 %v2027, %v2025
      %v2046 = vpack.c.b16 %v2030, %v2028
      %v2047 = vpack.c.b16 %v2031, %v2029
      %2064 = vmatprep.subr.bf16.mxu0 %v2033
      %2065 = vmatpush1.bf16.msra.mxu0 %v2032
      %2066 = vmatprep.subr.bf16.mxu0 %v2035
      %2067 = vmatpush1.bf16.msra.mxu0 %v2034
      %2068 = vmatprep.subr.bf16.mxu0 %v2037
      %2069 = vmatpush1.bf16.msra.mxu0 %v2036
      %2070 = vmatprep.subr.bf16.mxu0 %v2039
      %2071 = vmatpush1.bf16.msra.mxu0 %v2038
      %2072 = vmatprep.subr.bf16.mxu0 %v2041
      %2073 = vmatpush1.bf16.msra.mxu0 %v2040
      %2074 = vmatprep.subr.bf16.mxu0 %v2043
      %2075 = vmatpush1.bf16.msra.mxu0 %v2042
      %2076 = vmatprep.subr.bf16.mxu0 %v2045
      %2077 = vmatpush1.bf16.msra.mxu0 %v2044
      %2078 = vmatprep.subr.bf16.mxu0 %v2047
      %2079 = vmatpush1.bf16.msra.mxu0 %v2046
      %2080 = vmatprep.subr.bf16.mxu0 0
      %2081 = vmatpush1.bf16.msra.mxu0 0
      %2082 = vmatprep.subr.bf16.mxu0 0
      %2083 = vmatpush1.bf16.msra.mxu0 0
      %2084 = vmatprep.subr.bf16.mxu0 0
      %2085 = vmatpush1.bf16.msra.mxu0 0
      %2086 = vmatprep.subr.bf16.mxu0 0
      %2087 = vmatpush1.bf16.msra.mxu0 0
      %2088 = vmatprep.subr.bf16.mxu0 0
      %2089 = vmatpush1.bf16.msra.mxu0 0
      %2090 = vmatprep.subr.bf16.mxu0 0
      %2091 = vmatpush1.bf16.msra.mxu0 0
      %2092 = vmatprep.subr.bf16.mxu0 0
      %2093 = vmatpush1.bf16.msra.mxu0 0
      %2094 = vmatprep.subr.bf16.mxu0 0
      %2095 = vmatpush1.bf16.msra.mxu0 0
      %2096 = vmatprep.mubr.bf16.mxu0 0
      %2097 = vmatmul.mubr.bf16.gmra.mrb[0].mxu0 %v1980
      %v2098 = vpop.f32.mrb[0].mxu0
      %v2099 = vadd.f32 0.0, %v2098
      %v2100 = vpop.f32.mrb[0].mxu0
      %v2101 = vadd.f32 0.0, %v2100
      %v2102 = vpop.f32.mrb[0].mxu0
      %v2103 = vadd.f32 0.0, %v2102
      %v2104 = vpop.f32.mrb[0].mxu0
      %v2105 = vadd.f32 0.0, %v2104
      %2106 = vmatprep.mubr.bf16.mxu0 0
      %2107 = vmatmul.mubr.bf16.gmra.mrb[0].mxu0 %v1981
      %v2108 = vpop.f32.mrb[0].mxu0
      %v2109 = vadd.f32 0.0, %v2108
      %v2110 = vpop.f32.mrb[0].mxu0
      %v2111 = vadd.f32 0.0, %v2110
      %v2112 = vpop.f32.mrb[0].mxu0
      %v2113 = vadd.f32 0.0, %v2112
      %v2114 = vpop.f32.mrb[0].mxu0
      %v2115 = vadd.f32 0.0, %v2114
      %2116 = vmatprep.mubr.bf16.mxu0 0
      %2117 = vmatmul.mubr.bf16.gmra.mrb[0].mxu0 %v1982
      %v2118 = vpop.f32.mrb[0].mxu0
      %v2119 = vadd.f32 0.0, %v2118
      %v2120 = vpop.f32.mrb[0].mxu0
      %v2121 = vadd.f32 0.0, %v2120
      %v2122 = vpop.f32.mrb[0].mxu0
      %v2123 = vadd.f32 0.0, %v2122
      %v2124 = vpop.f32.mrb[0].mxu0
      %v2125 = vadd.f32 0.0, %v2124
      %2126 = vmatprep.mubr.bf16.mxu0 0
      %2127 = vmatmul.mubr.bf16.gmra.mrb[0].mxu0 %v1983
      %v2128 = vpop.f32.mrb[0].mxu0
      %v2129 = vadd.f32 0.0, %v2128
      %v2130 = vpop.f32.mrb[0].mxu0
      %v2131 = vadd.f32 0.0, %v2130
      %v2132 = vpop.f32.mrb[0].mxu0
      %v2133 = vadd.f32 0.0, %v2132
      %v2134 = vpop.f32.mrb[0].mxu0
      %v2135 = vadd.f32 0.0, %v2134
      %2136 = vdwg.mxu0
      %v2137 = vadd.f32 %v1787, %v2099
      %v2138 = vadd.f32 %v1788, %v2101
      %v2139 = vadd.f32 %v1789, %v2103
      %v2140 = vadd.f32 %v1790, %v2105
      %v2141 = vadd.f32 %v1791, %v2109
      %v2142 = vadd.f32 %v1792, %v2111
      %v2143 = vadd.f32 %v1793, %v2113
      %v2144 = vadd.f32 %v1794, %v2115
      %v2145 = vadd.f32 %v1795, %v2119
      %v2146 = vadd.f32 %v1796, %v2121
      %v2147 = vadd.f32 %v1797, %v2123
      %v2148 = vadd.f32 %v1798, %v2125
      %v2149 = vadd.f32 %v1799, %v2129
      %v2150 = vadd.f32 %v1800, %v2131
      %v2151 = vadd.f32 %v1801, %v2133
      %v2152 = vadd.f32 %v1802, %v2135
      %v2153 = vld [vmem:[%s6] sm:$0x3]
      %v2155 = vlaneseq
      %v2156 = vshrl.u32 %v2155, 7
      %v2157 = vsub.s32 0, %v2156
      %v2158 = vrot.slane %v2153, %v2157
      %v2159 = vlaneseq
      %v2160 = vshrl.u32 %v2159, 7
      %v2161 = vsub.s32 1, %v2160
      %v2162 = vrot.slane %v2153, %v2161
      %v2165 = vadd.f32 %v2137, %v2158
      %v2166 = vadd.f32 %v2138, %v2162
      %v2167 = vadd.f32 %v2139, %v2158
      %v2168 = vadd.f32 %v2140, %v2162
      %v2169 = vadd.f32 %v2141, %v2158
      %v2170 = vadd.f32 %v2142, %v2162
      %v2171 = vadd.f32 %v2143, %v2158
      %v2172 = vadd.f32 %v2144, %v2162
      %v2173 = vadd.f32 %v2145, %v2158
      %v2174 = vadd.f32 %v2146, %v2162
      %v2175 = vadd.f32 %v2147, %v2158
      %v2176 = vadd.f32 %v2148, %v2162
      %v2177 = vadd.f32 %v2149, %v2158
      %v2178 = vadd.f32 %v2150, %v2162
      %v2179 = vadd.f32 %v2151, %v2158
      %v2180 = vadd.f32 %v2152, %v2162
      %v2181 = vmax.f32 %v2165, 0.0
      %v2182 = vmax.f32 %v2166, 0.0
      %v2183 = vmax.f32 %v2167, 0.0
      %v2184 = vmax.f32 %v2168, 0.0
      %v2185 = vmax.f32 %v2169, 0.0
      %v2186 = vmax.f32 %v2170, 0.0
      %v2187 = vmax.f32 %v2171, 0.0
      %v2188 = vmax.f32 %v2172, 0.0
      %v2189 = vmax.f32 %v2173, 0.0
      %v2190 = vmax.f32 %v2174, 0.0
      %v2191 = vmax.f32 %v2175, 0.0
      %v2192 = vmax.f32 %v2176, 0.0
      %v2193 = vmax.f32 %v2177, 0.0
      %v2194 = vmax.f32 %v2178, 0.0
      %v2195 = vmax.f32 %v2179, 0.0
      %v2196 = vmax.f32 %v2180, 0.0
      %v2197 = vpack.c.bf16 %v2183, %v2181
      %v2198 = vpack.c.bf16 %v2184, %v2182
      %v2199 = vpack.c.bf16 %v2187, %v2185
      %v2200 = vpack.c.bf16 %v2188, %v2186
      %v2201 = vpack.c.bf16 %v2191, %v2189
      %v2202 = vpack.c.bf16 %v2192, %v2190
      %v2203 = vpack.c.bf16 %v2195, %v2193
      %v2204 = vpack.c.bf16 %v2196, %v2194
      %v2205 = vld [vmem:[%s7] sm:$0xf]
      %v2206 = vld [vmem:[%s7 + $0x4] sm:$0xf]
      %v2207 = vld [vmem:[%s7 + $0x8] sm:$0xf]
      %v2208 = vld [vmem:[%s7 + $0xc] sm:$0xf]
      %v2209 = vld [vmem:[%s7 + $0x10] sm:$0xf]
      %v2210 = vld [vmem:[%s7 + $0x14] sm:$0xf]
      %v2211 = vld [vmem:[%s7 + $0x18] sm:$0xf]
      %v2212 = vld [vmem:[%s7 + $0x1c] sm:$0xf]
      %v2213 = vld [vmem:[%s7 + $0x20] sm:$0xf]
      %v2214 = vld [vmem:[%s7 + $0x24] sm:$0xf]
      %v2215 = vld [vmem:[%s7 + $0x28] sm:$0xf]
      %v2216 = vld [vmem:[%s7 + $0x2c] sm:$0xf]
      %v2217 = vld [vmem:[%s7 + $0x30] sm:$0xf]
      %v2218 = vld [vmem:[%s7 + $0x34] sm:$0xf]
      %v2219 = vld [vmem:[%s7 + $0x38] sm:$0xf]
      %v2220 = vld [vmem:[%s7 + $0x3c] sm:$0xf]
      %v2221 = vld [vmem:[%s7 + $0x40] sm:$0xf]
      %v2222 = vld [vmem:[%s7 + $0x44] sm:$0xf]
      %v2223 = vld [vmem:[%s7 + $0x48] sm:$0xf]
      %v2224 = vld [vmem:[%s7 + $0x4c] sm:$0xf]
      %v2225 = vld [vmem:[%s7 + $0x50] sm:$0xf]
      %v2226 = vld [vmem:[%s7 + $0x54] sm:$0xf]
      %v2227 = vld [vmem:[%s7 + $0x58] sm:$0xf]
      %v2228 = vld [vmem:[%s7 + $0x5c] sm:$0xf]
      %v2229 = vld [vmem:[%s7 + $0x60] sm:$0xf]
      %v2230 = vld [vmem:[%s7 + $0x64] sm:$0xf]
      %v2231 = vld [vmem:[%s7 + $0x68] sm:$0xf]
      %v2232 = vld [vmem:[%s7 + $0x6c] sm:$0xf]
      %v2233 = vld [vmem:[%s7 + $0x70] sm:$0xf]
      %v2234 = vld [vmem:[%s7 + $0x74] sm:$0xf]
      %v2235 = vld [vmem:[%s7 + $0x78] sm:$0xf]
      %v2236 = vld [vmem:[%s7 + $0x7c] sm:$0xf]
      %v2237 = vld [vmem:[%s8] sm:$0x1]
      %v2239 = vlaneseq
      %v2240 = vshrl.u32 %v2239, 7
      %v2241 = vsub.s32 0, %v2240
      %v2242 = vrot.slane %v2237, %v2241
      %v2276 = vunpack.c.l.b16 %v2205
      %v2277 = vunpack.c.l.b16 %v2206
      %v2278 = vunpack.c.l.b16 %v2207
      %v2279 = vunpack.c.l.b16 %v2208
      %v2280 = vunpack.c.l.b16 %v2209
      %v2281 = vunpack.c.l.b16 %v2210
      %v2282 = vunpack.c.l.b16 %v2211
      %v2283 = vunpack.c.l.b16 %v2212
      %v2284 = vunpack.c.l.b16 %v2213
      %v2285 = vunpack.c.l.b16 %v2214
      %v2286 = vunpack.c.l.b16 %v2215
      %v2287 = vunpack.c.l.b16 %v2216
      %v2288 = vunpack.c.l.b16 %v2217
      %v2289 = vunpack.c.l.b16 %v2218
      %v2290 = vunpack.c.l.b16 %v2219
      %v2291 = vunpack.c.l.b16 %v2220
      %v2292 = vunpack.c.l.b16 %v2221
      %v2293 = vunpack.c.l.b16 %v2222
      %v2294 = vunpack.c.l.b16 %v2223
      %v2295 = vunpack.c.l.b16 %v2224
      %v2296 = vunpack.c.l.b16 %v2225
      %v2297 = vunpack.c.l.b16 %v2226
      %v2298 = vunpack.c.l.b16 %v2227
      %v2299 = vunpack.c.l.b16 %v2228
      %v2300 = vunpack.c.l.b16 %v2229
      %v2301 = vunpack.c.l.b16 %v2230
      %v2302 = vunpack.c.l.b16 %v2231
      %v2303 = vunpack.c.l.b16 %v2232
      %v2304 = vunpack.c.l.b16 %v2233
      %v2305 = vunpack.c.l.b16 %v2234
      %v2306 = vunpack.c.l.b16 %v2235
      %v2307 = vunpack.c.l.b16 %v2236
      %v2308 = vpack.c.b16 %v2277, %v2276
      %v2309 = vpack.c.b16 %v2279, %v2278
      %v2310 = vpack.c.b16 %v2281, %v2280
      %v2311 = vpack.c.b16 %v2283, %v2282
      %v2312 = vpack.c.b16 %v2285, %v2284
      %v2313 = vpack.c.b16 %v2287, %v2286
      %v2314 = vpack.c.b16 %v2289, %v2288
      %v2315 = vpack.c.b16 %v2291, %v2290
      %v2316 = vpack.c.b16 %v2293, %v2292
      %v2317 = vpack.c.b16 %v2295, %v2294
      %v2318 = vpack.c.b16 %v2297, %v2296
      %v2319 = vpack.c.b16 %v2299, %v2298
      %v2320 = vpack.c.b16 %v2301, %v2300
      %v2321 = vpack.c.b16 %v2303, %v2302
      %v2322 = vpack.c.b16 %v2305, %v2304
      %v2323 = vpack.c.b16 %v2307, %v2306
      %2340 = vmatprep.subr.bf16.mxu0 0
      %2341 = vmatpush1.bf16.msra.mxu0 %v2308
      %2342 = vmatprep.subr.bf16.mxu0 0
      %2343 = vmatpush1.bf16.msra.mxu0 %v2309
      %2344 = vmatprep.subr.bf16.mxu0 0
      %2345 = vmatpush1.bf16.msra.mxu0 %v2310
      %2346 = vmatprep.subr.bf16.mxu0 0
      %2347 = vmatpush1.bf16.msra.mxu0 %v2311
      %2348 = vmatprep.subr.bf16.mxu0 0
      %2349 = vmatpush1.bf16.msra.mxu0 %v2312
      %2350 = vmatprep.subr.bf16.mxu0 0
      %2351 = vmatpush1.bf16.msra.mxu0 %v2313
      %2352 = vmatprep.subr.bf16.mxu0 0
      %2353 = vmatpush1.bf16.msra.mxu0 %v2314
      %2354 = vmatprep.subr.bf16.mxu0 0
      %2355 = vmatpush1.bf16.msra.mxu0 %v2315
      %2356 = vmatprep.subr.bf16.mxu0 0
      %2357 = vmatpush1.bf16.msra.mxu0 %v2316
      %2358 = vmatprep.subr.bf16.mxu0 0
      %2359 = vmatpush1.bf16.msra.mxu0 %v2317
      %2360 = vmatprep.subr.bf16.mxu0 0
      %2361 = vmatpush1.bf16.msra.mxu0 %v2318
      %2362 = vmatprep.subr.bf16.mxu0 0
      %2363 = vmatpush1.bf16.msra.mxu0 %v2319
      %2364 = vmatprep.subr.bf16.mxu0 0
      %2365 = vmatpush1.bf16.msra.mxu0 %v2320
      %2366 = vmatprep.subr.bf16.mxu0 0
      %2367 = vmatpush1.bf16.msra.mxu0 %v2321
      %2368 = vmatprep.subr.bf16.mxu0 0
      %2369 = vmatpush1.bf16.msra.mxu0 %v2322
      %2370 = vmatprep.subr.bf16.mxu0 0
      %2371 = vmatpush1.bf16.msra.mxu0 %v2323
      %2372 = vmatprep.mubr.bf16.mxu0 %v2198
      %2373 = vmatmul.mubr.bf16.gmra.mrb[0].mxu0 %v2197
      %v2374 = vpop.f32.mrb[0].mxu0
      %v2375 = vadd.f32 %v2242, %v2374
      %v2376 = vpop.f32.mrb[0].mxu0
      %v2377 = vpop.f32.mrb[0].mxu0
      %v2378 = vadd.f32 %v2242, %v2377
      %v2379 = vpop.f32.mrb[0].mxu0
      %2380 = vmatprep.mubr.bf16.mxu0 %v2200
      %2381 = vmatmul.mubr.bf16.gmra.mrb[0].mxu0 %v2199
      %v2382 = vpop.f32.mrb[0].mxu0
      %v2383 = vadd.f32 %v2242, %v2382
      %v2384 = vpop.f32.mrb[0].mxu0
      %v2385 = vpop.f32.mrb[0].mxu0
      %v2386 = vadd.f32 %v2242, %v2385
      %v2387 = vpop.f32.mrb[0].mxu0
      %2388 = vmatprep.mubr.bf16.mxu0 %v2202
      %2389 = vmatmul.mubr.bf16.gmra.mrb[0].mxu0 %v2201
      %v2390 = vpop.f32.mrb[0].mxu0
      %v2391 = vadd.f32 %v2242, %v2390
      %v2392 = vpop.f32.mrb[0].mxu0
      %v2393 = vpop.f32.mrb[0].mxu0
      %v2394 = vadd.f32 %v2242, %v2393
      %v2395 = vpop.f32.mrb[0].mxu0
      %2396 = vmatprep.mubr.bf16.mxu0 %v2204
      %2397 = vmatmul.mubr.bf16.gmra.mrb[0].mxu0 %v2203
      %v2398 = vpop.f32.mrb[0].mxu0
      %v2399 = vadd.f32 %v2242, %v2398
      %v2400 = vpop.f32.mrb[0].mxu0
      %v2401 = vpop.f32.mrb[0].mxu0
      %v2402 = vadd.f32 %v2242, %v2401
      %v2403 = vpop.f32.mrb[0].mxu0
      %2404 = vdwg.mxu0
      %v2405 = vld [vmem:[%s327] sm:$0xff]
      %v2406 = vld [vmem:[%s327 + $0x8] sm:$0xff]
      %v2407 = vld [vmem:[%s327 + $0x10] sm:$0xff]
      %v2408 = vld [vmem:[%s327 + $0x18] sm:$0xff]
      %v2409 = vld [vmem:[%s327 + $0x20] sm:$0xff]
      %v2410 = vld [vmem:[%s327 + $0x28] sm:$0xff]
      %v2411 = vld [vmem:[%s327 + $0x30] sm:$0xff]
      %v2412 = vld [vmem:[%s327 + $0x38] sm:$0xff]
      %v2413 = vld [vmem:[%s327 + $0x40] sm:$0xff]
      %v2414 = vld [vmem:[%s327 + $0x48] sm:$0xff]
      %v2415 = vld [vmem:[%s327 + $0x50] sm:$0xff]
      %v2416 = vld [vmem:[%s327 + $0x58] sm:$0xff]
      %v2417 = vld [vmem:[%s327 + $0x60] sm:$0xff]
      %v2418 = vld [vmem:[%s327 + $0x68] sm:$0xff]
      %v2419 = vld [vmem:[%s327 + $0x70] sm:$0xff]
      %v2420 = vld [vmem:[%s327 + $0x78] sm:$0xff]
      %2421 = vset.pattern.permute.xlu0 0
      %2422 = vperm.xlu0 %2421, %v2405
      %v2423 = vpop.permute.xlu0 %2422
      %2424 = vset.pattern.permute.xlu0 0
      %2425 = vperm.xlu0 %2424, %v2406
      %v2426 = vpop.permute.xlu0 %2425
      %2427 = vset.pattern.permute.xlu0 0
      %2428 = vperm.xlu0 %2427, %v2407
      %v2429 = vpop.permute.xlu0 %2428
      %2430 = vset.pattern.permute.xlu0 0
      %2431 = vperm.xlu0 %2430, %v2408
      %v2432 = vpop.permute.xlu0 %2431
      %2433 = vset.pattern.permute.xlu0 0
      %2434 = vperm.xlu0 %2433, %v2409
      %v2435 = vpop.permute.xlu0 %2434
      %2436 = vset.pattern.permute.xlu0 0
      %2437 = vperm.xlu0 %2436, %v2410
      %v2438 = vpop.permute.xlu0 %2437
      %2439 = vset.pattern.permute.xlu0 0
      %2440 = vperm.xlu0 %2439, %v2411
      %v2441 = vpop.permute.xlu0 %2440
      %2442 = vset.pattern.permute.xlu0 0
      %2443 = vperm.xlu0 %2442, %v2412
      %v2444 = vpop.permute.xlu0 %2443
      %2445 = vset.pattern.permute.xlu0 0
      %2446 = vperm.xlu0 %2445, %v2413
      %v2447 = vpop.permute.xlu0 %2446
      %2448 = vset.pattern.permute.xlu0 0
      %2449 = vperm.xlu0 %2448, %v2414
      %v2450 = vpop.permute.xlu0 %2449
      %2451 = vset.pattern.permute.xlu0 0
      %2452 = vperm.xlu0 %2451, %v2415
      %v2453 = vpop.permute.xlu0 %2452
      %2454 = vset.pattern.permute.xlu0 0
      %2455 = vperm.xlu0 %2454, %v2416
      %v2456 = vpop.permute.xlu0 %2455
      %2457 = vset.pattern.permute.xlu0 0
      %2458 = vperm.xlu0 %2457, %v2417
      %v2459 = vpop.permute.xlu0 %2458
      %2460 = vset.pattern.permute.xlu0 0
      %2461 = vperm.xlu0 %2460, %v2418
      %v2462 = vpop.permute.xlu0 %2461
      %2463 = vset.pattern.permute.xlu0 0
      %2464 = vperm.xlu0 %2463, %v2419
      %v2465 = vpop.permute.xlu0 %2464
      %2466 = vset.pattern.permute.xlu0 0
      %2467 = vperm.xlu0 %2466, %v2420
      %v2468 = vpop.permute.xlu0 %2467
      %vm2469 = vcmp.eq.s32.totalorder %v2423, %v415
      %vm2470 = vcmp.eq.s32.totalorder %v2426, %v415
      %vm2471 = vcmp.eq.s32.totalorder %v2429, %v415
      %vm2472 = vcmp.eq.s32.totalorder %v2432, %v415
      %vm2473 = vcmp.eq.s32.totalorder %v2435, %v415
      %vm2474 = vcmp.eq.s32.totalorder %v2438, %v415
      %vm2475 = vcmp.eq.s32.totalorder %v2441, %v415
      %vm2476 = vcmp.eq.s32.totalorder %v2444, %v415
      %vm2477 = vcmp.eq.s32.totalorder %v2447, %v415
      %vm2478 = vcmp.eq.s32.totalorder %v2450, %v415
      %vm2479 = vcmp.eq.s32.totalorder %v2453, %v415
      %vm2480 = vcmp.eq.s32.totalorder %v2456, %v415
      %vm2481 = vcmp.eq.s32.totalorder %v2459, %v415
      %vm2482 = vcmp.eq.s32.totalorder %v2462, %v415
      %vm2483 = vcmp.eq.s32.totalorder %v2465, %v415
      %vm2484 = vcmp.eq.s32.totalorder %v2468, %v415
      %v2485 = vsel %vm2469, 1, 0
      %v2486 = vsel %vm2470, 1, 0
      %v2487 = vsel %vm2471, 1, 0
      %v2488 = vsel %vm2472, 1, 0
      %v2489 = vsel %vm2473, 1, 0
      %v2490 = vsel %vm2474, 1, 0
      %v2491 = vsel %vm2475, 1, 0
      %v2492 = vsel %vm2476, 1, 0
      %v2493 = vsel %vm2477, 1, 0
      %v2494 = vsel %vm2478, 1, 0
      %v2495 = vsel %vm2479, 1, 0
      %v2496 = vsel %vm2480, 1, 0
      %v2497 = vsel %vm2481, 1, 0
      %v2498 = vsel %vm2482, 1, 0
      %v2499 = vsel %vm2483, 1, 0
      %v2500 = vsel %vm2484, 1, 0
      %v2501 = vcvt.s32.f32 %v2485
      %v2502 = vcvt.s32.f32 %v2486
      %v2503 = vcvt.s32.f32 %v2487
      %v2504 = vcvt.s32.f32 %v2488
      %v2505 = vcvt.s32.f32 %v2489
      %v2506 = vcvt.s32.f32 %v2490
      %v2507 = vcvt.s32.f32 %v2491
      %v2508 = vcvt.s32.f32 %v2492
      %v2509 = vcvt.s32.f32 %v2493
      %v2510 = vcvt.s32.f32 %v2494
      %v2511 = vcvt.s32.f32 %v2495
      %v2512 = vcvt.s32.f32 %v2496
      %v2513 = vcvt.s32.f32 %v2497
      %v2514 = vcvt.s32.f32 %v2498
      %v2515 = vcvt.s32.f32 %v2499
      %v2516 = vcvt.s32.f32 %v2500
      %2517 = vset.pattern.permute.xlu0 1
      %2518 = vperm.xlu0 %2517, %v2405
      %v2519 = vpop.permute.xlu0 %2518
      %2520 = vset.pattern.permute.xlu0 1
      %2521 = vperm.xlu0 %2520, %v2406
      %v2522 = vpop.permute.xlu0 %2521
      %2523 = vset.pattern.permute.xlu0 1
      %2524 = vperm.xlu0 %2523, %v2407
      %v2525 = vpop.permute.xlu0 %2524
      %2526 = vset.pattern.permute.xlu0 1
      %2527 = vperm.xlu0 %2526, %v2408
      %v2528 = vpop.permute.xlu0 %2527
      %2529 = vset.pattern.permute.xlu0 1
      %2530 = vperm.xlu0 %2529, %v2409
      %v2531 = vpop.permute.xlu0 %2530
      %2532 = vset.pattern.permute.xlu0 1
      %2533 = vperm.xlu0 %2532, %v2410
      %v2534 = vpop.permute.xlu0 %2533
      %2535 = vset.pattern.permute.xlu0 1
      %2536 = vperm.xlu0 %2535, %v2411
      %v2537 = vpop.permute.xlu0 %2536
      %2538 = vset.pattern.permute.xlu0 1
      %2539 = vperm.xlu0 %2538, %v2412
      %v2540 = vpop.permute.xlu0 %2539
      %2541 = vset.pattern.permute.xlu0 1
      %2542 = vperm.xlu0 %2541, %v2413
      %v2543 = vpop.permute.xlu0 %2542
      %2544 = vset.pattern.permute.xlu0 1
      %2545 = vperm.xlu0 %2544, %v2414
      %v2546 = vpop.permute.xlu0 %2545
      %2547 = vset.pattern.permute.xlu0 1
      %2548 = vperm.xlu0 %2547, %v2415
      %v2549 = vpop.permute.xlu0 %2548
      %2550 = vset.pattern.permute.xlu0 1
      %2551 = vperm.xlu0 %2550, %v2416
      %v2552 = vpop.permute.xlu0 %2551
      %2553 = vset.pattern.permute.xlu0 1
      %2554 = vperm.xlu0 %2553, %v2417
      %v2555 = vpop.permute.xlu0 %2554
      %2556 = vset.pattern.permute.xlu0 1
      %2557 = vperm.xlu0 %2556, %v2418
      %v2558 = vpop.permute.xlu0 %2557
      %2559 = vset.pattern.permute.xlu0 1
      %2560 = vperm.xlu0 %2559, %v2419
      %v2561 = vpop.permute.xlu0 %2560
      %2562 = vset.pattern.permute.xlu0 1
      %2563 = vperm.xlu0 %2562, %v2420
      %v2564 = vpop.permute.xlu0 %2563
      %vm2565 = vcmp.eq.s32.totalorder %v2519, %v415
      %vm2566 = vcmp.eq.s32.totalorder %v2522, %v415
      %vm2567 = vcmp.eq.s32.totalorder %v2525, %v415
      %vm2568 = vcmp.eq.s32.totalorder %v2528, %v415
      %vm2569 = vcmp.eq.s32.totalorder %v2531, %v415
      %vm2570 = vcmp.eq.s32.totalorder %v2534, %v415
      %vm2571 = vcmp.eq.s32.totalorder %v2537, %v415
      %vm2572 = vcmp.eq.s32.totalorder %v2540, %v415
      %vm2573 = vcmp.eq.s32.totalorder %v2543, %v415
      %vm2574 = vcmp.eq.s32.totalorder %v2546, %v415
      %vm2575 = vcmp.eq.s32.totalorder %v2549, %v415
      %vm2576 = vcmp.eq.s32.totalorder %v2552, %v415
      %vm2577 = vcmp.eq.s32.totalorder %v2555, %v415
      %vm2578 = vcmp.eq.s32.totalorder %v2558, %v415
      %vm2579 = vcmp.eq.s32.totalorder %v2561, %v415
      %vm2580 = vcmp.eq.s32.totalorder %v2564, %v415
      %v2581 = vsel %vm2565, 1, 0
      %v2582 = vsel %vm2566, 1, 0
      %v2583 = vsel %vm2567, 1, 0
      %v2584 = vsel %vm2568, 1, 0
      %v2585 = vsel %vm2569, 1, 0
      %v2586 = vsel %vm2570, 1, 0
      %v2587 = vsel %vm2571, 1, 0
      %v2588 = vsel %vm2572, 1, 0
      %v2589 = vsel %vm2573, 1, 0
      %v2590 = vsel %vm2574, 1, 0
      %v2591 = vsel %vm2575, 1, 0
      %v2592 = vsel %vm2576, 1, 0
      %v2593 = vsel %vm2577, 1, 0
      %v2594 = vsel %vm2578, 1, 0
      %v2595 = vsel %vm2579, 1, 0
      %v2596 = vsel %vm2580, 1, 0
      %v2597 = vcvt.s32.f32 %v2581
      %v2598 = vcvt.s32.f32 %v2582
      %v2599 = vcvt.s32.f32 %v2583
      %v2600 = vcvt.s32.f32 %v2584
      %v2601 = vcvt.s32.f32 %v2585
      %v2602 = vcvt.s32.f32 %v2586
      %v2603 = vcvt.s32.f32 %v2587
      %v2604 = vcvt.s32.f32 %v2588
      %v2605 = vcvt.s32.f32 %v2589
      %v2606 = vcvt.s32.f32 %v2590
      %v2607 = vcvt.s32.f32 %v2591
      %v2608 = vcvt.s32.f32 %v2592
      %v2609 = vcvt.s32.f32 %v2593
      %v2610 = vcvt.s32.f32 %v2594
      %v2611 = vcvt.s32.f32 %v2595
      %v2612 = vcvt.s32.f32 %v2596
      %v2614 = vsel %vm1496, %v2597, 0
      %v2617 = vsel %vm1496, %v2598, 0
      %v2620 = vsel %vm1496, %v2599, 0
      %v2623 = vsel %vm1496, %v2600, 0
      %v2626 = vsel %vm1496, %v2601, 0
      %v2629 = vsel %vm1496, %v2602, 0
      %v2632 = vsel %vm1496, %v2603, 0
      %v2635 = vsel %vm1496, %v2604, 0
      %v2638 = vsel %vm1496, %v2605, 0
      %v2641 = vsel %vm1496, %v2606, 0
      %v2644 = vsel %vm1496, %v2607, 0
      %v2647 = vsel %vm1496, %v2608, 0
      %v2650 = vsel %vm1496, %v2609, 0
      %v2653 = vsel %vm1496, %v2610, 0
      %v2656 = vsel %vm1496, %v2611, 0
      %v2659 = vsel %vm1496, %v2612, 0
      %2661 = vmatprep.subr.mxu0 0.0
      %2662 = vmatpush1.msra.mxu0 %v348
      %2663 = vmatprep.subr.mxu0 0.0
      %2664 = vmatpush1.msra.mxu0 %v1523
      %2665 = vmatprep.subr.mxu0 0.0
      %2666 = vmatpush1.msra.mxu0 0.0
      %2667 = vmatprep.subr.mxu0 0.0
      %2668 = vmatpush1.msra.mxu0 0.0
      %2669 = vmatprep.subr.mxu0 0.0
      %2670 = vmatpush1.msra.mxu0 0.0
      %2671 = vmatprep.subr.mxu0 0.0
      %2672 = vmatpush1.msra.mxu0 0.0
      %2673 = vmatprep.subr.mxu0 0.0
      %2674 = vmatpush1.msra.mxu0 0.0
      %2675 = vmatprep.subr.mxu0 0.0
      %2676 = vmatpush1.msra.mxu0 0.0
      %2677 = vmatprep.subr.mxu0 0.0
      %2678 = vmatpush1.msra.mxu0 0.0
      %2679 = vmatprep.subr.mxu0 0.0
      %2680 = vmatpush1.msra.mxu0 0.0
      %2681 = vmatprep.subr.mxu0 0.0
      %2682 = vmatpush1.msra.mxu0 0.0
      %2683 = vmatprep.subr.mxu0 0.0
      %2684 = vmatpush1.msra.mxu0 0.0
      %2685 = vmatprep.subr.mxu0 0.0
      %2686 = vmatpush1.msra.mxu0 0.0
      %2687 = vmatprep.subr.mxu0 0.0
      %2688 = vmatpush1.msra.mxu0 0.0
      %2689 = vmatprep.subr.mxu0 0.0
      %2690 = vmatpush1.msra.mxu0 0.0
      %2691 = vmatprep.subr.mxu0 0.0
      %2692 = vmatpush1.msra.mxu0 0.0
      %2693 = vmatprep.subr.mxu0 0.0
      %2694 = vmatpush1.msra.mxu0 0.0
      %2695 = vmatprep.subr.mxu0 0.0
      %2696 = vmatpush1.msra.mxu0 0.0
      %2697 = vmatprep.subr.mxu0 0.0
      %2698 = vmatpush1.msra.mxu0 0.0
      %2699 = vmatprep.subr.mxu0 0.0
      %2700 = vmatpush1.msra.mxu0 0.0
      %2701 = vmatprep.subr.mxu0 0.0
      %2702 = vmatpush1.msra.mxu0 0.0
      %2703 = vmatprep.subr.mxu0 0.0
      %2704 = vmatpush1.msra.mxu0 0.0
      %2705 = vmatprep.subr.mxu0 0.0
      %2706 = vmatpush1.msra.mxu0 0.0
      %2707 = vmatprep.subr.mxu0 0.0
      %2708 = vmatpush1.msra.mxu0 0.0
      %2709 = vmatprep.subr.mxu0 0.0
      %2710 = vmatpush1.msra.mxu0 0.0
      %2711 = vmatprep.subr.mxu0 0.0
      %2712 = vmatpush1.msra.mxu0 0.0
      %2713 = vmatprep.subr.mxu0 0.0
      %2714 = vmatpush1.msra.mxu0 0.0
      %2715 = vmatprep.subr.mxu0 0.0
      %2716 = vmatpush1.msra.mxu0 0.0
      %2717 = vmatprep.subr.mxu0 0.0
      %2718 = vmatpush1.msra.mxu0 0.0
      %2719 = vmatprep.subr.mxu0 0.0
      %2720 = vmatpush1.msra.mxu0 0.0
      %2721 = vmatprep.subr.mxu0 0.0
      %2722 = vmatpush1.msra.mxu0 0.0
      %2723 = vmatprep.subr.mxu0 0.0
      %2724 = vmatpush1.msra.mxu0 0.0
      %2725 = vmatprep.mubr.f32.mxu0 0.0
      %2726 = vmatmul.mubr.f32.gmra.mrb[0].mxu0 %v2614
      %v2727 = vpop.f32.mrb[0].mxu0
      %v2728 = vadd.f32 0.0, %v2727
      %v2729 = vpop.f32.mrb[0].mxu0
      %2730 = vmatprep.mubr.f32.mxu0 0.0
      %2731 = vmatmul.mubr.f32.gmra.mrb[0].mxu0 %v2617
      %v2732 = vpop.f32.mrb[0].mxu0
      %v2733 = vadd.f32 0.0, %v2732
      %v2734 = vpop.f32.mrb[0].mxu0
      %2735 = vmatprep.mubr.f32.mxu0 0.0
      %2736 = vmatmul.mubr.f32.gmra.mrb[0].mxu0 %v2620
      %v2737 = vpop.f32.mrb[0].mxu0
      %v2738 = vadd.f32 0.0, %v2737
      %v2739 = vpop.f32.mrb[0].mxu0
      %2740 = vmatprep.mubr.f32.mxu0 0.0
      %2741 = vmatmul.mubr.f32.gmra.mrb[0].mxu0 %v2623
      %v2742 = vpop.f32.mrb[0].mxu0
      %v2743 = vadd.f32 0.0, %v2742
      %v2744 = vpop.f32.mrb[0].mxu0
      %2745 = vmatprep.mubr.f32.mxu0 0.0
      %2746 = vmatmul.mubr.f32.gmra.mrb[0].mxu0 %v2626
      %v2747 = vpop.f32.mrb[0].mxu0
      %v2748 = vadd.f32 0.0, %v2747
      %v2749 = vpop.f32.mrb[0].mxu0
      %2750 = vmatprep.mubr.f32.mxu0 0.0
      %2751 = vmatmul.mubr.f32.gmra.mrb[0].mxu0 %v2629
      %v2752 = vpop.f32.mrb[0].mxu0
      %v2753 = vadd.f32 0.0, %v2752
      %v2754 = vpop.f32.mrb[0].mxu0
      %2755 = vmatprep.mubr.f32.mxu0 0.0
      %2756 = vmatmul.mubr.f32.gmra.mrb[0].mxu0 %v2632
      %v2757 = vpop.f32.mrb[0].mxu0
      %v2758 = vadd.f32 0.0, %v2757
      %v2759 = vpop.f32.mrb[0].mxu0
      %2760 = vmatprep.mubr.f32.mxu0 0.0
      %2761 = vmatmul.mubr.f32.gmra.mrb[0].mxu0 %v2635
      %v2762 = vpop.f32.mrb[0].mxu0
      %v2763 = vadd.f32 0.0, %v2762
      %v2764 = vpop.f32.mrb[0].mxu0
      %2765 = vmatprep.mubr.f32.mxu0 0.0
      %2766 = vmatmul.mubr.f32.gmra.mrb[0].mxu0 %v2638
      %v2767 = vpop.f32.mrb[0].mxu0
      %v2768 = vadd.f32 0.0, %v2767
      %v2769 = vpop.f32.mrb[0].mxu0
      %2770 = vmatprep.mubr.f32.mxu0 0.0
      %2771 = vmatmul.mubr.f32.gmra.mrb[0].mxu0 %v2641
      %v2772 = vpop.f32.mrb[0].mxu0
      %v2773 = vadd.f32 0.0, %v2772
      %v2774 = vpop.f32.mrb[0].mxu0
      %2775 = vmatprep.mubr.f32.mxu0 0.0
      %2776 = vmatmul.mubr.f32.gmra.mrb[0].mxu0 %v2644
      %v2777 = vpop.f32.mrb[0].mxu0
      %v2778 = vadd.f32 0.0, %v2777
      %v2779 = vpop.f32.mrb[0].mxu0
      %2780 = vmatprep.mubr.f32.mxu0 0.0
      %2781 = vmatmul.mubr.f32.gmra.mrb[0].mxu0 %v2647
      %v2782 = vpop.f32.mrb[0].mxu0
      %v2783 = vadd.f32 0.0, %v2782
      %v2784 = vpop.f32.mrb[0].mxu0
      %2785 = vmatprep.mubr.f32.mxu0 0.0
      %2786 = vmatmul.mubr.f32.gmra.mrb[0].mxu0 %v2650
      %v2787 = vpop.f32.mrb[0].mxu0
      %v2788 = vadd.f32 0.0, %v2787
      %v2789 = vpop.f32.mrb[0].mxu0
      %2790 = vmatprep.mubr.f32.mxu0 0.0
      %2791 = vmatmul.mubr.f32.gmra.mrb[0].mxu0 %v2653
      %v2792 = vpop.f32.mrb[0].mxu0
      %v2793 = vadd.f32 0.0, %v2792
      %v2794 = vpop.f32.mrb[0].mxu0
      %2795 = vmatprep.mubr.f32.mxu0 0.0
      %2796 = vmatmul.mubr.f32.gmra.mrb[0].mxu0 %v2656
      %v2797 = vpop.f32.mrb[0].mxu0
      %v2798 = vadd.f32 0.0, %v2797
      %v2799 = vpop.f32.mrb[0].mxu0
      %2800 = vmatprep.mubr.f32.mxu0 0.0
      %2801 = vmatmul.mubr.f32.gmra.mrb[0].mxu0 %v2659
      %v2802 = vpop.f32.mrb[0].mxu0
      %v2803 = vadd.f32 0.0, %v2802
      %v2804 = vpop.f32.mrb[0].mxu0
      %2805 = vdwg.mxu0
      %2806 = vset.pattern.permute.xlu0 2
      %2807 = vperm.xlu0 %2806, %v2405
      %v2808 = vpop.permute.xlu0 %2807
      %2809 = vset.pattern.permute.xlu0 2
      %2810 = vperm.xlu0 %2809, %v2406
      %v2811 = vpop.permute.xlu0 %2810
      %2812 = vset.pattern.permute.xlu0 2
      %2813 = vperm.xlu0 %2812, %v2407
      %v2814 = vpop.permute.xlu0 %2813
      %2815 = vset.pattern.permute.xlu0 2
      %2816 = vperm.xlu0 %2815, %v2408
      %v2817 = vpop.permute.xlu0 %2816
      %2818 = vset.pattern.permute.xlu0 2
      %2819 = vperm.xlu0 %2818, %v2409
      %v2820 = vpop.permute.xlu0 %2819
      %2821 = vset.pattern.permute.xlu0 2
      %2822 = vperm.xlu0 %2821, %v2410
      %v2823 = vpop.permute.xlu0 %2822
      %2824 = vset.pattern.permute.xlu0 2
      %2825 = vperm.xlu0 %2824, %v2411
      %v2826 = vpop.permute.xlu0 %2825
      %2827 = vset.pattern.permute.xlu0 2
      %2828 = vperm.xlu0 %2827, %v2412
      %v2829 = vpop.permute.xlu0 %2828
      %2830 = vset.pattern.permute.xlu0 2
      %2831 = vperm.xlu0 %2830, %v2413
      %v2832 = vpop.permute.xlu0 %2831
      %2833 = vset.pattern.permute.xlu0 2
      %2834 = vperm.xlu0 %2833, %v2414
      %v2835 = vpop.permute.xlu0 %2834
      %2836 = vset.pattern.permute.xlu0 2
      %2837 = vperm.xlu0 %2836, %v2415
      %v2838 = vpop.permute.xlu0 %2837
      %2839 = vset.pattern.permute.xlu0 2
      %2840 = vperm.xlu0 %2839, %v2416
      %v2841 = vpop.permute.xlu0 %2840
      %2842 = vset.pattern.permute.xlu0 2
      %2843 = vperm.xlu0 %2842, %v2417
      %v2844 = vpop.permute.xlu0 %2843
      %2845 = vset.pattern.permute.xlu0 2
      %2846 = vperm.xlu0 %2845, %v2418
      %v2847 = vpop.permute.xlu0 %2846
      %2848 = vset.pattern.permute.xlu0 2
      %2849 = vperm.xlu0 %2848, %v2419
      %v2850 = vpop.permute.xlu0 %2849
      %2851 = vset.pattern.permute.xlu0 2
      %2852 = vperm.xlu0 %2851, %v2420
      %v2853 = vpop.permute.xlu0 %2852
      %vm2854 = vcmp.eq.s32.totalorder %v2808, %v415
      %vm2855 = vcmp.eq.s32.totalorder %v2811, %v415
      %vm2856 = vcmp.eq.s32.totalorder %v2814, %v415
      %vm2857 = vcmp.eq.s32.totalorder %v2817, %v415
      %vm2858 = vcmp.eq.s32.totalorder %v2820, %v415
      %vm2859 = vcmp.eq.s32.totalorder %v2823, %v415
      %vm2860 = vcmp.eq.s32.totalorder %v2826, %v415
      %vm2861 = vcmp.eq.s32.totalorder %v2829, %v415
      %vm2862 = vcmp.eq.s32.totalorder %v2832, %v415
      %vm2863 = vcmp.eq.s32.totalorder %v2835, %v415
      %vm2864 = vcmp.eq.s32.totalorder %v2838, %v415
      %vm2865 = vcmp.eq.s32.totalorder %v2841, %v415
      %vm2866 = vcmp.eq.s32.totalorder %v2844, %v415
      %vm2867 = vcmp.eq.s32.totalorder %v2847, %v415
      %vm2868 = vcmp.eq.s32.totalorder %v2850, %v415
      %vm2869 = vcmp.eq.s32.totalorder %v2853, %v415
      %v2870 = vsel %vm2854, 1, 0
      %v2871 = vsel %vm2855, 1, 0
      %v2872 = vsel %vm2856, 1, 0
      %v2873 = vsel %vm2857, 1, 0
      %v2874 = vsel %vm2858, 1, 0
      %v2875 = vsel %vm2859, 1, 0
      %v2876 = vsel %vm2860, 1, 0
      %v2877 = vsel %vm2861, 1, 0
      %v2878 = vsel %vm2862, 1, 0
      %v2879 = vsel %vm2863, 1, 0
      %v2880 = vsel %vm2864, 1, 0
      %v2881 = vsel %vm2865, 1, 0
      %v2882 = vsel %vm2866, 1, 0
      %v2883 = vsel %vm2867, 1, 0
      %v2884 = vsel %vm2868, 1, 0
      %v2885 = vsel %vm2869, 1, 0
      %v2886 = vcvt.s32.f32 %v2870
      %v2887 = vcvt.s32.f32 %v2871
      %v2888 = vcvt.s32.f32 %v2872
      %v2889 = vcvt.s32.f32 %v2873
      %v2890 = vcvt.s32.f32 %v2874
      %v2891 = vcvt.s32.f32 %v2875
      %v2892 = vcvt.s32.f32 %v2876
      %v2893 = vcvt.s32.f32 %v2877
      %v2894 = vcvt.s32.f32 %v2878
      %v2895 = vcvt.s32.f32 %v2879
      %v2896 = vcvt.s32.f32 %v2880
      %v2897 = vcvt.s32.f32 %v2881
      %v2898 = vcvt.s32.f32 %v2882
      %v2899 = vcvt.s32.f32 %v2883
      %v2900 = vcvt.s32.f32 %v2884
      %v2901 = vcvt.s32.f32 %v2885
      %vm2902 = vcmask 523264
      %v2904 = vsel %vm2902, %v2886, 0
      %v2907 = vsel %vm2902, %v2887, 0
      %v2910 = vsel %vm2902, %v2888, 0
      %v2913 = vsel %vm2902, %v2889, 0
      %v2916 = vsel %vm2902, %v2890, 0
      %v2919 = vsel %vm2902, %v2891, 0
      %v2922 = vsel %vm2902, %v2892, 0
      %v2925 = vsel %vm2902, %v2893, 0
      %v2928 = vsel %vm2902, %v2894, 0
      %v2931 = vsel %vm2902, %v2895, 0
      %v2934 = vsel %vm2902, %v2896, 0
      %v2937 = vsel %vm2902, %v2897, 0
      %v2940 = vsel %vm2902, %v2898, 0
      %v2943 = vsel %vm2902, %v2899, 0
      %v2946 = vsel %vm2902, %v2900, 0
      %v2949 = vsel %vm2902, %v2901, 0
      %2951 = vmatprep.subr.mxu0 0.0
      %2952 = vmatpush1.msra.mxu0 %v2375
      %2953 = vmatprep.subr.mxu0 0.0
      %2954 = vmatpush1.msra.mxu0 %v2378
      %2955 = vmatprep.subr.mxu0 0.0
      %2956 = vmatpush1.msra.mxu0 %v2383
      %2957 = vmatprep.subr.mxu0 0.0
      %2958 = vmatpush1.msra.mxu0 %v2386
      %2959 = vmatprep.subr.mxu0 0.0
      %2960 = vmatpush1.msra.mxu0 %v2391
      %2961 = vmatprep.subr.mxu0 0.0
      %2962 = vmatpush1.msra.mxu0 %v2394
      %2963 = vmatprep.subr.mxu0 0.0
      %2964 = vmatpush1.msra.mxu0 %v2399
      %2965 = vmatprep.subr.mxu0 0.0
      %2966 = vmatpush1.msra.mxu0 %v2402
      %2967 = vmatprep.subr.mxu0 0.0
      %2968 = vmatpush1.msra.mxu0 0.0
      %2969 = vmatprep.subr.mxu0 0.0
      %2970 = vmatpush1.msra.mxu0 0.0
      %2971 = vmatprep.subr.mxu0 0.0
      %2972 = vmatpush1.msra.mxu0 0.0
      %2973 = vmatprep.subr.mxu0 0.0
      %2974 = vmatpush1.msra.mxu0 0.0
      %2975 = vmatprep.subr.mxu0 0.0
      %2976 = vmatpush1.msra.mxu0 0.0
      %2977 = vmatprep.subr.mxu0 0.0
      %2978 = vmatpush1.msra.mxu0 0.0
      %2979 = vmatprep.subr.mxu0 0.0
      %2980 = vmatpush1.msra.mxu0 0.0
      %2981 = vmatprep.subr.mxu0 0.0
      %2982 = vmatpush1.msra.mxu0 0.0
      %2983 = vmatprep.subr.mxu0 0.0
      %2984 = vmatpush1.msra.mxu0 0.0
      %2985 = vmatprep.subr.mxu0 0.0
      %2986 = vmatpush1.msra.mxu0 0.0
      %2987 = vmatprep.subr.mxu0 0.0
      %2988 = vmatpush1.msra.mxu0 0.0
      %2989 = vmatprep.subr.mxu0 0.0
      %2990 = vmatpush1.msra.mxu0 0.0
      %2991 = vmatprep.subr.mxu0 0.0
      %2992 = vmatpush1.msra.mxu0 0.0
      %2993 = vmatprep.subr.mxu0 0.0
      %2994 = vmatpush1.msra.mxu0 0.0
      %2995 = vmatprep.subr.mxu0 0.0
      %2996 = vmatpush1.msra.mxu0 0.0
      %2997 = vmatprep.subr.mxu0 0.0
      %2998 = vmatpush1.msra.mxu0 0.0
      %2999 = vmatprep.subr.mxu0 0.0
      %3000 = vmatpush1.msra.mxu0 0.0
      %3001 = vmatprep.subr.mxu0 0.0
      %3002 = vmatpush1.msra.mxu0 0.0
      %3003 = vmatprep.subr.mxu0 0.0
      %3004 = vmatpush1.msra.mxu0 0.0
      %3005 = vmatprep.subr.mxu0 0.0
      %3006 = vmatpush1.msra.mxu0 0.0
      %3007 = vmatprep.subr.mxu0 0.0
      %3008 = vmatpush1.msra.mxu0 0.0
      %3009 = vmatprep.subr.mxu0 0.0
      %3010 = vmatpush1.msra.mxu0 0.0
      %3011 = vmatprep.subr.mxu0 0.0
      %3012 = vmatpush1.msra.mxu0 0.0
      %3013 = vmatprep.subr.mxu0 0.0
      %3014 = vmatpush1.msra.mxu0 0.0
      %3015 = vmatprep.mubr.f32.mxu0 0.0
      %3016 = vmatmul.mubr.f32.gmra.mrb[0].mxu0 %v2904
      %v3017 = vpop.f32.mrb[0].mxu0
      %v3018 = vadd.f32 0.0, %v3017
      %v3019 = vpop.f32.mrb[0].mxu0
      %3020 = vmatprep.mubr.f32.mxu0 0.0
      %3021 = vmatmul.mubr.f32.gmra.mrb[0].mxu0 %v2907
      %v3022 = vpop.f32.mrb[0].mxu0
      %v3023 = vadd.f32 0.0, %v3022
      %v3024 = vpop.f32.mrb[0].mxu0
      %3025 = vmatprep.mubr.f32.mxu0 0.0
      %3026 = vmatmul.mubr.f32.gmra.mrb[0].mxu0 %v2910
      %v3027 = vpop.f32.mrb[0].mxu0
      %v3028 = vadd.f32 0.0, %v3027
      %v3029 = vpop.f32.mrb[0].mxu0
      %3030 = vmatprep.mubr.f32.mxu0 0.0
      %3031 = vmatmul.mubr.f32.gmra.mrb[0].mxu0 %v2913
      %v3032 = vpop.f32.mrb[0].mxu0
      %v3033 = vadd.f32 0.0, %v3032
      %v3034 = vpop.f32.mrb[0].mxu0
      %3035 = vmatprep.mubr.f32.mxu0 0.0
      %3036 = vmatmul.mubr.f32.gmra.mrb[0].mxu0 %v2916
      %v3037 = vpop.f32.mrb[0].mxu0
      %v3038 = vadd.f32 0.0, %v3037
      %v3039 = vpop.f32.mrb[0].mxu0
      %3040 = vmatprep.mubr.f32.mxu0 0.0
      %3041 = vmatmul.mubr.f32.gmra.mrb[0].mxu0 %v2919
      %v3042 = vpop.f32.mrb[0].mxu0
      %v3043 = vadd.f32 0.0, %v3042
      %v3044 = vpop.f32.mrb[0].mxu0
      %3045 = vmatprep.mubr.f32.mxu0 0.0
      %3046 = vmatmul.mubr.f32.gmra.mrb[0].mxu0 %v2922
      %v3047 = vpop.f32.mrb[0].mxu0
      %v3048 = vadd.f32 0.0, %v3047
      %v3049 = vpop.f32.mrb[0].mxu0
      %3050 = vmatprep.mubr.f32.mxu0 0.0
      %3051 = vmatmul.mubr.f32.gmra.mrb[0].mxu0 %v2925
      %v3052 = vpop.f32.mrb[0].mxu0
      %v3053 = vadd.f32 0.0, %v3052
      %v3054 = vpop.f32.mrb[0].mxu0
      %3055 = vmatprep.mubr.f32.mxu0 0.0
      %3056 = vmatmul.mubr.f32.gmra.mrb[0].mxu0 %v2928
      %v3057 = vpop.f32.mrb[0].mxu0
      %v3058 = vadd.f32 0.0, %v3057
      %v3059 = vpop.f32.mrb[0].mxu0
      %3060 = vmatprep.mubr.f32.mxu0 0.0
      %3061 = vmatmul.mubr.f32.gmra.mrb[0].mxu0 %v2931
      %v3062 = vpop.f32.mrb[0].mxu0
      %v3063 = vadd.f32 0.0, %v3062
      %v3064 = vpop.f32.mrb[0].mxu0
      %3065 = vmatprep.mubr.f32.mxu0 0.0
      %3066 = vmatmul.mubr.f32.gmra.mrb[0].mxu0 %v2934
      %v3067 = vpop.f32.mrb[0].mxu0
      %v3068 = vadd.f32 0.0, %v3067
      %v3069 = vpop.f32.mrb[0].mxu0
      %3070 = vmatprep.mubr.f32.mxu0 0.0
      %3071 = vmatmul.mubr.f32.gmra.mrb[0].mxu0 %v2937
      %v3072 = vpop.f32.mrb[0].mxu0
      %v3073 = vadd.f32 0.0, %v3072
      %v3074 = vpop.f32.mrb[0].mxu0
      %3075 = vmatprep.mubr.f32.mxu0 0.0
      %3076 = vmatmul.mubr.f32.gmra.mrb[0].mxu0 %v2940
      %v3077 = vpop.f32.mrb[0].mxu0
      %v3078 = vadd.f32 0.0, %v3077
      %v3079 = vpop.f32.mrb[0].mxu0
      %3080 = vmatprep.mubr.f32.mxu0 0.0
      %3081 = vmatmul.mubr.f32.gmra.mrb[0].mxu0 %v2943
      %v3082 = vpop.f32.mrb[0].mxu0
      %v3083 = vadd.f32 0.0, %v3082
      %v3084 = vpop.f32.mrb[0].mxu0
      %3085 = vmatprep.mubr.f32.mxu0 0.0
      %3086 = vmatmul.mubr.f32.gmra.mrb[0].mxu0 %v2946
      %v3087 = vpop.f32.mrb[0].mxu0
      %v3088 = vadd.f32 0.0, %v3087
      %v3089 = vpop.f32.mrb[0].mxu0
      %3090 = vmatprep.mubr.f32.mxu0 0.0
      %3091 = vmatmul.mubr.f32.gmra.mrb[0].mxu0 %v2949
      %v3092 = vpop.f32.mrb[0].mxu0
      %v3093 = vadd.f32 0.0, %v3092
      %v3094 = vpop.f32.mrb[0].mxu0
      %3095 = vdwg.mxu0
      %v3097 = vsel %vm2902, %v2501, 0
      %v3100 = vsel %vm2902, %v2502, 0
      %v3103 = vsel %vm2902, %v2503, 0
      %v3106 = vsel %vm2902, %v2504, 0
      %v3109 = vsel %vm2902, %v2505, 0
      %v3112 = vsel %vm2902, %v2506, 0
      %v3115 = vsel %vm2902, %v2507, 0
      %v3118 = vsel %vm2902, %v2508, 0
      %v3121 = vsel %vm2902, %v2509, 0
      %v3124 = vsel %vm2902, %v2510, 0
      %v3127 = vsel %vm2902, %v2511, 0
      %v3130 = vsel %vm2902, %v2512, 0
      %v3133 = vsel %vm2902, %v2513, 0
      %v3136 = vsel %vm2902, %v2514, 0
      %v3139 = vsel %vm2902, %v2515, 0
      %v3142 = vsel %vm2902, %v2516, 0
      %3144 = vmatprep.subr.mxu0 0.0
      %3145 = vmatpush1.msra.mxu0 %v2375
      %3146 = vmatprep.subr.mxu0 0.0
      %3147 = vmatpush1.msra.mxu0 %v2378
      %3148 = vmatprep.subr.mxu0 0.0
      %3149 = vmatpush1.msra.mxu0 %v2383
      %3150 = vmatprep.subr.mxu0 0.0
      %3151 = vmatpush1.msra.mxu0 %v2386
      %3152 = vmatprep.subr.mxu0 0.0
      %3153 = vmatpush1.msra.mxu0 %v2391
      %3154 = vmatprep.subr.mxu0 0.0
      %3155 = vmatpush1.msra.mxu0 %v2394
      %3156 = vmatprep.subr.mxu0 0.0
      %3157 = vmatpush1.msra.mxu0 %v2399
      %3158 = vmatprep.subr.mxu0 0.0
      %3159 = vmatpush1.msra.mxu0 %v2402
      %3160 = vmatprep.subr.mxu0 0.0
      %3161 = vmatpush1.msra.mxu0 0.0
      %3162 = vmatprep.subr.mxu0 0.0
      %3163 = vmatpush1.msra.mxu0 0.0
      %3164 = vmatprep.subr.mxu0 0.0
      %3165 = vmatpush1.msra.mxu0 0.0
      %3166 = vmatprep.subr.mxu0 0.0
      %3167 = vmatpush1.msra.mxu0 0.0
      %3168 = vmatprep.subr.mxu0 0.0
      %3169 = vmatpush1.msra.mxu0 0.0
      %3170 = vmatprep.subr.mxu0 0.0
      %3171 = vmatpush1.msra.mxu0 0.0
      %3172 = vmatprep.subr.mxu0 0.0
      %3173 = vmatpush1.msra.mxu0 0.0
      %3174 = vmatprep.subr.mxu0 0.0
      %3175 = vmatpush1.msra.mxu0 0.0
      %3176 = vmatprep.subr.mxu0 0.0
      %3177 = vmatpush1.msra.mxu0 0.0
      %3178 = vmatprep.subr.mxu0 0.0
      %3179 = vmatpush1.msra.mxu0 0.0
      %3180 = vmatprep.subr.mxu0 0.0
      %3181 = vmatpush1.msra.mxu0 0.0
      %3182 = vmatprep.subr.mxu0 0.0
      %3183 = vmatpush1.msra.mxu0 0.0
      %3184 = vmatprep.subr.mxu0 0.0
      %3185 = vmatpush1.msra.mxu0 0.0
      %3186 = vmatprep.subr.mxu0 0.0
      %3187 = vmatpush1.msra.mxu0 0.0
      %3188 = vmatprep.subr.mxu0 0.0
      %3189 = vmatpush1.msra.mxu0 0.0
      %3190 = vmatprep.subr.mxu0 0.0
      %3191 = vmatpush1.msra.mxu0 0.0
      %3192 = vmatprep.subr.mxu0 0.0
      %3193 = vmatpush1.msra.mxu0 0.0
      %3194 = vmatprep.subr.mxu0 0.0
      %3195 = vmatpush1.msra.mxu0 0.0
      %3196 = vmatprep.subr.mxu0 0.0
      %3197 = vmatpush1.msra.mxu0 0.0
      %3198 = vmatprep.subr.mxu0 0.0
      %3199 = vmatpush1.msra.mxu0 0.0
      %3200 = vmatprep.subr.mxu0 0.0
      %3201 = vmatpush1.msra.mxu0 0.0
      %3202 = vmatprep.subr.mxu0 0.0
      %3203 = vmatpush1.msra.mxu0 0.0
      %3204 = vmatprep.subr.mxu0 0.0
      %3205 = vmatpush1.msra.mxu0 0.0
      %3206 = vmatprep.subr.mxu0 0.0
      %3207 = vmatpush1.msra.mxu0 0.0
      %3208 = vmatprep.mubr.f32.mxu0 0.0
      %3209 = vmatmul.mubr.f32.gmra.mrb[0].mxu0 %v3097
      %v3210 = vpop.f32.mrb[0].mxu0
      %v3211 = vadd.f32 %v2728, %v3210
      %v3212 = vpop.f32.mrb[0].mxu0
      %3213 = vmatprep.mubr.f32.mxu0 0.0
      %3214 = vmatmul.mubr.f32.gmra.mrb[0].mxu0 %v3100
      %v3215 = vpop.f32.mrb[0].mxu0
      %v3216 = vadd.f32 %v2733, %v3215
      %v3217 = vpop.f32.mrb[0].mxu0
      %3218 = vmatprep.mubr.f32.mxu0 0.0
      %3219 = vmatmul.mubr.f32.gmra.mrb[0].mxu0 %v3103
      %v3220 = vpop.f32.mrb[0].mxu0
      %v3221 = vadd.f32 %v2738, %v3220
      %v3222 = vpop.f32.mrb[0].mxu0
      %3223 = vmatprep.mubr.f32.mxu0 0.0
      %3224 = vmatmul.mubr.f32.gmra.mrb[0].mxu0 %v3106
      %v3225 = vpop.f32.mrb[0].mxu0
      %v3226 = vadd.f32 %v2743, %v3225
      %v3227 = vpop.f32.mrb[0].mxu0
      %3228 = vmatprep.mubr.f32.mxu0 0.0
      %3229 = vmatmul.mubr.f32.gmra.mrb[0].mxu0 %v3109
      %v3230 = vpop.f32.mrb[0].mxu0
      %v3231 = vadd.f32 %v2748, %v3230
      %v3232 = vpop.f32.mrb[0].mxu0
      %3233 = vmatprep.mubr.f32.mxu0 0.0
      %3234 = vmatmul.mubr.f32.gmra.mrb[0].mxu0 %v3112
      %v3235 = vpop.f32.mrb[0].mxu0
      %v3236 = vadd.f32 %v2753, %v3235
      %v3237 = vpop.f32.mrb[0].mxu0
      %3238 = vmatprep.mubr.f32.mxu0 0.0
      %3239 = vmatmul.mubr.f32.gmra.mrb[0].mxu0 %v3115
      %v3240 = vpop.f32.mrb[0].mxu0
      %v3241 = vadd.f32 %v2758, %v3240
      %v3242 = vpop.f32.mrb[0].mxu0
      %3243 = vmatprep.mubr.f32.mxu0 0.0
      %3244 = vmatmul.mubr.f32.gmra.mrb[0].mxu0 %v3118
      %v3245 = vpop.f32.mrb[0].mxu0
      %v3246 = vadd.f32 %v2763, %v3245
      %v3247 = vpop.f32.mrb[0].mxu0
      %3248 = vmatprep.mubr.f32.mxu0 0.0
      %3249 = vmatmul.mubr.f32.gmra.mrb[0].mxu0 %v3121
      %v3250 = vpop.f32.mrb[0].mxu0
      %v3251 = vadd.f32 %v2768, %v3250
      %v3252 = vpop.f32.mrb[0].mxu0
      %3253 = vmatprep.mubr.f32.mxu0 0.0
      %3254 = vmatmul.mubr.f32.gmra.mrb[0].mxu0 %v3124
      %v3255 = vpop.f32.mrb[0].mxu0
      %v3256 = vadd.f32 %v2773, %v3255
      %v3257 = vpop.f32.mrb[0].mxu0
      %3258 = vmatprep.mubr.f32.mxu0 0.0
      %3259 = vmatmul.mubr.f32.gmra.mrb[0].mxu0 %v3127
      %v3260 = vpop.f32.mrb[0].mxu0
      %v3261 = vadd.f32 %v2778, %v3260
      %v3262 = vpop.f32.mrb[0].mxu0
      %3263 = vmatprep.mubr.f32.mxu0 0.0
      %3264 = vmatmul.mubr.f32.gmra.mrb[0].mxu0 %v3130
      %v3265 = vpop.f32.mrb[0].mxu0
      %v3266 = vadd.f32 %v2783, %v3265
      %v3267 = vpop.f32.mrb[0].mxu0
      %3268 = vmatprep.mubr.f32.mxu0 0.0
      %3269 = vmatmul.mubr.f32.gmra.mrb[0].mxu0 %v3133
      %v3270 = vpop.f32.mrb[0].mxu0
      %v3271 = vadd.f32 %v2788, %v3270
      %v3272 = vpop.f32.mrb[0].mxu0
      %3273 = vmatprep.mubr.f32.mxu0 0.0
      %3274 = vmatmul.mubr.f32.gmra.mrb[0].mxu0 %v3136
      %v3275 = vpop.f32.mrb[0].mxu0
      %v3276 = vadd.f32 %v2793, %v3275
      %v3277 = vpop.f32.mrb[0].mxu0
      %3278 = vmatprep.mubr.f32.mxu0 0.0
      %3279 = vmatmul.mubr.f32.gmra.mrb[0].mxu0 %v3139
      %v3280 = vpop.f32.mrb[0].mxu0
      %v3281 = vadd.f32 %v2798, %v3280
      %v3282 = vpop.f32.mrb[0].mxu0
      %3283 = vmatprep.mubr.f32.mxu0 0.0
      %3284 = vmatmul.mubr.f32.gmra.mrb[0].mxu0 %v3142
      %v3285 = vpop.f32.mrb[0].mxu0
      %v3286 = vadd.f32 %v2803, %v3285
      %v3287 = vpop.f32.mrb[0].mxu0
      %3288 = vdwg.mxu0
      %v3289 = vsub.f32 %v3211, %v3018
      %v3290 = vsub.f32 %v3216, %v3023
      %v3291 = vsub.f32 %v3221, %v3028
      %v3292 = vsub.f32 %v3226, %v3033
      %v3293 = vsub.f32 %v3231, %v3038
      %v3294 = vsub.f32 %v3236, %v3043
      %v3295 = vsub.f32 %v3241, %v3048
      %v3296 = vsub.f32 %v3246, %v3053
      %v3297 = vsub.f32 %v3251, %v3058
      %v3298 = vsub.f32 %v3256, %v3063
      %v3299 = vsub.f32 %v3261, %v3068
      %v3300 = vsub.f32 %v3266, %v3073
      %v3301 = vsub.f32 %v3271, %v3078
      %v3302 = vsub.f32 %v3276, %v3083
      %v3303 = vsub.f32 %v3281, %v3088
      %v3304 = vsub.f32 %v3286, %v3093
      %v3305 = vand.u32 2147483647, %v3289
      %v3306 = vand.u32 2147483647, %v3290
      %v3307 = vand.u32 2147483647, %v3291
      %v3308 = vand.u32 2147483647, %v3292
      %v3309 = vand.u32 2147483647, %v3293
      %v3310 = vand.u32 2147483647, %v3294
      %v3311 = vand.u32 2147483647, %v3295
      %v3312 = vand.u32 2147483647, %v3296
      %v3313 = vand.u32 2147483647, %v3297
      %v3314 = vand.u32 2147483647, %v3298
      %v3315 = vand.u32 2147483647, %v3299
      %v3316 = vand.u32 2147483647, %v3300
      %v3317 = vand.u32 2147483647, %v3301
      %v3318 = vand.u32 2147483647, %v3302
      %v3319 = vand.u32 2147483647, %v3303
      %v3320 = vand.u32 2147483647, %v3304
      %3321 = vmatprep.subr.mxu0 0.0
      %3322 = vmatpush1.xpose.msra.mxu0 %v3305
      %3323 = vmatprep.subr.mxu0 0.0
      %3324 = vmatpush1.xpose.msra.mxu0 %v3306
      %3325 = vmatprep.subr.mxu0 0.0
      %3326 = vmatpush1.xpose.msra.mxu0 %v3307
      %3327 = vmatprep.subr.mxu0 0.0
      %3328 = vmatpush1.xpose.msra.mxu0 %v3308
      %3329 = vmatprep.subr.mxu0 0.0
      %3330 = vmatpush1.xpose.msra.mxu0 %v3309
      %3331 = vmatprep.subr.mxu0 0.0
      %3332 = vmatpush1.xpose.msra.mxu0 %v3310
      %3333 = vmatprep.subr.mxu0 0.0
      %3334 = vmatpush1.xpose.msra.mxu0 %v3311
      %3335 = vmatprep.subr.mxu0 0.0
      %3336 = vmatpush1.xpose.msra.mxu0 %v3312
      %3337 = vmatprep.subr.mxu0 0.0
      %3338 = vmatpush1.xpose.msra.mxu0 %v3313
      %3339 = vmatprep.subr.mxu0 0.0
      %3340 = vmatpush1.xpose.msra.mxu0 %v3314
      %3341 = vmatprep.subr.mxu0 0.0
      %3342 = vmatpush1.xpose.msra.mxu0 %v3315
      %3343 = vmatprep.subr.mxu0 0.0
      %3344 = vmatpush1.xpose.msra.mxu0 %v3316
      %3345 = vmatprep.subr.mxu0 0.0
      %3346 = vmatpush1.xpose.msra.mxu0 %v3317
      %3347 = vmatprep.subr.mxu0 0.0
      %3348 = vmatpush1.xpose.msra.mxu0 %v3318
      %3349 = vmatprep.subr.mxu0 0.0
      %3350 = vmatpush1.xpose.msra.mxu0 %v3319
      %3351 = vmatprep.subr.mxu0 0.0
      %3352 = vmatpush1.xpose.msra.mxu0 %v3320
      %3353 = vmatprep.subr.mxu0 0.0
      %3354 = vmatpush1.xpose.msra.mxu0 0.0
      %3355 = vmatprep.subr.mxu0 0.0
      %3356 = vmatpush1.xpose.msra.mxu0 0.0
      %3357 = vmatprep.subr.mxu0 0.0
      %3358 = vmatpush1.xpose.msra.mxu0 0.0
      %3359 = vmatprep.subr.mxu0 0.0
      %3360 = vmatpush1.xpose.msra.mxu0 0.0
      %3361 = vmatprep.subr.mxu0 0.0
      %3362 = vmatpush1.xpose.msra.mxu0 0.0
      %3363 = vmatprep.subr.mxu0 0.0
      %3364 = vmatpush1.xpose.msra.mxu0 0.0
      %3365 = vmatprep.subr.mxu0 0.0
      %3366 = vmatpush1.xpose.msra.mxu0 0.0
      %3367 = vmatprep.subr.mxu0 0.0
      %3368 = vmatpush1.xpose.msra.mxu0 0.0
      %3369 = vmatprep.subr.mxu0 0.0
      %3370 = vmatpush1.xpose.msra.mxu0 0.0
      %3371 = vmatprep.subr.mxu0 0.0
      %3372 = vmatpush1.xpose.msra.mxu0 0.0
      %3373 = vmatprep.subr.mxu0 0.0
      %3374 = vmatpush1.xpose.msra.mxu0 0.0
      %3375 = vmatprep.subr.mxu0 0.0
      %3376 = vmatpush1.xpose.msra.mxu0 0.0
      %3377 = vmatprep.subr.mxu0 0.0
      %3378 = vmatpush1.xpose.msra.mxu0 0.0
      %3379 = vmatprep.subr.mxu0 0.0
      %3380 = vmatpush1.xpose.msra.mxu0 0.0
      %3381 = vmatprep.subr.mxu0 0.0
      %3382 = vmatpush1.xpose.msra.mxu0 0.0
      %3383 = vmatprep.subr.mxu0 0.0
      %3384 = vmatpush1.xpose.msra.mxu0 0.0
      %3385 = vmatprep.mubr.f32.mxu0 0.0
      %3386 = vmatmul.mubr.f32.gmra.mrb[0].mxu0 1.0
      %v3387 = vpop.f32.mrb[0].mxu0
      %v3388 = vadd.f32 0.0, %v3387
      %v3389 = vpop.f32.mrb[0].mxu0
      %3390 = vdwg.mxu0
      %v3391 = vsub.f32 10.0, %v3388
      %3392 = vst [vmem:[%s332] sm:$0xff] %v3391
      %p3393 = scmp.lt.s32.totalorder %s20, 1
      %s3394 = scalar_select %p3393, %s20, 1
      %s3395 = smul.addr %s3394, 8
      %s3396 = scalar_lea.vmem %s9, %s3395
      // Predicated region
      $region57: #{kge_forward_single.1} parent=55 // pred_check
        %p3397 = pneg %p232
      $region58: #{kge_forward_single.1} parent=55 // pred_check_branch
        %3399 = sbr.rel (%p3397) target = $region60
      $region59: #{kge_forward_single.1} parent=55 // pred_region
        _
      $region60: #{kge_forward_single.1} parent=55 // pred_fallthru
        _
    $region56: #{kge_forward_single.1} parent=5 // pred_fallthru
      _
    %p3400 = scmp.le.s32.totalorder 2, %s15
    // Predicated region
    $region61: #{kge_forward_single.1} parent=5 // pred_check
      %p3401 = pneg %p3400
    $region62: #{kge_forward_single.1} parent=5 // pred_check_branch
      %3403 = sbr.rel (%p3401) target = $region64
    $region63: #{kge_forward_single.1} parent=5 // pred_region
      %s3404 = ssub.s32 %s15, 2
      // Predicated region
      $region65: #{kge_forward_single.1} parent=63 // pred_check
        %p3405 = pneg %p238
      $region66: #{kge_forward_single.1} parent=63 // pred_check_branch
        %3407 = sbr.rel (%p3405) target = $region68
      $region67: #{kge_forward_single.1} parent=63 // pred_region
        %p3408 = scmp.lt.s32.totalorder %s21, 1
        %s3409 = scalar_select %p3408, %s21, 1
        %s3410 = smul.addr %s3409, 8
        %s3411 = scalar_lea.vmem %s9, %s3410
      $region68: #{kge_forward_single.1} parent=63 // pred_fallthru
        _
    $region64: #{kge_forward_single.1} parent=5 // pred_fallthru
      _
  $region6: #{kge_forward_single.1} parent=0 // loop_footer
    %s19 = sadd.s32 1, %s15
  $region7: #{kge_forward_single.1} parent=0 // loop_footer_branch
    %14 = sbr.rel target = $region3
  $region8: #{kge_forward_single.1} parent=0 // loop_exit
    _

</llo_original>
